<compile_context>
chip_gen: v7x
topology: tpu7x:2x2x1
jax: 0.10.0
libtpu: 0.0.40
codegen_flags: <defaults>
</compile_context>

<pallas_src>
import functools

import jax
import jax.numpy as jnp
from jax import lax
from jax.experimental import pallas as pl
from jax.experimental.pallas import tpu as pltpu

# ----------------------- small deterministic hyper-params -----------------------
VOCAB   = 32      # vocab_size
VPAD    = 128     # lane-dense padded vocab for the logits store
PAD_IDX = 0       # padding_idx
D_EMB   = 16      # d_embedding
D_HID   = 32      # d_hidden
D_LAT   = 16      # d_latent (nd = 1  ->  embed_dim == d_latent)
N_CODE  = 32      # num_latent_embed
SEQ     = 8
BATCH   = 2
BETA    = 0.25    # commitment cost of VectorQuant

_VMEM = pl.BlockSpec(memory_space=pltpu.MemorySpace.VMEM)
_SMEM = pl.BlockSpec(memory_space=pltpu.MemorySpace.SMEM)


# ================================ fused Pallas kernel ================================

def vqvae_fused_kernel(tok_ref, emb_ref, wih_cat_ref, b_cat_ref,
                       enc_whh_ref, enc_wproj_ref,
                       cb_ref,
                       dec_wihz_ref, dec_whh_ref, dec_wout_ref,
                       logits_ref, mse_ref,
                       *, discrete: bool):
    """Whole VQVAE forward for one (SEQ, BATCH) token block.

    tok:      (N,) int32 token ids in SMEM        (N = SEQ*BATCH)
    emb:      (VPAD, E) zero-padded embedding / tied output weight
    wih_cat:  (E, 8H)  = [enc_wih | dec_wih_x]    (fused hoisted gate weights)
    b_cat:    (1, 8H)  = [enc_b   | dec_b]
    Outputs:  logits (N, VPAD) lane-dense VMEM, mse (1,) SMEM scalar.
    """
    N  = SEQ * BATCH
    H4 = 4 * D_HID

    # ---- fused embedding lookup: build one-hot from SMEM token scalars, then
    #      one-hot(N,VPAD) @ emb(VPAD,E) on the MXU (cheap only because V is tiny;
    #      at real vocab sizes switch to a DMA / Element-BlockSpec row gather). ----
    iota_lane = lax.broadcasted_iota(jnp.int32, (N, VPAD), 1)
    iota_row  = lax.broadcasted_iota(jnp.int32, (N, VPAD), 0)
    onehot = jnp.zeros((N, VPAD), jnp.float32)
    for n in range(N):                                    # N=16 static selects (VPU)
        onehot = jnp.where((iota_row == n) & (iota_lane == tok_ref[n]),
                           jnp.float32(1.0), onehot)
    x2d = jnp.dot(onehot, emb_ref[...],
                  preferred_element_type=jnp.float32)                    # (N, E)

    # ---- hoisted input-to-hidden matmul for BOTH LSTMs in one MXU pass ----
    gates_cat = (jnp.dot(x2d, wih_cat_ref[...],
                         preferred_element_type=jnp.float32)
                 + b_cat_ref[...])                                       # (N, 8H)
    gates_enc   = gates_cat[:, :H4]                                      # (N, 4H)
    gates_dec_x = gates_cat[:, H4:]                                      # (N, 4H)

    def lstm_pass(gates_all, whh):
        """One LSTM over precomputed input gates; state stays in vregs.

        Statically unrolled (SEQ is compile-time). One full-row sigmoid + one
        tanh(g) + one tanh(c) EUP push per step. Returns hidden states of all
        timesteps as a single (N, H) value.
        """
        h = jnp.zeros((BATCH, D_HID), jnp.float32)
        c = jnp.zeros((BATCH, D_HID), jnp.float32)
        hs = []
        for t in range(SEQ):
            gates = (gates_all[t * BATCH:(t + 1) * BATCH, :]
                     + jnp.dot(h, whh, preferred_element_type=jnp.float32))
            sig = jax.nn.sigmoid(gates)                      # i, f, o in one pass
            g   = jnp.tanh(gates[:, 2 * D_HID:3 * D_HID])
            i = sig[:, 0 * D_HID:1 * D_HID]
            f = sig[:, 1 * D_HID:2 * D_HID]
            o = sig[:, 3 * D_HID:4 * D_HID]
            c = f * c + i * g
            h = o * jnp.tanh(c)
            hs.append(h)
        return jnp.concatenate(hs, axis=0)                               # (N, H)

    # ------------------------------- encoder -------------------------------
    h_enc = lstm_pass(gates_enc, enc_whh_ref[...])
    z = jnp.dot(h_enc, enc_wproj_ref[...],
                preferred_element_type=jnp.float32)                      # (N, L)

    # --------------------------- vector quantization ---------------------------
    if discrete:
        cb = cb_ref[...]                                                 # (K, L)
        cross = lax.dot_general(z, cb, (((1,), (1,)), ((), ())),
                                preferred_element_type=jnp.float32)      # (N, K)
        cb_sq = jnp.sum(cb * cb, axis=-1, keepdims=True)                 # (K, 1)
        dist = cb_sq.T - 2.0 * cross        # ||z||^2 dropped (row-constant)
        iota_k = lax.broadcasted_iota(jnp.int32, dist.shape, 1)
        min_d = jnp.min(dist, axis=-1, keepdims=True)
        first_idx = jnp.min(jnp.where(dist <= min_d, iota_k, N_CODE),
                            axis=-1, keepdims=True)                      # (N, 1)
        sel = (iota_k == first_idx).astype(jnp.float32)                  # (N, K)
        q = jnp.dot(sel, cb, preferred_element_type=jnp.float32)         # (N, L)

        diff = q - z
        mse_ref[0] = jnp.sum(diff * diff) * (1.0 / float(N * D_LAT))
        z_dec = q                                    # forward value of STE
    else:
        mse_ref[0] = jnp.float32(0.0)
        z_dec = z

    # ------------------------------- decoder -------------------------------
    # concat(x, z) @ Wih == x @ Wih_x (hoisted above) + z @ Wih_z.
    gates_dec = gates_dec_x + jnp.dot(z_dec, dec_wihz_ref[...],
                                      preferred_element_type=jnp.float32)
    h_dec = lstm_pass(gates_dec, dec_whh_ref[...])

    # Tied output projection folded into the decoder output weight; emb is
    # zero-padded to VPAD rows so the store is a full lane-dense (N, 128) vst.
    w_fused = lax.dot_general(dec_wout_ref[...], emb_ref[...],
                              (((1,), (1,)), ((), ())),
                              preferred_element_type=jnp.float32)        # (H, VPAD)
    logits_ref[...] = jnp.dot(h_dec, w_fused,
                              preferred_element_type=jnp.float32)        # (N, VPAD)


# ================================ wrapper ================================

@functools.partial(jax.jit, static_argnames=("discrete",))
def vqvae_forward(params, tokens, discrete=True):
    """tokens: int32 (S, B).  Returns (logits (S, B, V), vq_loss 3-tuple)."""
    S, B = tokens.shape
    N = S * B
    tok1d = tokens.reshape(N).astype(jnp.int32)

    # Tiny one-time wrapper-side weight prep (layout plumbing, not compute):
    #  * pad emb to 128 rows -> lane-dense tied projection / one-hot lookup
    #  * concat the two hoisted input-to-hidden weights + biases -> one matmul
    emb_pad = jnp.zeros((VPAD, D_EMB), jnp.float32).at[:VOCAB].set(params["emb"])
    wih_cat = jnp.concatenate([params["enc_wih"], params["dec_wih_x"]], axis=1)  # (E, 8H)
    b_cat   = jnp.concatenate([params["enc_b"], params["dec_b"]], axis=1)        # (1, 8H)

    kernel = functools.partial(vqvae_fused_kernel, discrete=discrete)
    logits_pad, mse = pl.pallas_call(
        kernel,
        out_shape=(jax.ShapeDtypeStruct((N, VPAD), jnp.float32),
                   jax.ShapeDtypeStruct((1,), jnp.float32)),
        in_specs=[_SMEM] + [_VMEM] * 9,
        out_specs=(_VMEM, _SMEM),
    )(tok1d, emb_pad, wih_cat, b_cat,
      params["enc_whh"], params["enc_wproj"],
      params["codebook"],
      params["dec_wih_z"], params["dec_whh"], params["dec_wout"])

    logits = logits_pad[:, :VOCAB].reshape(S, B, VOCAB)
    if discrete:
        m = mse[0]
        vq_loss = ((1.0 + BETA) * m, m, BETA * m)   # (total, codebook, commitment)
    else:
        vq_loss = (jnp.float32(0.0), jnp.float32(0.0), jnp.float32(0.0))
    return logits, vq_loss


# ================================ parameters ================================

def init_params(key):
    ks = jax.random.split(key, 9)
    s = 0.1
    emb = jax.random.normal(ks[0], (VOCAB, D_EMB), jnp.float32) * s
    emb = emb.at[PAD_IDX].set(0.0)                       # padding_idx row = 0
    return dict(
        emb=emb,
        enc_wih=jax.random.normal(ks[1], (D_EMB, 4 * D_HID), jnp.float32) * s,
        enc_whh=jax.random.normal(ks[2], (D_HID, 4 * D_HID), jnp.float32) * s,
        enc_b=jnp.zeros((1, 4 * D_HID), jnp.float32),
        enc_wproj=jax.random.normal(ks[3], (D_HID, D_LAT), jnp.float32) * s,
        codebook=jax.random.normal(ks[4], (N_CODE, D_LAT), jnp.float32) * s,
        dec_wih_x=jax.random.normal(ks[5], (D_EMB, 4 * D_HID), jnp.float32) * s,
        dec_wih_z=jax.random.normal(ks[6], (D_LAT, 4 * D_HID), jnp.float32) * s,
        dec_whh=jax.random.normal(ks[7], (D_HID, 4 * D_HID), jnp.float32) * s,
        dec_b=jnp.zeros((1, 4 * D_HID), jnp.float32),
        dec_wout=jax.random.normal(ks[8], (D_HID, D_EMB), jnp.float32) * s,
    )


# ================================ main ================================

if __name__ == "__main__":
    key = jax.random.PRNGKey(0)
    k_param, k_tok = jax.random.split(key)

    params = init_params(k_param)
    tokens = jax.random.randint(k_tok, (SEQ, BATCH), 0, VOCAB, dtype=jnp.int32)
    tokens = tokens.at[-1, :].set(PAD_IDX)   # include some padding tokens

    logits, vq_loss = vqvae_forward(params, tokens, discrete=True)
    jax.block_until_ready(logits)
    jax.block_until_ready(vq_loss[0])

    assert logits.shape == (SEQ, BATCH, VOCAB)
    assert logits.dtype == jnp.float32
    assert vq_loss[0].shape == ()
    print("KERNEL_OK")
</pallas_src>

<mosaic_0001>
module attributes {stable_mosaic.version = 11 : i64} {
  func.func @vqvae_fused_kernel(%arg0: memref<16xi32, #tpu.memory_space<smem>>, %arg1: memref<128x16xf32, #tpu.memory_space<vmem>>, %arg2: memref<16x256xf32, #tpu.memory_space<vmem>>, %arg3: memref<1x256xf32, #tpu.memory_space<vmem>>, %arg4: memref<32x128xf32, #tpu.memory_space<vmem>>, %arg5: memref<32x16xf32, #tpu.memory_space<vmem>>, %arg6: memref<32x16xf32, #tpu.memory_space<vmem>>, %arg7: memref<16x128xf32, #tpu.memory_space<vmem>>, %arg8: memref<32x128xf32, #tpu.memory_space<vmem>>, %arg9: memref<32x16xf32, #tpu.memory_space<vmem>>, %arg10: memref<16x128xf32, #tpu.memory_space<vmem>>, %arg11: memref<1xf32, #tpu.memory_space<smem>>) attributes {dimension_semantics = [], scalar_prefetch = 0 : i64, scratch_operands = 0 : i64, tpu.core_type = #tpu.core_type<tc>} {
    %0 = tpu.iota {dimensions = array<i32: 1>} : vector<16x128xi32>
    %1 = tpu.iota {dimensions = array<i32: 0>} : vector<16x128xi32>
    %cst = arith.constant 0.000000e+00 : f32
    %2 = vector.broadcast %cst : f32 to vector<16x128xf32>
    %c0_i32 = arith.constant 0 : i32
    %3 = vector.broadcast %c0_i32 : i32 to vector<16x128xi32>
    %4 = arith.cmpi eq, %1, %3 : vector<16x128xi32>
    %c0 = arith.constant 0 : index
    %5 = memref.load %arg0[%c0] : memref<16xi32, #tpu.memory_space<smem>>
    %6 = vector.broadcast %5 : i32 to vector<16x128xi32>
    %7 = arith.cmpi eq, %0, %6 : vector<16x128xi32>
    %8 = arith.andi %4, %7 : vector<16x128xi1>
    %cst_0 = arith.constant 1.000000e+00 : f32
    %9 = vector.broadcast %cst_0 : f32 to vector<16x128xf32>
    %10 = arith.select %8, %9, %2 : vector<16x128xi1>, vector<16x128xf32>
    %c1_i32 = arith.constant 1 : i32
    %11 = vector.broadcast %c1_i32 : i32 to vector<16x128xi32>
    %12 = arith.cmpi eq, %1, %11 : vector<16x128xi32>
    %c1 = arith.constant 1 : index
    %13 = memref.load %arg0[%c1] : memref<16xi32, #tpu.memory_space<smem>>
    %14 = vector.broadcast %13 : i32 to vector<16x128xi32>
    %15 = arith.cmpi eq, %0, %14 : vector<16x128xi32>
    %16 = arith.andi %12, %15 : vector<16x128xi1>
    %cst_1 = arith.constant 1.000000e+00 : f32
    %17 = vector.broadcast %cst_1 : f32 to vector<16x128xf32>
    %18 = arith.select %16, %17, %10 : vector<16x128xi1>, vector<16x128xf32>
    %c2_i32 = arith.constant 2 : i32
    %19 = vector.broadcast %c2_i32 : i32 to vector<16x128xi32>
    %20 = arith.cmpi eq, %1, %19 : vector<16x128xi32>
    %c2 = arith.constant 2 : index
    %21 = memref.load %arg0[%c2] : memref<16xi32, #tpu.memory_space<smem>>
    %22 = vector.broadcast %21 : i32 to vector<16x128xi32>
    %23 = arith.cmpi eq, %0, %22 : vector<16x128xi32>
    %24 = arith.andi %20, %23 : vector<16x128xi1>
    %cst_2 = arith.constant 1.000000e+00 : f32
    %25 = vector.broadcast %cst_2 : f32 to vector<16x128xf32>
    %26 = arith.select %24, %25, %18 : vector<16x128xi1>, vector<16x128xf32>
    %c3_i32 = arith.constant 3 : i32
    %27 = vector.broadcast %c3_i32 : i32 to vector<16x128xi32>
    %28 = arith.cmpi eq, %1, %27 : vector<16x128xi32>
    %c3 = arith.constant 3 : index
    %29 = memref.load %arg0[%c3] : memref<16xi32, #tpu.memory_space<smem>>
    %30 = vector.broadcast %29 : i32 to vector<16x128xi32>
    %31 = arith.cmpi eq, %0, %30 : vector<16x128xi32>
    %32 = arith.andi %28, %31 : vector<16x128xi1>
    %cst_3 = arith.constant 1.000000e+00 : f32
    %33 = vector.broadcast %cst_3 : f32 to vector<16x128xf32>
    %34 = arith.select %32, %33, %26 : vector<16x128xi1>, vector<16x128xf32>
    %c4_i32 = arith.constant 4 : i32
    %35 = vector.broadcast %c4_i32 : i32 to vector<16x128xi32>
    %36 = arith.cmpi eq, %1, %35 : vector<16x128xi32>
    %c4 = arith.constant 4 : index
    %37 = memref.load %arg0[%c4] : memref<16xi32, #tpu.memory_space<smem>>
    %38 = vector.broadcast %37 : i32 to vector<16x128xi32>
    %39 = arith.cmpi eq, %0, %38 : vector<16x128xi32>
    %40 = arith.andi %36, %39 : vector<16x128xi1>
    %cst_4 = arith.constant 1.000000e+00 : f32
    %41 = vector.broadcast %cst_4 : f32 to vector<16x128xf32>
    %42 = arith.select %40, %41, %34 : vector<16x128xi1>, vector<16x128xf32>
    %c5_i32 = arith.constant 5 : i32
    %43 = vector.broadcast %c5_i32 : i32 to vector<16x128xi32>
    %44 = arith.cmpi eq, %1, %43 : vector<16x128xi32>
    %c5 = arith.constant 5 : index
    %45 = memref.load %arg0[%c5] : memref<16xi32, #tpu.memory_space<smem>>
    %46 = vector.broadcast %45 : i32 to vector<16x128xi32>
    %47 = arith.cmpi eq, %0, %46 : vector<16x128xi32>
    %48 = arith.andi %44, %47 : vector<16x128xi1>
    %cst_5 = arith.constant 1.000000e+00 : f32
    %49 = vector.broadcast %cst_5 : f32 to vector<16x128xf32>
    %50 = arith.select %48, %49, %42 : vector<16x128xi1>, vector<16x128xf32>
    %c6_i32 = arith.constant 6 : i32
    %51 = vector.broadcast %c6_i32 : i32 to vector<16x128xi32>
    %52 = arith.cmpi eq, %1, %51 : vector<16x128xi32>
    %c6 = arith.constant 6 : index
    %53 = memref.load %arg0[%c6] : memref<16xi32, #tpu.memory_space<smem>>
    %54 = vector.broadcast %53 : i32 to vector<16x128xi32>
    %55 = arith.cmpi eq, %0, %54 : vector<16x128xi32>
    %56 = arith.andi %52, %55 : vector<16x128xi1>
    %cst_6 = arith.constant 1.000000e+00 : f32
    %57 = vector.broadcast %cst_6 : f32 to vector<16x128xf32>
    %58 = arith.select %56, %57, %50 : vector<16x128xi1>, vector<16x128xf32>
    %c7_i32 = arith.constant 7 : i32
    %59 = vector.broadcast %c7_i32 : i32 to vector<16x128xi32>
    %60 = arith.cmpi eq, %1, %59 : vector<16x128xi32>
    %c7 = arith.constant 7 : index
    %61 = memref.load %arg0[%c7] : memref<16xi32, #tpu.memory_space<smem>>
    %62 = vector.broadcast %61 : i32 to vector<16x128xi32>
    %63 = arith.cmpi eq, %0, %62 : vector<16x128xi32>
    %64 = arith.andi %60, %63 : vector<16x128xi1>
    %cst_7 = arith.constant 1.000000e+00 : f32
    %65 = vector.broadcast %cst_7 : f32 to vector<16x128xf32>
    %66 = arith.select %64, %65, %58 : vector<16x128xi1>, vector<16x128xf32>
    %c8_i32 = arith.constant 8 : i32
    %67 = vector.broadcast %c8_i32 : i32 to vector<16x128xi32>
    %68 = arith.cmpi eq, %1, %67 : vector<16x128xi32>
    %c8 = arith.constant 8 : index
    %69 = memref.load %arg0[%c8] : memref<16xi32, #tpu.memory_space<smem>>
    %70 = vector.broadcast %69 : i32 to vector<16x128xi32>
    %71 = arith.cmpi eq, %0, %70 : vector<16x128xi32>
    %72 = arith.andi %68, %71 : vector<16x128xi1>
    %cst_8 = arith.constant 1.000000e+00 : f32
    %73 = vector.broadcast %cst_8 : f32 to vector<16x128xf32>
    %74 = arith.select %72, %73, %66 : vector<16x128xi1>, vector<16x128xf32>
    %c9_i32 = arith.constant 9 : i32
    %75 = vector.broadcast %c9_i32 : i32 to vector<16x128xi32>
    %76 = arith.cmpi eq, %1, %75 : vector<16x128xi32>
    %c9 = arith.constant 9 : index
    %77 = memref.load %arg0[%c9] : memref<16xi32, #tpu.memory_space<smem>>
    %78 = vector.broadcast %77 : i32 to vector<16x128xi32>
    %79 = arith.cmpi eq, %0, %78 : vector<16x128xi32>
    %80 = arith.andi %76, %79 : vector<16x128xi1>
    %cst_9 = arith.constant 1.000000e+00 : f32
    %81 = vector.broadcast %cst_9 : f32 to vector<16x128xf32>
    %82 = arith.select %80, %81, %74 : vector<16x128xi1>, vector<16x128xf32>
    %c10_i32 = arith.constant 10 : i32
    %83 = vector.broadcast %c10_i32 : i32 to vector<16x128xi32>
    %84 = arith.cmpi eq, %1, %83 : vector<16x128xi32>
    %c10 = arith.constant 10 : index
    %85 = memref.load %arg0[%c10] : memref<16xi32, #tpu.memory_space<smem>>
    %86 = vector.broadcast %85 : i32 to vector<16x128xi32>
    %87 = arith.cmpi eq, %0, %86 : vector<16x128xi32>
    %88 = arith.andi %84, %87 : vector<16x128xi1>
    %cst_10 = arith.constant 1.000000e+00 : f32
    %89 = vector.broadcast %cst_10 : f32 to vector<16x128xf32>
    %90 = arith.select %88, %89, %82 : vector<16x128xi1>, vector<16x128xf32>
    %c11_i32 = arith.constant 11 : i32
    %91 = vector.broadcast %c11_i32 : i32 to vector<16x128xi32>
    %92 = arith.cmpi eq, %1, %91 : vector<16x128xi32>
    %c11 = arith.constant 11 : index
    %93 = memref.load %arg0[%c11] : memref<16xi32, #tpu.memory_space<smem>>
    %94 = vector.broadcast %93 : i32 to vector<16x128xi32>
    %95 = arith.cmpi eq, %0, %94 : vector<16x128xi32>
    %96 = arith.andi %92, %95 : vector<16x128xi1>
    %cst_11 = arith.constant 1.000000e+00 : f32
    %97 = vector.broadcast %cst_11 : f32 to vector<16x128xf32>
    %98 = arith.select %96, %97, %90 : vector<16x128xi1>, vector<16x128xf32>
    %c12_i32 = arith.constant 12 : i32
    %99 = vector.broadcast %c12_i32 : i32 to vector<16x128xi32>
    %100 = arith.cmpi eq, %1, %99 : vector<16x128xi32>
    %c12 = arith.constant 12 : index
    %101 = memref.load %arg0[%c12] : memref<16xi32, #tpu.memory_space<smem>>
    %102 = vector.broadcast %101 : i32 to vector<16x128xi32>
    %103 = arith.cmpi eq, %0, %102 : vector<16x128xi32>
    %104 = arith.andi %100, %103 : vector<16x128xi1>
    %cst_12 = arith.constant 1.000000e+00 : f32
    %105 = vector.broadcast %cst_12 : f32 to vector<16x128xf32>
    %106 = arith.select %104, %105, %98 : vector<16x128xi1>, vector<16x128xf32>
    %c13_i32 = arith.constant 13 : i32
    %107 = vector.broadcast %c13_i32 : i32 to vector<16x128xi32>
    %108 = arith.cmpi eq, %1, %107 : vector<16x128xi32>
    %c13 = arith.constant 13 : index
    %109 = memref.load %arg0[%c13] : memref<16xi32, #tpu.memory_space<smem>>
    %110 = vector.broadcast %109 : i32 to vector<16x128xi32>
    %111 = arith.cmpi eq, %0, %110 : vector<16x128xi32>
    %112 = arith.andi %108, %111 : vector<16x128xi1>
    %cst_13 = arith.constant 1.000000e+00 : f32
    %113 = vector.broadcast %cst_13 : f32 to vector<16x128xf32>
    %114 = arith.select %112, %113, %106 : vector<16x128xi1>, vector<16x128xf32>
    %c14_i32 = arith.constant 14 : i32
    %115 = vector.broadcast %c14_i32 : i32 to vector<16x128xi32>
    %116 = arith.cmpi eq, %1, %115 : vector<16x128xi32>
    %c14 = arith.constant 14 : index
    %117 = memref.load %arg0[%c14] : memref<16xi32, #tpu.memory_space<smem>>
    %118 = vector.broadcast %117 : i32 to vector<16x128xi32>
    %119 = arith.cmpi eq, %0, %118 : vector<16x128xi32>
    %120 = arith.andi %116, %119 : vector<16x128xi1>
    %cst_14 = arith.constant 1.000000e+00 : f32
    %121 = vector.broadcast %cst_14 : f32 to vector<16x128xf32>
    %122 = arith.select %120, %121, %114 : vector<16x128xi1>, vector<16x128xf32>
    %c15_i32 = arith.constant 15 : i32
    %123 = vector.broadcast %c15_i32 : i32 to vector<16x128xi32>
    %124 = arith.cmpi eq, %1, %123 : vector<16x128xi32>
    %c15 = arith.constant 15 : index
    %125 = memref.load %arg0[%c15] : memref<16xi32, #tpu.memory_space<smem>>
    %126 = vector.broadcast %125 : i32 to vector<16x128xi32>
    %127 = arith.cmpi eq, %0, %126 : vector<16x128xi32>
    %128 = arith.andi %124, %127 : vector<16x128xi1>
    %cst_15 = arith.constant 1.000000e+00 : f32
    %129 = vector.broadcast %cst_15 : f32 to vector<16x128xf32>
    %130 = arith.select %128, %129, %122 : vector<16x128xi1>, vector<16x128xf32>
    %c0_16 = arith.constant 0 : index
    %c0_17 = arith.constant 0 : index
    %131 = vector.load %arg1[%c0_16, %c0_17] : memref<128x16xf32, #tpu.memory_space<vmem>>, vector<128x16xf32>
    %cst_18 = arith.constant dense<0.000000e+00> : vector<16x16xf32>
    %132 = tpu.matmul %130, %131, %cst_18 {dimension_numbers = #tpu.dot_dimension_numbers<[1], [0], [0], [1], [0, 0, 1, 1], [], []>} : vector<16x128xf32>, vector<128x16xf32>, vector<16x16xf32> -> vector<16x16xf32>
    %c0_19 = arith.constant 0 : index
    %c0_20 = arith.constant 0 : index
    %133 = vector.load %arg2[%c0_19, %c0_20] : memref<16x256xf32, #tpu.memory_space<vmem>>, vector<16x256xf32>
    %cst_21 = arith.constant dense<0.000000e+00> : vector<16x256xf32>
    %134 = tpu.matmul %132, %133, %cst_21 {dimension_numbers = #tpu.dot_dimension_numbers<[1], [0], [0], [1], [0, 0, 1, 1], [], []>} : vector<16x16xf32>, vector<16x256xf32>, vector<16x256xf32> -> vector<16x256xf32>
    %c0_22 = arith.constant 0 : index
    %c0_23 = arith.constant 0 : index
    %135 = vector.load %arg3[%c0_22, %c0_23] : memref<1x256xf32, #tpu.memory_space<vmem>>, vector<1x256xf32>
    %136 = vector.broadcast %135 : vector<1x256xf32> to vector<16x256xf32>
    %137 = arith.addf %134, %136 : vector<16x256xf32>
    %138 = vector.extract_strided_slice %137 {offsets = [0, 0], sizes = [16, 128], strides = [1, 1]} : vector<16x256xf32> to vector<16x128xf32>
    %139 = vector.extract_strided_slice %137 {offsets = [0, 128], sizes = [16, 128], strides = [1, 1]} : vector<16x256xf32> to vector<16x128xf32>
    %c0_24 = arith.constant 0 : index
    %c0_25 = arith.constant 0 : index
    %140 = vector.load %arg4[%c0_24, %c0_25] : memref<32x128xf32, #tpu.memory_space<vmem>>, vector<32x128xf32>
    %cst_26 = arith.constant 0.000000e+00 : f32
    %141 = vector.broadcast %cst_26 : f32 to vector<2x32xf32>
    %cst_27 = arith.constant 0.000000e+00 : f32
    %142 = vector.broadcast %cst_27 : f32 to vector<2x32xf32>
    %143 = vector.extract_strided_slice %138 {offsets = [0, 0], sizes = [2, 128], strides = [1, 1]} : vector<16x128xf32> to vector<2x128xf32>
    %cst_28 = arith.constant dense<0.000000e+00> : vector<2x128xf32>
    %144 = tpu.matmul %141, %140, %cst_28 {dimension_numbers = #tpu.dot_dimension_numbers<[1], [0], [0], [1], [0, 0, 1, 1], [], []>} : vector<2x32xf32>, vector<32x128xf32>, vector<2x128xf32> -> vector<2x128xf32>
    %145 = arith.addf %143, %144 : vector<2x128xf32>
    %146 = arith.negf %145 : vector<2x128xf32>
    %147 = math.exp %146 : vector<2x128xf32>
    %cst_29 = arith.constant 1.000000e+00 : f32
    %148 = vector.broadcast %cst_29 : f32 to vector<2x128xf32>
    %149 = arith.addf %148, %147 : vector<2x128xf32>
    %150 = arith.divf %148, %149 : vector<2x128xf32>
    %151 = vector.extract_strided_slice %145 {offsets = [0, 64], sizes = [2, 32], strides = [1, 1]} : vector<2x128xf32> to vector<2x32xf32>
    %152 = math.tanh %151 : vector<2x32xf32>
    %153 = vector.extract_strided_slice %150 {offsets = [0, 0], sizes = [2, 32], strides = [1, 1]} : vector<2x128xf32> to vector<2x32xf32>
    %154 = vector.extract_strided_slice %150 {offsets = [0, 32], sizes = [2, 32], strides = [1, 1]} : vector<2x128xf32> to vector<2x32xf32>
    %155 = vector.extract_strided_slice %150 {offsets = [0, 96], sizes = [2, 32], strides = [1, 1]} : vector<2x128xf32> to vector<2x32xf32>
    %156 = arith.mulf %154, %142 : vector<2x32xf32>
    %157 = arith.mulf %153, %152 : vector<2x32xf32>
    %158 = arith.addf %156, %157 : vector<2x32xf32>
    %159 = math.tanh %158 : vector<2x32xf32>
    %160 = arith.mulf %155, %159 : vector<2x32xf32>
    %161 = vector.extract_strided_slice %138 {offsets = [2, 0], sizes = [2, 128], strides = [1, 1]} : vector<16x128xf32> to vector<2x128xf32>
    %cst_30 = arith.constant dense<0.000000e+00> : vector<2x128xf32>
    %162 = tpu.matmul %160, %140, %cst_30 {dimension_numbers = #tpu.dot_dimension_numbers<[1], [0], [0], [1], [0, 0, 1, 1], [], []>} : vector<2x32xf32>, vector<32x128xf32>, vector<2x128xf32> -> vector<2x128xf32>
    %163 = arith.addf %161, %162 : vector<2x128xf32>
    %164 = arith.negf %163 : vector<2x128xf32>
    %165 = math.exp %164 : vector<2x128xf32>
    %cst_31 = arith.constant 1.000000e+00 : f32
    %166 = vector.broadcast %cst_31 : f32 to vector<2x128xf32>
    %167 = arith.addf %166, %165 : vector<2x128xf32>
    %168 = arith.divf %166, %167 : vector<2x128xf32>
    %169 = vector.extract_strided_slice %163 {offsets = [0, 64], sizes = [2, 32], strides = [1, 1]} : vector<2x128xf32> to vector<2x32xf32>
    %170 = math.tanh %169 : vector<2x32xf32>
    %171 = vector.extract_strided_slice %168 {offsets = [0, 0], sizes = [2, 32], strides = [1, 1]} : vector<2x128xf32> to vector<2x32xf32>
    %172 = vector.extract_strided_slice %168 {offsets = [0, 32], sizes = [2, 32], strides = [1, 1]} : vector<2x128xf32> to vector<2x32xf32>
    %173 = vector.extract_strided_slice %168 {offsets = [0, 96], sizes = [2, 32], strides = [1, 1]} : vector<2x128xf32> to vector<2x32xf32>
    %174 = arith.mulf %172, %158 : vector<2x32xf32>
    %175 = arith.mulf %171, %170 : vector<2x32xf32>
    %176 = arith.addf %174, %175 : vector<2x32xf32>
    %177 = math.tanh %176 : vector<2x32xf32>
    %178 = arith.mulf %173, %177 : vector<2x32xf32>
    %179 = vector.extract_strided_slice %138 {offsets = [4, 0], sizes = [2, 128], strides = [1, 1]} : vector<16x128xf32> to vector<2x128xf32>
    %cst_32 = arith.constant dense<0.000000e+00> : vector<2x128xf32>
    %180 = tpu.matmul %178, %140, %cst_32 {dimension_numbers = #tpu.dot_dimension_numbers<[1], [0], [0], [1], [0, 0, 1, 1], [], []>} : vector<2x32xf32>, vector<32x128xf32>, vector<2x128xf32> -> vector<2x128xf32>
    %181 = arith.addf %179, %180 : vector<2x128xf32>
    %182 = arith.negf %181 : vector<2x128xf32>
    %183 = math.exp %182 : vector<2x128xf32>
    %cst_33 = arith.constant 1.000000e+00 : f32
    %184 = vector.broadcast %cst_33 : f32 to vector<2x128xf32>
    %185 = arith.addf %184, %183 : vector<2x128xf32>
    %186 = arith.divf %184, %185 : vector<2x128xf32>
    %187 = vector.extract_strided_slice %181 {offsets = [0, 64], sizes = [2, 32], strides = [1, 1]} : vector<2x128xf32> to vector<2x32xf32>
    %188 = math.tanh %187 : vector<2x32xf32>
    %189 = vector.extract_strided_slice %186 {offsets = [0, 0], sizes = [2, 32], strides = [1, 1]} : vector<2x128xf32> to vector<2x32xf32>
    %190 = vector.extract_strided_slice %186 {offsets = [0, 32], sizes = [2, 32], strides = [1, 1]} : vector<2x128xf32> to vector<2x32xf32>
    %191 = vector.extract_strided_slice %186 {offsets = [0, 96], sizes = [2, 32], strides = [1, 1]} : vector<2x128xf32> to vector<2x32xf32>
    %192 = arith.mulf %190, %176 : vector<2x32xf32>
    %193 = arith.mulf %189, %188 : vector<2x32xf32>
    %194 = arith.addf %192, %193 : vector<2x32xf32>
    %195 = math.tanh %194 : vector<2x32xf32>
    %196 = arith.mulf %191, %195 : vector<2x32xf32>
    %197 = vector.extract_strided_slice %138 {offsets = [6, 0], sizes = [2, 128], strides = [1, 1]} : vector<16x128xf32> to vector<2x128xf32>
    %cst_34 = arith.constant dense<0.000000e+00> : vector<2x128xf32>
    %198 = tpu.matmul %196, %140, %cst_34 {dimension_numbers = #tpu.dot_dimension_numbers<[1], [0], [0], [1], [0, 0, 1, 1], [], []>} : vector<2x32xf32>, vector<32x128xf32>, vector<2x128xf32> -> vector<2x128xf32>
    %199 = arith.addf %197, %198 : vector<2x128xf32>
    %200 = arith.negf %199 : vector<2x128xf32>
    %201 = math.exp %200 : vector<2x128xf32>
    %cst_35 = arith.constant 1.000000e+00 : f32
    %202 = vector.broadcast %cst_35 : f32 to vector<2x128xf32>
    %203 = arith.addf %202, %201 : vector<2x128xf32>
    %204 = arith.divf %202, %203 : vector<2x128xf32>
    %205 = vector.extract_strided_slice %199 {offsets = [0, 64], sizes = [2, 32], strides = [1, 1]} : vector<2x128xf32> to vector<2x32xf32>
    %206 = math.tanh %205 : vector<2x32xf32>
    %207 = vector.extract_strided_slice %204 {offsets = [0, 0], sizes = [2, 32], strides = [1, 1]} : vector<2x128xf32> to vector<2x32xf32>
    %208 = vector.extract_strided_slice %204 {offsets = [0, 32], sizes = [2, 32], strides = [1, 1]} : vector<2x128xf32> to vector<2x32xf32>
    %209 = vector.extract_strided_slice %204 {offsets = [0, 96], sizes = [2, 32], strides = [1, 1]} : vector<2x128xf32> to vector<2x32xf32>
    %210 = arith.mulf %208, %194 : vector<2x32xf32>
    %211 = arith.mulf %207, %206 : vector<2x32xf32>
    %212 = arith.addf %210, %211 : vector<2x32xf32>
    %213 = math.tanh %212 : vector<2x32xf32>
    %214 = arith.mulf %209, %213 : vector<2x32xf32>
    %215 = vector.extract_strided_slice %138 {offsets = [8, 0], sizes = [2, 128], strides = [1, 1]} : vector<16x128xf32> to vector<2x128xf32>
    %cst_36 = arith.constant dense<0.000000e+00> : vector<2x128xf32>
    %216 = tpu.matmul %214, %140, %cst_36 {dimension_numbers = #tpu.dot_dimension_numbers<[1], [0], [0], [1], [0, 0, 1, 1], [], []>} : vector<2x32xf32>, vector<32x128xf32>, vector<2x128xf32> -> vector<2x128xf32>
    %217 = arith.addf %215, %216 : vector<2x128xf32>
    %218 = arith.negf %217 : vector<2x128xf32>
    %219 = math.exp %218 : vector<2x128xf32>
    %cst_37 = arith.constant 1.000000e+00 : f32
    %220 = vector.broadcast %cst_37 : f32 to vector<2x128xf32>
    %221 = arith.addf %220, %219 : vector<2x128xf32>
    %222 = arith.divf %220, %221 : vector<2x128xf32>
    %223 = vector.extract_strided_slice %217 {offsets = [0, 64], sizes = [2, 32], strides = [1, 1]} : vector<2x128xf32> to vector<2x32xf32>
    %224 = math.tanh %223 : vector<2x32xf32>
    %225 = vector.extract_strided_slice %222 {offsets = [0, 0], sizes = [2, 32], strides = [1, 1]} : vector<2x128xf32> to vector<2x32xf32>
    %226 = vector.extract_strided_slice %222 {offsets = [0, 32], sizes = [2, 32], strides = [1, 1]} : vector<2x128xf32> to vector<2x32xf32>
    %227 = vector.extract_strided_slice %222 {offsets = [0, 96], sizes = [2, 32], strides = [1, 1]} : vector<2x128xf32> to vector<2x32xf32>
    %228 = arith.mulf %226, %212 : vector<2x32xf32>
    %229 = arith.mulf %225, %224 : vector<2x32xf32>
    %230 = arith.addf %228, %229 : vector<2x32xf32>
    %231 = math.tanh %230 : vector<2x32xf32>
    %232 = arith.mulf %227, %231 : vector<2x32xf32>
    %233 = vector.extract_strided_slice %138 {offsets = [10, 0], sizes = [2, 128], strides = [1, 1]} : vector<16x128xf32> to vector<2x128xf32>
    %cst_38 = arith.constant dense<0.000000e+00> : vector<2x128xf32>
    %234 = tpu.matmul %232, %140, %cst_38 {dimension_numbers = #tpu.dot_dimension_numbers<[1], [0], [0], [1], [0, 0, 1, 1], [], []>} : vector<2x32xf32>, vector<32x128xf32>, vector<2x128xf32> -> vector<2x128xf32>
    %235 = arith.addf %233, %234 : vector<2x128xf32>
    %236 = arith.negf %235 : vector<2x128xf32>
    %237 = math.exp %236 : vector<2x128xf32>
    %cst_39 = arith.constant 1.000000e+00 : f32
    %238 = vector.broadcast %cst_39 : f32 to vector<2x128xf32>
    %239 = arith.addf %238, %237 : vector<2x128xf32>
    %240 = arith.divf %238, %239 : vector<2x128xf32>
    %241 = vector.extract_strided_slice %235 {offsets = [0, 64], sizes = [2, 32], strides = [1, 1]} : vector<2x128xf32> to vector<2x32xf32>
    %242 = math.tanh %241 : vector<2x32xf32>
    %243 = vector.extract_strided_slice %240 {offsets = [0, 0], sizes = [2, 32], strides = [1, 1]} : vector<2x128xf32> to vector<2x32xf32>
    %244 = vector.extract_strided_slice %240 {offsets = [0, 32], sizes = [2, 32], strides = [1, 1]} : vector<2x128xf32> to vector<2x32xf32>
    %245 = vector.extract_strided_slice %240 {offsets = [0, 96], sizes = [2, 32], strides = [1, 1]} : vector<2x128xf32> to vector<2x32xf32>
    %246 = arith.mulf %244, %230 : vector<2x32xf32>
    %247 = arith.mulf %243, %242 : vector<2x32xf32>
    %248 = arith.addf %246, %247 : vector<2x32xf32>
    %249 = math.tanh %248 : vector<2x32xf32>
    %250 = arith.mulf %245, %249 : vector<2x32xf32>
    %251 = vector.extract_strided_slice %138 {offsets = [12, 0], sizes = [2, 128], strides = [1, 1]} : vector<16x128xf32> to vector<2x128xf32>
    %cst_40 = arith.constant dense<0.000000e+00> : vector<2x128xf32>
    %252 = tpu.matmul %250, %140, %cst_40 {dimension_numbers = #tpu.dot_dimension_numbers<[1], [0], [0], [1], [0, 0, 1, 1], [], []>} : vector<2x32xf32>, vector<32x128xf32>, vector<2x128xf32> -> vector<2x128xf32>
    %253 = arith.addf %251, %252 : vector<2x128xf32>
    %254 = arith.negf %253 : vector<2x128xf32>
    %255 = math.exp %254 : vector<2x128xf32>
    %cst_41 = arith.constant 1.000000e+00 : f32
    %256 = vector.broadcast %cst_41 : f32 to vector<2x128xf32>
    %257 = arith.addf %256, %255 : vector<2x128xf32>
    %258 = arith.divf %256, %257 : vector<2x128xf32>
    %259 = vector.extract_strided_slice %253 {offsets = [0, 64], sizes = [2, 32], strides = [1, 1]} : vector<2x128xf32> to vector<2x32xf32>
    %260 = math.tanh %259 : vector<2x32xf32>
    %261 = vector.extract_strided_slice %258 {offsets = [0, 0], sizes = [2, 32], strides = [1, 1]} : vector<2x128xf32> to vector<2x32xf32>
    %262 = vector.extract_strided_slice %258 {offsets = [0, 32], sizes = [2, 32], strides = [1, 1]} : vector<2x128xf32> to vector<2x32xf32>
    %263 = vector.extract_strided_slice %258 {offsets = [0, 96], sizes = [2, 32], strides = [1, 1]} : vector<2x128xf32> to vector<2x32xf32>
    %264 = arith.mulf %262, %248 : vector<2x32xf32>
    %265 = arith.mulf %261, %260 : vector<2x32xf32>
    %266 = arith.addf %264, %265 : vector<2x32xf32>
    %267 = math.tanh %266 : vector<2x32xf32>
    %268 = arith.mulf %263, %267 : vector<2x32xf32>
    %269 = vector.extract_strided_slice %138 {offsets = [14, 0], sizes = [2, 128], strides = [1, 1]} : vector<16x128xf32> to vector<2x128xf32>
    %cst_42 = arith.constant dense<0.000000e+00> : vector<2x128xf32>
    %270 = tpu.matmul %268, %140, %cst_42 {dimension_numbers = #tpu.dot_dimension_numbers<[1], [0], [0], [1], [0, 0, 1, 1], [], []>} : vector<2x32xf32>, vector<32x128xf32>, vector<2x128xf32> -> vector<2x128xf32>
    %271 = arith.addf %269, %270 : vector<2x128xf32>
    %272 = arith.negf %271 : vector<2x128xf32>
    %273 = math.exp %272 : vector<2x128xf32>
    %cst_43 = arith.constant 1.000000e+00 : f32
    %274 = vector.broadcast %cst_43 : f32 to vector<2x128xf32>
    %275 = arith.addf %274, %273 : vector<2x128xf32>
    %276 = arith.divf %274, %275 : vector<2x128xf32>
    %277 = vector.extract_strided_slice %271 {offsets = [0, 64], sizes = [2, 32], strides = [1, 1]} : vector<2x128xf32> to vector<2x32xf32>
    %278 = math.tanh %277 : vector<2x32xf32>
    %279 = vector.extract_strided_slice %276 {offsets = [0, 0], sizes = [2, 32], strides = [1, 1]} : vector<2x128xf32> to vector<2x32xf32>
    %280 = vector.extract_strided_slice %276 {offsets = [0, 32], sizes = [2, 32], strides = [1, 1]} : vector<2x128xf32> to vector<2x32xf32>
    %281 = vector.extract_strided_slice %276 {offsets = [0, 96], sizes = [2, 32], strides = [1, 1]} : vector<2x128xf32> to vector<2x32xf32>
    %282 = arith.mulf %280, %266 : vector<2x32xf32>
    %283 = arith.mulf %279, %278 : vector<2x32xf32>
    %284 = arith.addf %282, %283 : vector<2x32xf32>
    %285 = math.tanh %284 : vector<2x32xf32>
    %286 = arith.mulf %281, %285 : vector<2x32xf32>
    %287 = tpu.concatenate %160, %178, %196, %214, %232, %250, %268, %286 in 0 : vector<2x32xf32>, vector<2x32xf32>, vector<2x32xf32>, vector<2x32xf32>, vector<2x32xf32>, vector<2x32xf32>, vector<2x32xf32>, vector<2x32xf32> -> vector<16x32xf32>
    %c0_44 = arith.constant 0 : index
    %c0_45 = arith.constant 0 : index
    %288 = vector.load %arg5[%c0_44, %c0_45] : memref<32x16xf32, #tpu.memory_space<vmem>>, vector<32x16xf32>
    %cst_46 = arith.constant dense<0.000000e+00> : vector<16x16xf32>
    %289 = tpu.matmul %287, %288, %cst_46 {dimension_numbers = #tpu.dot_dimension_numbers<[1], [0], [0], [1], [0, 0, 1, 1], [], []>} : vector<16x32xf32>, vector<32x16xf32>, vector<16x16xf32> -> vector<16x16xf32>
    %c0_47 = arith.constant 0 : index
    %c0_48 = arith.constant 0 : index
    %290 = vector.load %arg6[%c0_47, %c0_48] : memref<32x16xf32, #tpu.memory_space<vmem>>, vector<32x16xf32>
    %cst_49 = arith.constant dense<0.000000e+00> : vector<16x32xf32>
    %291 = tpu.matmul %289, %290, %cst_49 {dimension_numbers = #tpu.dot_dimension_numbers<[1], [1], [0], [0], [0, 0, 1, 0], [], []>} : vector<16x16xf32>, vector<32x16xf32>, vector<16x32xf32> -> vector<16x32xf32>
    %292 = arith.mulf %290, %290 : vector<32x16xf32>
    %cst_50 = arith.constant dense<0.000000e+00> : vector<32xf32>
    %293 = vector.multi_reduction <add>, %292, %cst_50 [1] : vector<32x16xf32> to vector<32xf32>
    %294 = vector.shape_cast %293 : vector<32xf32> to vector<32x1xf32>
    %295 = tpu.transpose %294, [1, 0] : vector<32x1xf32> -> vector<1x32xf32>
    %cst_51 = arith.constant 2.000000e+00 : f32
    %296 = vector.broadcast %cst_51 : f32 to vector<16x32xf32>
    %297 = arith.mulf %296, %291 : vector<16x32xf32>
    %298 = vector.broadcast %295 : vector<1x32xf32> to vector<16x32xf32>
    %299 = arith.subf %298, %297 : vector<16x32xf32>
    %300 = tpu.iota {dimensions = array<i32: 1>} : vector<16x32xi32>
    %cst_52 = arith.constant dense<0x7F800000> : vector<16xf32>
    %301 = vector.multi_reduction <minimumf>, %299, %cst_52 [1] : vector<16x32xf32> to vector<16xf32>
    %302 = vector.shape_cast %301 : vector<16xf32> to vector<16x1xf32>
    %303 = vector.broadcast %302 : vector<16x1xf32> to vector<16x32xf32>
    %304 = arith.cmpf ole, %299, %303 : vector<16x32xf32>
    %c32_i32 = arith.constant 32 : i32
    %305 = vector.broadcast %c32_i32 : i32 to vector<16x32xi32>
    %306 = arith.select %304, %300, %305 : vector<16x32xi1>, vector<16x32xi32>
    %cst_53 = arith.constant dense<2147483647> : vector<16xi32>
    %307 = vector.multi_reduction <minsi>, %306, %cst_53 [1] : vector<16x32xi32> to vector<16xi32>
    %308 = vector.shape_cast %307 : vector<16xi32> to vector<16x1xi32>
    %309 = vector.broadcast %308 : vector<16x1xi32> to vector<16x32xi32>
    %310 = arith.cmpi eq, %300, %309 : vector<16x32xi32>
    %311 = arith.extui %310 : vector<16x32xi1> to vector<16x32xi32>
    %312 = arith.sitofp %311 : vector<16x32xi32> to vector<16x32xf32>
    %cst_54 = arith.constant dense<0.000000e+00> : vector<16x16xf32>
    %313 = tpu.matmul %312, %290, %cst_54 {dimension_numbers = #tpu.dot_dimension_numbers<[1], [0], [0], [1], [0, 0, 1, 1], [], []>} : vector<16x32xf32>, vector<32x16xf32>, vector<16x16xf32> -> vector<16x16xf32>
    %314 = arith.subf %313, %289 : vector<16x16xf32>
    %315 = arith.mulf %314, %314 : vector<16x16xf32>
    %316 = vector.shape_cast %315 : vector<16x16xf32> to vector<1x16x16xf32>
    %cst_55 = arith.constant dense<0.000000e+00> : vector<1xf32>
    %317 = vector.multi_reduction <add>, %316, %cst_55 [1, 2] : vector<1x16x16xf32> to vector<1xf32>
    %318 = vector.shape_cast %317 : vector<1xf32> to vector<1x1x1xf32>
    %319 = vector.extract %318[0, 0, 0] : f32 from vector<1x1x1xf32>
    %cst_56 = arith.constant 3.906250e-03 : f32
    %320 = arith.mulf %319, %cst_56 : f32
    %c0_57 = arith.constant 0 : index
    %321 = memref.load %arg11[%c0_57] : memref<1xf32, #tpu.memory_space<smem>>
    memref.store %320, %arg11[%c0_57] : memref<1xf32, #tpu.memory_space<smem>>
    %c0_58 = arith.constant 0 : index
    %c0_59 = arith.constant 0 : index
    %322 = vector.load %arg7[%c0_58, %c0_59] : memref<16x128xf32, #tpu.memory_space<vmem>>, vector<16x128xf32>
    %cst_60 = arith.constant dense<0.000000e+00> : vector<16x128xf32>
    %323 = tpu.matmul %313, %322, %cst_60 {dimension_numbers = #tpu.dot_dimension_numbers<[1], [0], [0], [1], [0, 0, 1, 1], [], []>} : vector<16x16xf32>, vector<16x128xf32>, vector<16x128xf32> -> vector<16x128xf32>
    %324 = arith.addf %139, %323 : vector<16x128xf32>
    %c0_61 = arith.constant 0 : index
    %c0_62 = arith.constant 0 : index
    %325 = vector.load %arg8[%c0_61, %c0_62] : memref<32x128xf32, #tpu.memory_space<vmem>>, vector<32x128xf32>
    %cst_63 = arith.constant 0.000000e+00 : f32
    %326 = vector.broadcast %cst_63 : f32 to vector<2x32xf32>
    %cst_64 = arith.constant 0.000000e+00 : f32
    %327 = vector.broadcast %cst_64 : f32 to vector<2x32xf32>
    %328 = vector.extract_strided_slice %324 {offsets = [0, 0], sizes = [2, 128], strides = [1, 1]} : vector<16x128xf32> to vector<2x128xf32>
    %cst_65 = arith.constant dense<0.000000e+00> : vector<2x128xf32>
    %329 = tpu.matmul %326, %325, %cst_65 {dimension_numbers = #tpu.dot_dimension_numbers<[1], [0], [0], [1], [0, 0, 1, 1], [], []>} : vector<2x32xf32>, vector<32x128xf32>, vector<2x128xf32> -> vector<2x128xf32>
    %330 = arith.addf %328, %329 : vector<2x128xf32>
    %331 = arith.negf %330 : vector<2x128xf32>
    %332 = math.exp %331 : vector<2x128xf32>
    %cst_66 = arith.constant 1.000000e+00 : f32
    %333 = vector.broadcast %cst_66 : f32 to vector<2x128xf32>
    %334 = arith.addf %333, %332 : vector<2x128xf32>
    %335 = arith.divf %333, %334 : vector<2x128xf32>
    %336 = vector.extract_strided_slice %330 {offsets = [0, 64], sizes = [2, 32], strides = [1, 1]} : vector<2x128xf32> to vector<2x32xf32>
    %337 = math.tanh %336 : vector<2x32xf32>
    %338 = vector.extract_strided_slice %335 {offsets = [0, 0], sizes = [2, 32], strides = [1, 1]} : vector<2x128xf32> to vector<2x32xf32>
    %339 = vector.extract_strided_slice %335 {offsets = [0, 32], sizes = [2, 32], strides = [1, 1]} : vector<2x128xf32> to vector<2x32xf32>
    %340 = vector.extract_strided_slice %335 {offsets = [0, 96], sizes = [2, 32], strides = [1, 1]} : vector<2x128xf32> to vector<2x32xf32>
    %341 = arith.mulf %339, %327 : vector<2x32xf32>
    %342 = arith.mulf %338, %337 : vector<2x32xf32>
    %343 = arith.addf %341, %342 : vector<2x32xf32>
    %344 = math.tanh %343 : vector<2x32xf32>
    %345 = arith.mulf %340, %344 : vector<2x32xf32>
    %346 = vector.extract_strided_slice %324 {offsets = [2, 0], sizes = [2, 128], strides = [1, 1]} : vector<16x128xf32> to vector<2x128xf32>
    %cst_67 = arith.constant dense<0.000000e+00> : vector<2x128xf32>
    %347 = tpu.matmul %345, %325, %cst_67 {dimension_numbers = #tpu.dot_dimension_numbers<[1], [0], [0], [1], [0, 0, 1, 1], [], []>} : vector<2x32xf32>, vector<32x128xf32>, vector<2x128xf32> -> vector<2x128xf32>
    %348 = arith.addf %346, %347 : vector<2x128xf32>
    %349 = arith.negf %348 : vector<2x128xf32>
    %350 = math.exp %349 : vector<2x128xf32>
    %cst_68 = arith.constant 1.000000e+00 : f32
    %351 = vector.broadcast %cst_68 : f32 to vector<2x128xf32>
    %352 = arith.addf %351, %350 : vector<2x128xf32>
    %353 = arith.divf %351, %352 : vector<2x128xf32>
    %354 = vector.extract_strided_slice %348 {offsets = [0, 64], sizes = [2, 32], strides = [1, 1]} : vector<2x128xf32> to vector<2x32xf32>
    %355 = math.tanh %354 : vector<2x32xf32>
    %356 = vector.extract_strided_slice %353 {offsets = [0, 0], sizes = [2, 32], strides = [1, 1]} : vector<2x128xf32> to vector<2x32xf32>
    %357 = vector.extract_strided_slice %353 {offsets = [0, 32], sizes = [2, 32], strides = [1, 1]} : vector<2x128xf32> to vector<2x32xf32>
    %358 = vector.extract_strided_slice %353 {offsets = [0, 96], sizes = [2, 32], strides = [1, 1]} : vector<2x128xf32> to vector<2x32xf32>
    %359 = arith.mulf %357, %343 : vector<2x32xf32>
    %360 = arith.mulf %356, %355 : vector<2x32xf32>
    %361 = arith.addf %359, %360 : vector<2x32xf32>
    %362 = math.tanh %361 : vector<2x32xf32>
    %363 = arith.mulf %358, %362 : vector<2x32xf32>
    %364 = vector.extract_strided_slice %324 {offsets = [4, 0], sizes = [2, 128], strides = [1, 1]} : vector<16x128xf32> to vector<2x128xf32>
    %cst_69 = arith.constant dense<0.000000e+00> : vector<2x128xf32>
    %365 = tpu.matmul %363, %325, %cst_69 {dimension_numbers = #tpu.dot_dimension_numbers<[1], [0], [0], [1], [0, 0, 1, 1], [], []>} : vector<2x32xf32>, vector<32x128xf32>, vector<2x128xf32> -> vector<2x128xf32>
    %366 = arith.addf %364, %365 : vector<2x128xf32>
    %367 = arith.negf %366 : vector<2x128xf32>
    %368 = math.exp %367 : vector<2x128xf32>
    %cst_70 = arith.constant 1.000000e+00 : f32
    %369 = vector.broadcast %cst_70 : f32 to vector<2x128xf32>
    %370 = arith.addf %369, %368 : vector<2x128xf32>
    %371 = arith.divf %369, %370 : vector<2x128xf32>
    %372 = vector.extract_strided_slice %366 {offsets = [0, 64], sizes = [2, 32], strides = [1, 1]} : vector<2x128xf32> to vector<2x32xf32>
    %373 = math.tanh %372 : vector<2x32xf32>
    %374 = vector.extract_strided_slice %371 {offsets = [0, 0], sizes = [2, 32], strides = [1, 1]} : vector<2x128xf32> to vector<2x32xf32>
    %375 = vector.extract_strided_slice %371 {offsets = [0, 32], sizes = [2, 32], strides = [1, 1]} : vector<2x128xf32> to vector<2x32xf32>
    %376 = vector.extract_strided_slice %371 {offsets = [0, 96], sizes = [2, 32], strides = [1, 1]} : vector<2x128xf32> to vector<2x32xf32>
    %377 = arith.mulf %375, %361 : vector<2x32xf32>
    %378 = arith.mulf %374, %373 : vector<2x32xf32>
    %379 = arith.addf %377, %378 : vector<2x32xf32>
    %380 = math.tanh %379 : vector<2x32xf32>
    %381 = arith.mulf %376, %380 : vector<2x32xf32>
    %382 = vector.extract_strided_slice %324 {offsets = [6, 0], sizes = [2, 128], strides = [1, 1]} : vector<16x128xf32> to vector<2x128xf32>
    %cst_71 = arith.constant dense<0.000000e+00> : vector<2x128xf32>
    %383 = tpu.matmul %381, %325, %cst_71 {dimension_numbers = #tpu.dot_dimension_numbers<[1], [0], [0], [1], [0, 0, 1, 1], [], []>} : vector<2x32xf32>, vector<32x128xf32>, vector<2x128xf32> -> vector<2x128xf32>
    %384 = arith.addf %382, %383 : vector<2x128xf32>
    %385 = arith.negf %384 : vector<2x128xf32>
    %386 = math.exp %385 : vector<2x128xf32>
    %cst_72 = arith.constant 1.000000e+00 : f32
    %387 = vector.broadcast %cst_72 : f32 to vector<2x128xf32>
    %388 = arith.addf %387, %386 : vector<2x128xf32>
    %389 = arith.divf %387, %388 : vector<2x128xf32>
    %390 = vector.extract_strided_slice %384 {offsets = [0, 64], sizes = [2, 32], strides = [1, 1]} : vector<2x128xf32> to vector<2x32xf32>
    %391 = math.tanh %390 : vector<2x32xf32>
    %392 = vector.extract_strided_slice %389 {offsets = [0, 0], sizes = [2, 32], strides = [1, 1]} : vector<2x128xf32> to vector<2x32xf32>
    %393 = vector.extract_strided_slice %389 {offsets = [0, 32], sizes = [2, 32], strides = [1, 1]} : vector<2x128xf32> to vector<2x32xf32>
    %394 = vector.extract_strided_slice %389 {offsets = [0, 96], sizes = [2, 32], strides = [1, 1]} : vector<2x128xf32> to vector<2x32xf32>
    %395 = arith.mulf %393, %379 : vector<2x32xf32>
    %396 = arith.mulf %392, %391 : vector<2x32xf32>
    %397 = arith.addf %395, %396 : vector<2x32xf32>
    %398 = math.tanh %397 : vector<2x32xf32>
    %399 = arith.mulf %394, %398 : vector<2x32xf32>
    %400 = vector.extract_strided_slice %324 {offsets = [8, 0], sizes = [2, 128], strides = [1, 1]} : vector<16x128xf32> to vector<2x128xf32>
    %cst_73 = arith.constant dense<0.000000e+00> : vector<2x128xf32>
    %401 = tpu.matmul %399, %325, %cst_73 {dimension_numbers = #tpu.dot_dimension_numbers<[1], [0], [0], [1], [0, 0, 1, 1], [], []>} : vector<2x32xf32>, vector<32x128xf32>, vector<2x128xf32> -> vector<2x128xf32>
    %402 = arith.addf %400, %401 : vector<2x128xf32>
    %403 = arith.negf %402 : vector<2x128xf32>
    %404 = math.exp %403 : vector<2x128xf32>
    %cst_74 = arith.constant 1.000000e+00 : f32
    %405 = vector.broadcast %cst_74 : f32 to vector<2x128xf32>
    %406 = arith.addf %405, %404 : vector<2x128xf32>
    %407 = arith.divf %405, %406 : vector<2x128xf32>
    %408 = vector.extract_strided_slice %402 {offsets = [0, 64], sizes = [2, 32], strides = [1, 1]} : vector<2x128xf32> to vector<2x32xf32>
    %409 = math.tanh %408 : vector<2x32xf32>
    %410 = vector.extract_strided_slice %407 {offsets = [0, 0], sizes = [2, 32], strides = [1, 1]} : vector<2x128xf32> to vector<2x32xf32>
    %411 = vector.extract_strided_slice %407 {offsets = [0, 32], sizes = [2, 32], strides = [1, 1]} : vector<2x128xf32> to vector<2x32xf32>
    %412 = vector.extract_strided_slice %407 {offsets = [0, 96], sizes = [2, 32], strides = [1, 1]} : vector<2x128xf32> to vector<2x32xf32>
    %413 = arith.mulf %411, %397 : vector<2x32xf32>
    %414 = arith.mulf %410, %409 : vector<2x32xf32>
    %415 = arith.addf %413, %414 : vector<2x32xf32>
    %416 = math.tanh %415 : vector<2x32xf32>
    %417 = arith.mulf %412, %416 : vector<2x32xf32>
    %418 = vector.extract_strided_slice %324 {offsets = [10, 0], sizes = [2, 128], strides = [1, 1]} : vector<16x128xf32> to vector<2x128xf32>
    %cst_75 = arith.constant dense<0.000000e+00> : vector<2x128xf32>
    %419 = tpu.matmul %417, %325, %cst_75 {dimension_numbers = #tpu.dot_dimension_numbers<[1], [0], [0], [1], [0, 0, 1, 1], [], []>} : vector<2x32xf32>, vector<32x128xf32>, vector<2x128xf32> -> vector<2x128xf32>
    %420 = arith.addf %418, %419 : vector<2x128xf32>
    %421 = arith.negf %420 : vector<2x128xf32>
    %422 = math.exp %421 : vector<2x128xf32>
    %cst_76 = arith.constant 1.000000e+00 : f32
    %423 = vector.broadcast %cst_76 : f32 to vector<2x128xf32>
    %424 = arith.addf %423, %422 : vector<2x128xf32>
    %425 = arith.divf %423, %424 : vector<2x128xf32>
    %426 = vector.extract_strided_slice %420 {offsets = [0, 64], sizes = [2, 32], strides = [1, 1]} : vector<2x128xf32> to vector<2x32xf32>
    %427 = math.tanh %426 : vector<2x32xf32>
    %428 = vector.extract_strided_slice %425 {offsets = [0, 0], sizes = [2, 32], strides = [1, 1]} : vector<2x128xf32> to vector<2x32xf32>
    %429 = vector.extract_strided_slice %425 {offsets = [0, 32], sizes = [2, 32], strides = [1, 1]} : vector<2x128xf32> to vector<2x32xf32>
    %430 = vector.extract_strided_slice %425 {offsets = [0, 96], sizes = [2, 32], strides = [1, 1]} : vector<2x128xf32> to vector<2x32xf32>
    %431 = arith.mulf %429, %415 : vector<2x32xf32>
    %432 = arith.mulf %428, %427 : vector<2x32xf32>
    %433 = arith.addf %431, %432 : vector<2x32xf32>
    %434 = math.tanh %433 : vector<2x32xf32>
    %435 = arith.mulf %430, %434 : vector<2x32xf32>
    %436 = vector.extract_strided_slice %324 {offsets = [12, 0], sizes = [2, 128], strides = [1, 1]} : vector<16x128xf32> to vector<2x128xf32>
    %cst_77 = arith.constant dense<0.000000e+00> : vector<2x128xf32>
    %437 = tpu.matmul %435, %325, %cst_77 {dimension_numbers = #tpu.dot_dimension_numbers<[1], [0], [0], [1], [0, 0, 1, 1], [], []>} : vector<2x32xf32>, vector<32x128xf32>, vector<2x128xf32> -> vector<2x128xf32>
    %438 = arith.addf %436, %437 : vector<2x128xf32>
    %439 = arith.negf %438 : vector<2x128xf32>
    %440 = math.exp %439 : vector<2x128xf32>
    %cst_78 = arith.constant 1.000000e+00 : f32
    %441 = vector.broadcast %cst_78 : f32 to vector<2x128xf32>
    %442 = arith.addf %441, %440 : vector<2x128xf32>
    %443 = arith.divf %441, %442 : vector<2x128xf32>
    %444 = vector.extract_strided_slice %438 {offsets = [0, 64], sizes = [2, 32], strides = [1, 1]} : vector<2x128xf32> to vector<2x32xf32>
    %445 = math.tanh %444 : vector<2x32xf32>
    %446 = vector.extract_strided_slice %443 {offsets = [0, 0], sizes = [2, 32], strides = [1, 1]} : vector<2x128xf32> to vector<2x32xf32>
    %447 = vector.extract_strided_slice %443 {offsets = [0, 32], sizes = [2, 32], strides = [1, 1]} : vector<2x128xf32> to vector<2x32xf32>
    %448 = vector.extract_strided_slice %443 {offsets = [0, 96], sizes = [2, 32], strides = [1, 1]} : vector<2x128xf32> to vector<2x32xf32>
    %449 = arith.mulf %447, %433 : vector<2x32xf32>
    %450 = arith.mulf %446, %445 : vector<2x32xf32>
    %451 = arith.addf %449, %450 : vector<2x32xf32>
    %452 = math.tanh %451 : vector<2x32xf32>
    %453 = arith.mulf %448, %452 : vector<2x32xf32>
    %454 = vector.extract_strided_slice %324 {offsets = [14, 0], sizes = [2, 128], strides = [1, 1]} : vector<16x128xf32> to vector<2x128xf32>
    %cst_79 = arith.constant dense<0.000000e+00> : vector<2x128xf32>
    %455 = tpu.matmul %453, %325, %cst_79 {dimension_numbers = #tpu.dot_dimension_numbers<[1], [0], [0], [1], [0, 0, 1, 1], [], []>} : vector<2x32xf32>, vector<32x128xf32>, vector<2x128xf32> -> vector<2x128xf32>
    %456 = arith.addf %454, %455 : vector<2x128xf32>
    %457 = arith.negf %456 : vector<2x128xf32>
    %458 = math.exp %457 : vector<2x128xf32>
    %cst_80 = arith.constant 1.000000e+00 : f32
    %459 = vector.broadcast %cst_80 : f32 to vector<2x128xf32>
    %460 = arith.addf %459, %458 : vector<2x128xf32>
    %461 = arith.divf %459, %460 : vector<2x128xf32>
    %462 = vector.extract_strided_slice %456 {offsets = [0, 64], sizes = [2, 32], strides = [1, 1]} : vector<2x128xf32> to vector<2x32xf32>
    %463 = math.tanh %462 : vector<2x32xf32>
    %464 = vector.extract_strided_slice %461 {offsets = [0, 0], sizes = [2, 32], strides = [1, 1]} : vector<2x128xf32> to vector<2x32xf32>
    %465 = vector.extract_strided_slice %461 {offsets = [0, 32], sizes = [2, 32], strides = [1, 1]} : vector<2x128xf32> to vector<2x32xf32>
    %466 = vector.extract_strided_slice %461 {offsets = [0, 96], sizes = [2, 32], strides = [1, 1]} : vector<2x128xf32> to vector<2x32xf32>
    %467 = arith.mulf %465, %451 : vector<2x32xf32>
    %468 = arith.mulf %464, %463 : vector<2x32xf32>
    %469 = arith.addf %467, %468 : vector<2x32xf32>
    %470 = math.tanh %469 : vector<2x32xf32>
    %471 = arith.mulf %466, %470 : vector<2x32xf32>
    %472 = tpu.concatenate %345, %363, %381, %399, %417, %435, %453, %471 in 0 : vector<2x32xf32>, vector<2x32xf32>, vector<2x32xf32>, vector<2x32xf32>, vector<2x32xf32>, vector<2x32xf32>, vector<2x32xf32>, vector<2x32xf32> -> vector<16x32xf32>
    %c0_81 = arith.constant 0 : index
    %c0_82 = arith.constant 0 : index
    %473 = vector.load %arg9[%c0_81, %c0_82] : memref<32x16xf32, #tpu.memory_space<vmem>>, vector<32x16xf32>
    %c0_83 = arith.constant 0 : index
    %c0_84 = arith.constant 0 : index
    %474 = vector.load %arg1[%c0_83, %c0_84] : memref<128x16xf32, #tpu.memory_space<vmem>>, vector<128x16xf32>
    %cst_85 = arith.constant dense<0.000000e+00> : vector<32x128xf32>
    %475 = tpu.matmul %473, %474, %cst_85 {dimension_numbers = #tpu.dot_dimension_numbers<[1], [1], [0], [0], [0, 0, 1, 0], [], []>} : vector<32x16xf32>, vector<128x16xf32>, vector<32x128xf32> -> vector<32x128xf32>
    %cst_86 = arith.constant dense<0.000000e+00> : vector<16x128xf32>
    %476 = tpu.matmul %472, %475, %cst_86 {dimension_numbers = #tpu.dot_dimension_numbers<[1], [0], [0], [1], [0, 0, 1, 1], [], []>} : vector<16x32xf32>, vector<32x128xf32>, vector<16x128xf32> -> vector<16x128xf32>
    %c0_87 = arith.constant 0 : index
    %c0_88 = arith.constant 0 : index
    %477 = vector.load %arg10[%c0_87, %c0_88] : memref<16x128xf32, #tpu.memory_space<vmem>>, vector<16x128xf32>
    tpu.vector_store %arg10[%c0_87, %c0_88], %476 {strides = array<i32>} : memref<16x128xf32, #tpu.memory_space<vmem>>, vector<16x128xf32>,
    return
  }
}

</mosaic_0001>

<llo_original>
// kernel: vqvae_forward.1
$region0: #{vqvae_forward.1}
  #allocation0 [shape = 'u32[]', space=smem, size = 0x4, offset = 0x4, fixed_abs, tag = 'smem constant byte address 0x4 - core index']
  #allocation1 [shape = 'u32[144,128]{1,0:T(1,128)}', space=vmem, size = 0x12000, scoped, tag = 'internal scratch']
  %s0 = inlined_call_operand.vmem [shape: s32[16], index: 0, kind: input, shape index: {}]
  %s1 = inlined_call_operand.vmem [shape: f32[128,16], index: 1, kind: input, shape index: {}]
  %s2 = inlined_call_operand.vmem [shape: f32[16,256], index: 2, kind: input, shape index: {}]
  %s3 = inlined_call_operand.vmem [shape: f32[1,256], index: 3, kind: input, shape index: {}]
  %s4 = inlined_call_operand.vmem [shape: f32[32,128], index: 4, kind: input, shape index: {}]
  %s5 = inlined_call_operand.vmem [shape: f32[32,16], index: 5, kind: input, shape index: {}]
  %s6 = inlined_call_operand.vmem [shape: f32[32,16], index: 6, kind: input, shape index: {}]
  %s7 = inlined_call_operand.vmem [shape: f32[16,128], index: 7, kind: input, shape index: {}]
  %s8 = inlined_call_operand.vmem [shape: f32[32,128], index: 8, kind: input, shape index: {}]
  %s9 = inlined_call_operand.vmem [shape: f32[32,16], index: 9, kind: input, shape index: {}]
  %s10 = inlined_call_operand.hbm [shape: f32[16,128], index: 10, kind: output, shape index: {0}]
  %s11 = inlined_call_operand.hbm [shape: f32[1], index: 11, kind: output, shape index: {1}]
  %12 = xla_tuple %s10, %s11
  %s13 = sld [smem:[#allocation0]]
  $region62: #{vqvae_forward.1} parent=0
    _
  %s15 = ssub.s32 1, %s13
  %s16 = scalar_select 0, %s15, %s13
  $region1: #{vqvae_forward.1} parent=0
    #allocation2 [shape = 'u8[512]{0}', space=smem, size = 0x200, scoped, tag = 'input window, operand 0, single buffered']
    #allocation3 [shape = 's32[1]{0}', space=sflag, size = 0x4, scoped, tag = 'scoped memory for vqvae_forward.1']
    #allocation4 [shape = 's32[1]{0}', space=sflag, size = 0x4, scoped, tag = 'scoped memory for vqvae_forward.1']
    #allocation5 [shape = 's32[1]{0}', space=sflag, size = 0x4, scoped, tag = 'scoped memory for vqvae_forward.1']
    #allocation6 [shape = 'u8[8192]{0}', space=vmem, size = 0x2000, scoped, tag = 'output window, operand 0, single buffered']
    #allocation7 [shape = 'u8[512]{0}', space=smem, size = 0x200, scoped, tag = 'output window, operand 1, single buffered']
    %17 = vsyncpa [#allocation5], 0
    %18 = vsyncpa [#allocation3], 0
    %19 = vsyncpa [#allocation4], 0
    // Predicated region
    $region2: #{vqvae_forward.1} parent=1 // pred_check
      _
    $region3: #{vqvae_forward.1} parent=1 // pred_check_branch
      %21 = sbr.rel (0) target = $region5
    $region4: #{vqvae_forward.1} parent=1 // pred_region
      %s23 = ssub.s32 16, 16
      %24 = vsyncadd [#allocation5], %s23
      %s26 = sshll.u32 %s0, 4
      %s27 = int_to_ptr.vmem [resolvable:$true] %s26
      %29 = dma.vmem_to_smem %s27, 16, [#allocation2], [#allocation5]
    $region5: #{vqvae_forward.1} parent=1 // pred_fallthru
      _
    // Predicated region
    $region6: #{vqvae_forward.1} parent=1 // pred_check
      _
    $region7: #{vqvae_forward.1} parent=1 // pred_check_branch
      %31 = sbr.rel (0) target = $region9
    $region8: #{vqvae_forward.1} parent=1 // pred_region
      _
    $region9: #{vqvae_forward.1} parent=1 // pred_fallthru
      _
    // Predicated region
    $region10: #{vqvae_forward.1} parent=1 // pred_check
      _
    $region11: #{vqvae_forward.1} parent=1 // pred_check_branch
      %33 = sbr.rel (0) target = $region13
    $region12: #{vqvae_forward.1} parent=1 // pred_region
      _
    $region13: #{vqvae_forward.1} parent=1 // pred_fallthru
      _
    // Predicated region
    $region14: #{vqvae_forward.1} parent=1 // pred_check
      _
    $region15: #{vqvae_forward.1} parent=1 // pred_check_branch
      %35 = sbr.rel (0) target = $region17
    $region16: #{vqvae_forward.1} parent=1 // pred_region
      _
    $region17: #{vqvae_forward.1} parent=1 // pred_fallthru
      _
    // Predicated region
    $region18: #{vqvae_forward.1} parent=1 // pred_check
      _
    $region19: #{vqvae_forward.1} parent=1 // pred_check_branch
      %37 = sbr.rel (0) target = $region21
    $region20: #{vqvae_forward.1} parent=1 // pred_region
      _
    $region21: #{vqvae_forward.1} parent=1 // pred_fallthru
      _
    // Predicated region
    $region22: #{vqvae_forward.1} parent=1 // pred_check
      _
    $region23: #{vqvae_forward.1} parent=1 // pred_check_branch
      %39 = sbr.rel (0) target = $region25
    $region24: #{vqvae_forward.1} parent=1 // pred_region
      _
    $region25: #{vqvae_forward.1} parent=1 // pred_fallthru
      _
    // Predicated region
    $region26: #{vqvae_forward.1} parent=1 // pred_check
      _
    $region27: #{vqvae_forward.1} parent=1 // pred_check_branch
      %41 = sbr.rel (0) target = $region29
    $region28: #{vqvae_forward.1} parent=1 // pred_region
      _
    $region29: #{vqvae_forward.1} parent=1 // pred_fallthru
      _
    // Predicated region
    $region30: #{vqvae_forward.1} parent=1 // pred_check
      _
    $region31: #{vqvae_forward.1} parent=1 // pred_check_branch
      %43 = sbr.rel (0) target = $region33
    $region32: #{vqvae_forward.1} parent=1 // pred_region
      _
    $region33: #{vqvae_forward.1} parent=1 // pred_fallthru
      _
    // Predicated region
    $region34: #{vqvae_forward.1} parent=1 // pred_check
      _
    $region35: #{vqvae_forward.1} parent=1 // pred_check_branch
      %45 = sbr.rel (0) target = $region37
    $region36: #{vqvae_forward.1} parent=1 // pred_region
      _
    $region37: #{vqvae_forward.1} parent=1 // pred_fallthru
      _
    // Predicated region
    $region38: #{vqvae_forward.1} parent=1 // pred_check
      _
    $region39: #{vqvae_forward.1} parent=1 // pred_check_branch
      %47 = sbr.rel (0) target = $region41
    $region40: #{vqvae_forward.1} parent=1 // pred_region
      _
    $region41: #{vqvae_forward.1} parent=1 // pred_fallthru
      _
    // Predicated region
    $region42: #{vqvae_forward.1} parent=1 // pred_check
      _
    $region43: #{vqvae_forward.1} parent=1 // pred_check_branch
      %49 = sbr.rel (0) target = $region45
    $region44: #{vqvae_forward.1} parent=1 // pred_region
      %50 = dma.done [#allocation5], 16
    $region45: #{vqvae_forward.1} parent=1 // pred_fallthru
      _
    %51 = sfence
    %v52 = vlaneseq
    %v53 = vand.u32 %v52, 127
    %v54 = vlaneseq
    %v55 = vshrl.u32 %v54, 7
    %v56 = vadd.s32 %v55, 8
    %vm57 = vcmp.eq.s32.totalorder %v55, 0
    %vm58 = vcmp.eq.s32.totalorder %v56, 0
    %s59 = sld [smem:[#allocation2]]
    %v60 = vstv %s59
    %vm61 = vcmp.eq.s32.totalorder %v53, %v60
    %vm62 = vmand %vm57, %vm61
    %vm63 = vmand %vm58, %vm61
    %v64 = vsel %vm62, 1.0, 0.0
    %v65 = vsel %vm63, 1.0, 0.0
    %vm66 = vcmp.eq.s32.totalorder %v55, 1
    %vm67 = vcmp.eq.s32.totalorder %v56, 1
    %s68 = sld [smem:[#allocation2 + $0x1]]
    %v69 = vstv %s68
    %vm70 = vcmp.eq.s32.totalorder %v53, %v69
    %vm71 = vmand %vm66, %vm70
    %vm72 = vmand %vm67, %vm70
    %v73 = vsel %vm71, 1.0, %v64
    %v74 = vsel %vm72, 1.0, %v65
    %vm75 = vcmp.eq.s32.totalorder %v55, 2
    %vm76 = vcmp.eq.s32.totalorder %v56, 2
    %s77 = sld [smem:[#allocation2 + $0x2]]
    %v78 = vstv %s77
    %vm79 = vcmp.eq.s32.totalorder %v53, %v78
    %vm80 = vmand %vm75, %vm79
    %vm81 = vmand %vm76, %vm79
    %v82 = vsel %vm80, 1.0, %v73
    %v83 = vsel %vm81, 1.0, %v74
    %vm84 = vcmp.eq.s32.totalorder %v55, 3
    %vm85 = vcmp.eq.s32.totalorder %v56, 3
    %s86 = sld [smem:[#allocation2 + $0x3]]
    %v87 = vstv %s86
    %vm88 = vcmp.eq.s32.totalorder %v53, %v87
    %vm89 = vmand %vm84, %vm88
    %vm90 = vmand %vm85, %vm88
    %v91 = vsel %vm89, 1.0, %v82
    %v92 = vsel %vm90, 1.0, %v83
    %vm93 = vcmp.eq.s32.totalorder %v55, 4
    %vm94 = vcmp.eq.s32.totalorder %v56, 4
    %s95 = sld [smem:[#allocation2 + $0x4]]
    %v96 = vstv %s95
    %vm97 = vcmp.eq.s32.totalorder %v53, %v96
    %vm98 = vmand %vm93, %vm97
    %vm99 = vmand %vm94, %vm97
    %v100 = vsel %vm98, 1.0, %v91
    %v101 = vsel %vm99, 1.0, %v92
    %vm102 = vcmp.eq.s32.totalorder %v55, 5
    %vm103 = vcmp.eq.s32.totalorder %v56, 5
    %s104 = sld [smem:[#allocation2 + $0x5]]
    %v105 = vstv %s104
    %vm106 = vcmp.eq.s32.totalorder %v53, %v105
    %vm107 = vmand %vm102, %vm106
    %vm108 = vmand %vm103, %vm106
    %v109 = vsel %vm107, 1.0, %v100
    %v110 = vsel %vm108, 1.0, %v101
    %vm111 = vcmp.eq.s32.totalorder %v55, 6
    %vm112 = vcmp.eq.s32.totalorder %v56, 6
    %s113 = sld [smem:[#allocation2 + $0x6]]
    %v114 = vstv %s113
    %vm115 = vcmp.eq.s32.totalorder %v53, %v114
    %vm116 = vmand %vm111, %vm115
    %vm117 = vmand %vm112, %vm115
    %v118 = vsel %vm116, 1.0, %v109
    %v119 = vsel %vm117, 1.0, %v110
    %vm120 = vcmp.eq.s32.totalorder %v55, 7
    %vm121 = vcmp.eq.s32.totalorder %v56, 7
    %s122 = sld [smem:[#allocation2 + $0x7]]
    %v123 = vstv %s122
    %vm124 = vcmp.eq.s32.totalorder %v53, %v123
    %vm125 = vmand %vm120, %vm124
    %vm126 = vmand %vm121, %vm124
    %v127 = vsel %vm125, 1.0, %v118
    %v128 = vsel %vm126, 1.0, %v119
    %vm129 = vcmp.eq.s32.totalorder %v55, 8
    %vm130 = vcmp.eq.s32.totalorder %v56, 8
    %s131 = sld [smem:[#allocation2 + $0x8]]
    %v132 = vstv %s131
    %vm133 = vcmp.eq.s32.totalorder %v53, %v132
    %vm134 = vmand %vm129, %vm133
    %vm135 = vmand %vm130, %vm133
    %v136 = vsel %vm134, 1.0, %v127
    %v137 = vsel %vm135, 1.0, %v128
    %vm138 = vcmp.eq.s32.totalorder %v55, 9
    %vm139 = vcmp.eq.s32.totalorder %v56, 9
    %s140 = sld [smem:[#allocation2 + $0x9]]
    %v141 = vstv %s140
    %vm142 = vcmp.eq.s32.totalorder %v53, %v141
    %vm143 = vmand %vm138, %vm142
    %vm144 = vmand %vm139, %vm142
    %v145 = vsel %vm143, 1.0, %v136
    %v146 = vsel %vm144, 1.0, %v137
    %vm147 = vcmp.eq.s32.totalorder %v55, 10
    %vm148 = vcmp.eq.s32.totalorder %v56, 10
    %s149 = sld [smem:[#allocation2 + $0xa]]
    %v150 = vstv %s149
    %vm151 = vcmp.eq.s32.totalorder %v53, %v150
    %vm152 = vmand %vm147, %vm151
    %vm153 = vmand %vm148, %vm151
    %v154 = vsel %vm152, 1.0, %v145
    %v155 = vsel %vm153, 1.0, %v146
    %vm156 = vcmp.eq.s32.totalorder %v55, 11
    %vm157 = vcmp.eq.s32.totalorder %v56, 11
    %s158 = sld [smem:[#allocation2 + $0xb]]
    %v159 = vstv %s158
    %vm160 = vcmp.eq.s32.totalorder %v53, %v159
    %vm161 = vmand %vm156, %vm160
    %vm162 = vmand %vm157, %vm160
    %v163 = vsel %vm161, 1.0, %v154
    %v164 = vsel %vm162, 1.0, %v155
    %vm165 = vcmp.eq.s32.totalorder %v55, 12
    %vm166 = vcmp.eq.s32.totalorder %v56, 12
    %s167 = sld [smem:[#allocation2 + $0xc]]
    %v168 = vstv %s167
    %vm169 = vcmp.eq.s32.totalorder %v53, %v168
    %vm170 = vmand %vm165, %vm169
    %vm171 = vmand %vm166, %vm169
    %v172 = vsel %vm170, 1.0, %v163
    %v173 = vsel %vm171, 1.0, %v164
    %vm174 = vcmp.eq.s32.totalorder %v55, 13
    %vm175 = vcmp.eq.s32.totalorder %v56, 13
    %s176 = sld [smem:[#allocation2 + $0xd]]
    %v177 = vstv %s176
    %vm178 = vcmp.eq.s32.totalorder %v53, %v177
    %vm179 = vmand %vm174, %vm178
    %vm180 = vmand %vm175, %vm178
    %v181 = vsel %vm179, 1.0, %v172
    %v182 = vsel %vm180, 1.0, %v173
    %vm183 = vcmp.eq.s32.totalorder %v55, 14
    %vm184 = vcmp.eq.s32.totalorder %v56, 14
    %s185 = sld [smem:[#allocation2 + $0xe]]
    %v186 = vstv %s185
    %vm187 = vcmp.eq.s32.totalorder %v53, %v186
    %vm188 = vmand %vm183, %vm187
    %vm189 = vmand %vm184, %vm187
    %v190 = vsel %vm188, 1.0, %v181
    %v191 = vsel %vm189, 1.0, %v182
    %vm192 = vcmp.eq.s32.totalorder %v55, 15
    %vm193 = vcmp.eq.s32.totalorder %v56, 15
    %s194 = sld [smem:[#allocation2 + $0xf]]
    %v195 = vstv %s194
    %vm196 = vcmp.eq.s32.totalorder %v53, %v195
    %vm197 = vmand %vm192, %vm196
    %vm198 = vmand %vm193, %vm196
    %v199 = vsel %vm197, 1.0, %v190
    %v200 = vsel %vm198, 1.0, %v191
    %v201 = vld [vmem:[%s1] sm:$0xff]
    %v202 = vld [vmem:[%s1 + $0x8] sm:$0xff]
    %v203 = vld [vmem:[%s1 + $0x10] sm:$0xff]
    %v204 = vld [vmem:[%s1 + $0x18] sm:$0xff]
    %v205 = vld [vmem:[%s1 + $0x20] sm:$0xff]
    %v206 = vld [vmem:[%s1 + $0x28] sm:$0xff]
    %v207 = vld [vmem:[%s1 + $0x30] sm:$0xff]
    %v208 = vld [vmem:[%s1 + $0x38] sm:$0xff]
    %v209 = vld [vmem:[%s1 + $0x40] sm:$0xff]
    %v210 = vld [vmem:[%s1 + $0x48] sm:$0xff]
    %v211 = vld [vmem:[%s1 + $0x50] sm:$0xff]
    %v212 = vld [vmem:[%s1 + $0x58] sm:$0xff]
    %v213 = vld [vmem:[%s1 + $0x60] sm:$0xff]
    %v214 = vld [vmem:[%s1 + $0x68] sm:$0xff]
    %v215 = vld [vmem:[%s1 + $0x70] sm:$0xff]
    %v216 = vld [vmem:[%s1 + $0x78] sm:$0xff]
    %217 = vmatprep.subr.mxu0 0.0
    %218 = vmatpush1.msra.mxu0 %v201
    %219 = vmatprep.subr.mxu0 0.0
    %220 = vmatpush1.msra.mxu0 %v202
    %221 = vmatprep.subr.mxu0 0.0
    %222 = vmatpush1.msra.mxu0 %v203
    %223 = vmatprep.subr.mxu0 0.0
    %224 = vmatpush1.msra.mxu0 %v204
    %225 = vmatprep.subr.mxu0 0.0
    %226 = vmatpush1.msra.mxu0 %v205
    %227 = vmatprep.subr.mxu0 0.0
    %228 = vmatpush1.msra.mxu0 %v206
    %229 = vmatprep.subr.mxu0 0.0
    %230 = vmatpush1.msra.mxu0 %v207
    %231 = vmatprep.subr.mxu0 0.0
    %232 = vmatpush1.msra.mxu0 %v208
    %233 = vmatprep.subr.mxu0 0.0
    %234 = vmatpush1.msra.mxu0 %v209
    %235 = vmatprep.subr.mxu0 0.0
    %236 = vmatpush1.msra.mxu0 %v210
    %237 = vmatprep.subr.mxu0 0.0
    %238 = vmatpush1.msra.mxu0 %v211
    %239 = vmatprep.subr.mxu0 0.0
    %240 = vmatpush1.msra.mxu0 %v212
    %241 = vmatprep.subr.mxu0 0.0
    %242 = vmatpush1.msra.mxu0 %v213
    %243 = vmatprep.subr.mxu0 0.0
    %244 = vmatpush1.msra.mxu0 %v214
    %245 = vmatprep.subr.mxu0 0.0
    %246 = vmatpush1.msra.mxu0 %v215
    %247 = vmatprep.subr.mxu0 0.0
    %248 = vmatpush1.msra.mxu0 %v216
    %249 = vmatprep.subr.mxu0 0.0
    %250 = vmatpush1.msra.mxu0 0.0
    %251 = vmatprep.subr.mxu0 0.0
    %252 = vmatpush1.msra.mxu0 0.0
    %253 = vmatprep.subr.mxu0 0.0
    %254 = vmatpush1.msra.mxu0 0.0
    %255 = vmatprep.subr.mxu0 0.0
    %256 = vmatpush1.msra.mxu0 0.0
    %257 = vmatprep.subr.mxu0 0.0
    %258 = vmatpush1.msra.mxu0 0.0
    %259 = vmatprep.subr.mxu0 0.0
    %260 = vmatpush1.msra.mxu0 0.0
    %261 = vmatprep.subr.mxu0 0.0
    %262 = vmatpush1.msra.mxu0 0.0
    %263 = vmatprep.subr.mxu0 0.0
    %264 = vmatpush1.msra.mxu0 0.0
    %265 = vmatprep.subr.mxu0 0.0
    %266 = vmatpush1.msra.mxu0 0.0
    %267 = vmatprep.subr.mxu0 0.0
    %268 = vmatpush1.msra.mxu0 0.0
    %269 = vmatprep.subr.mxu0 0.0
    %270 = vmatpush1.msra.mxu0 0.0
    %271 = vmatprep.subr.mxu0 0.0
    %272 = vmatpush1.msra.mxu0 0.0
    %273 = vmatprep.subr.mxu0 0.0
    %274 = vmatpush1.msra.mxu0 0.0
    %275 = vmatprep.subr.mxu0 0.0
    %276 = vmatpush1.msra.mxu0 0.0
    %277 = vmatprep.subr.mxu0 0.0
    %278 = vmatpush1.msra.mxu0 0.0
    %279 = vmatprep.subr.mxu0 0.0
    %280 = vmatpush1.msra.mxu0 0.0
    %281 = vmatprep.mubr.f32.mxu0 0.0
    %282 = vmatmul.mubr.f32.gmra.mrb[0].mxu0 %v199
    %v283 = vpop.f32.mrb[0].mxu0
    %v284 = vadd.f32 0.0, %v283
    %v285 = vpop.f32.mrb[0].mxu0
    %286 = vmatprep.mubr.f32.mxu0 0.0
    %287 = vmatmul.mubr.f32.gmra.mrb[0].mxu0 %v200
    %v288 = vpop.f32.mrb[0].mxu0
    %v289 = vadd.f32 0.0, %v288
    %v290 = vpop.f32.mrb[0].mxu0
    %291 = vdwg.mxu0
    %v292 = vld [vmem:[%s2] sm:$0xff]
    %v293 = vld [vmem:[%s2 + $0x8] sm:$0xff]
    %v294 = vld [vmem:[%s2 + $0x10] sm:$0xff]
    %v295 = vld [vmem:[%s2 + $0x18] sm:$0xff]
    %v296 = vld [vmem:[%s3] sm:$0x3]
    %v298 = vlaneseq
    %v299 = vshrl.u32 %v298, 7
    %v300 = vsub.s32 0, %v299
    %v301 = vrot.slane %v296, %v300
    %v302 = vlaneseq
    %v303 = vshrl.u32 %v302, 7
    %v304 = vsub.s32 1, %v303
    %v305 = vrot.slane %v296, %v304
    %vm308 = vcmask 130048
    %v310 = vsel %vm308, %v284, 0
    %v313 = vsel %vm308, %v289, 0
    %315 = vmatprep.subr.mxu0 %v293
    %316 = vmatpush1.msra.mxu0 %v292
    %317 = vmatprep.subr.mxu0 %v295
    %318 = vmatpush1.msra.mxu0 %v294
    %319 = vmatprep.subr.mxu0 0.0
    %320 = vmatpush1.msra.mxu0 0.0
    %321 = vmatprep.subr.mxu0 0.0
    %322 = vmatpush1.msra.mxu0 0.0
    %323 = vmatprep.subr.mxu0 0.0
    %324 = vmatpush1.msra.mxu0 0.0
    %325 = vmatprep.subr.mxu0 0.0
    %326 = vmatpush1.msra.mxu0 0.0
    %327 = vmatprep.subr.mxu0 0.0
    %328 = vmatpush1.msra.mxu0 0.0
    %329 = vmatprep.subr.mxu0 0.0
    %330 = vmatpush1.msra.mxu0 0.0
    %331 = vmatprep.subr.mxu0 0.0
    %332 = vmatpush1.msra.mxu0 0.0
    %333 = vmatprep.subr.mxu0 0.0
    %334 = vmatpush1.msra.mxu0 0.0
    %335 = vmatprep.subr.mxu0 0.0
    %336 = vmatpush1.msra.mxu0 0.0
    %337 = vmatprep.subr.mxu0 0.0
    %338 = vmatpush1.msra.mxu0 0.0
    %339 = vmatprep.subr.mxu0 0.0
    %340 = vmatpush1.msra.mxu0 0.0
    %341 = vmatprep.subr.mxu0 0.0
    %342 = vmatpush1.msra.mxu0 0.0
    %343 = vmatprep.subr.mxu0 0.0
    %344 = vmatpush1.msra.mxu0 0.0
    %345 = vmatprep.subr.mxu0 0.0
    %346 = vmatpush1.msra.mxu0 0.0
    %347 = vmatprep.subr.mxu0 0.0
    %348 = vmatpush1.msra.mxu0 0.0
    %349 = vmatprep.subr.mxu0 0.0
    %350 = vmatpush1.msra.mxu0 0.0
    %351 = vmatprep.subr.mxu0 0.0
    %352 = vmatpush1.msra.mxu0 0.0
    %353 = vmatprep.subr.mxu0 0.0
    %354 = vmatpush1.msra.mxu0 0.0
    %355 = vmatprep.subr.mxu0 0.0
    %356 = vmatpush1.msra.mxu0 0.0
    %357 = vmatprep.subr.mxu0 0.0
    %358 = vmatpush1.msra.mxu0 0.0
    %359 = vmatprep.subr.mxu0 0.0
    %360 = vmatpush1.msra.mxu0 0.0
    %361 = vmatprep.subr.mxu0 0.0
    %362 = vmatpush1.msra.mxu0 0.0
    %363 = vmatprep.subr.mxu0 0.0
    %364 = vmatpush1.msra.mxu0 0.0
    %365 = vmatprep.subr.mxu0 0.0
    %366 = vmatpush1.msra.mxu0 0.0
    %367 = vmatprep.subr.mxu0 0.0
    %368 = vmatpush1.msra.mxu0 0.0
    %369 = vmatprep.subr.mxu0 0.0
    %370 = vmatpush1.msra.mxu0 0.0
    %371 = vmatprep.subr.mxu0 0.0
    %372 = vmatpush1.msra.mxu0 0.0
    %373 = vmatprep.subr.mxu0 0.0
    %374 = vmatpush1.msra.mxu0 0.0
    %375 = vmatprep.subr.mxu0 0.0
    %376 = vmatpush1.msra.mxu0 0.0
    %377 = vmatprep.subr.mxu0 0.0
    %378 = vmatpush1.msra.mxu0 0.0
    %379 = vmatprep.mubr.f32.mxu0 0.0
    %380 = vmatmul.mubr.f32.gmra.mrb[0].mxu0 %v310
    %v381 = vpop.f32.mrb[0].mxu0
    %v382 = vadd.f32 %v301, %v381
    %v383 = vpop.f32.mrb[0].mxu0
    %v384 = vadd.f32 %v305, %v383
    %385 = vmatprep.mubr.f32.mxu0 0.0
    %386 = vmatmul.mubr.f32.gmra.mrb[0].mxu0 %v313
    %v387 = vpop.f32.mrb[0].mxu0
    %v388 = vadd.f32 %v301, %v387
    %v389 = vpop.f32.mrb[0].mxu0
    %v390 = vadd.f32 %v305, %v389
    %391 = vdwg.mxu0
    %v392 = vld [vmem:[%s4] sm:$0xff]
    %v393 = vld [vmem:[%s4 + $0x8] sm:$0xff]
    %v394 = vld [vmem:[%s4 + $0x10] sm:$0xff]
    %v395 = vld [vmem:[%s4 + $0x18] sm:$0xff]
    %vm396 = vcmask 261120
    %v398 = vsel %vm396, 0.0, 0
    %400 = vmatprep.subr.mxu0 0.0
    %401 = vmatpush1.msra.mxu0 %v392
    %402 = vmatprep.subr.mxu0 0.0
    %403 = vmatpush1.msra.mxu0 %v393
    %404 = vmatprep.subr.mxu0 0.0
    %405 = vmatpush1.msra.mxu0 %v394
    %406 = vmatprep.subr.mxu0 0.0
    %407 = vmatpush1.msra.mxu0 %v395
    %408 = vmatprep.subr.mxu0 0.0
    %409 = vmatpush1.msra.mxu0 0.0
    %410 = vmatprep.subr.mxu0 0.0
    %411 = vmatpush1.msra.mxu0 0.0
    %412 = vmatprep.subr.mxu0 0.0
    %413 = vmatpush1.msra.mxu0 0.0
    %414 = vmatprep.subr.mxu0 0.0
    %415 = vmatpush1.msra.mxu0 0.0
    %416 = vmatprep.subr.mxu0 0.0
    %417 = vmatpush1.msra.mxu0 0.0
    %418 = vmatprep.subr.mxu0 0.0
    %419 = vmatpush1.msra.mxu0 0.0
    %420 = vmatprep.subr.mxu0 0.0
    %421 = vmatpush1.msra.mxu0 0.0
    %422 = vmatprep.subr.mxu0 0.0
    %423 = vmatpush1.msra.mxu0 0.0
    %424 = vmatprep.subr.mxu0 0.0
    %425 = vmatpush1.msra.mxu0 0.0
    %426 = vmatprep.subr.mxu0 0.0
    %427 = vmatpush1.msra.mxu0 0.0
    %428 = vmatprep.subr.mxu0 0.0
    %429 = vmatpush1.msra.mxu0 0.0
    %430 = vmatprep.subr.mxu0 0.0
    %431 = vmatpush1.msra.mxu0 0.0
    %432 = vmatprep.subr.mxu0 0.0
    %433 = vmatpush1.msra.mxu0 0.0
    %434 = vmatprep.subr.mxu0 0.0
    %435 = vmatpush1.msra.mxu0 0.0
    %436 = vmatprep.subr.mxu0 0.0
    %437 = vmatpush1.msra.mxu0 0.0
    %438 = vmatprep.subr.mxu0 0.0
    %439 = vmatpush1.msra.mxu0 0.0
    %440 = vmatprep.subr.mxu0 0.0
    %441 = vmatpush1.msra.mxu0 0.0
    %442 = vmatprep.subr.mxu0 0.0
    %443 = vmatpush1.msra.mxu0 0.0
    %444 = vmatprep.subr.mxu0 0.0
    %445 = vmatpush1.msra.mxu0 0.0
    %446 = vmatprep.subr.mxu0 0.0
    %447 = vmatpush1.msra.mxu0 0.0
    %448 = vmatprep.subr.mxu0 0.0
    %449 = vmatpush1.msra.mxu0 0.0
    %450 = vmatprep.subr.mxu0 0.0
    %451 = vmatpush1.msra.mxu0 0.0
    %452 = vmatprep.subr.mxu0 0.0
    %453 = vmatpush1.msra.mxu0 0.0
    %454 = vmatprep.subr.mxu0 0.0
    %455 = vmatpush1.msra.mxu0 0.0
    %456 = vmatprep.subr.mxu0 0.0
    %457 = vmatpush1.msra.mxu0 0.0
    %458 = vmatprep.subr.mxu0 0.0
    %459 = vmatpush1.msra.mxu0 0.0
    %460 = vmatprep.subr.mxu0 0.0
    %461 = vmatpush1.msra.mxu0 0.0
    %462 = vmatprep.subr.mxu0 0.0
    %463 = vmatpush1.msra.mxu0 0.0
    %464 = vmatprep.mubr.f32.mxu0 0.0
    %465 = vmatmul.mubr.f32.gmra.mrb[0].mxu0 %v398
    %v466 = vpop.f32.mrb[0].mxu0
    %v467 = vadd.f32 0.0, %v466
    %v468 = vpop.f32.mrb[0].mxu0
    %469 = vdwg.mxu0
    %v470 = vadd.f32 %v382, %v467
    %v471 = vxor.u32 %v470, 2147483648
    %v472 = vmul.f32 %v471, 1.442695
    %v473 = vpow.pop %v472
    %v474 = vadd.f32 %v473, 1.0
    %v475 = vrcp.pop %v474
    %v476 = vmul.f32 1.0, %v475
    %v477 = vtanh.pop %v470
    %v478 = vmul.f32 %v476, 0.0
    %480 = vrot.lane.b32.xlu0 %v477, 64
    %v481 = vpop.permute.xlu0 %480
    %v483 = vmul.f32 %v476, %v481
    %485 = vrot.lane.b32.xlu0 %v483, 32
    %v486 = vpop.permute.xlu0 %485
    %v488 = vadd.f32 %v478, %v486
    %v489 = vtanh.pop %v488
    %491 = vrot.lane.b32.xlu0 %v489, 64
    %v492 = vpop.permute.xlu0 %491
    %v494 = vmul.f32 %v476, %v492
    %496 = vrot.lane.b32.xlu0 %v494, 32
    %v497 = vpop.permute.xlu0 %496
    %v498 = vsel %vm396, %v497, 0
    %500 = vmatprep.subr.mxu0 0.0
    %501 = vmatpush1.msra.mxu0 %v392
    %502 = vmatprep.subr.mxu0 0.0
    %503 = vmatpush1.msra.mxu0 %v393
    %504 = vmatprep.subr.mxu0 0.0
    %505 = vmatpush1.msra.mxu0 %v394
    %506 = vmatprep.subr.mxu0 0.0
    %507 = vmatpush1.msra.mxu0 %v395
    %508 = vmatprep.subr.mxu0 0.0
    %509 = vmatpush1.msra.mxu0 0.0
    %510 = vmatprep.subr.mxu0 0.0
    %511 = vmatpush1.msra.mxu0 0.0
    %512 = vmatprep.subr.mxu0 0.0
    %513 = vmatpush1.msra.mxu0 0.0
    %514 = vmatprep.subr.mxu0 0.0
    %515 = vmatpush1.msra.mxu0 0.0
    %516 = vmatprep.subr.mxu0 0.0
    %517 = vmatpush1.msra.mxu0 0.0
    %518 = vmatprep.subr.mxu0 0.0
    %519 = vmatpush1.msra.mxu0 0.0
    %520 = vmatprep.subr.mxu0 0.0
    %521 = vmatpush1.msra.mxu0 0.0
    %522 = vmatprep.subr.mxu0 0.0
    %523 = vmatpush1.msra.mxu0 0.0
    %524 = vmatprep.subr.mxu0 0.0
    %525 = vmatpush1.msra.mxu0 0.0
    %526 = vmatprep.subr.mxu0 0.0
    %527 = vmatpush1.msra.mxu0 0.0
    %528 = vmatprep.subr.mxu0 0.0
    %529 = vmatpush1.msra.mxu0 0.0
    %530 = vmatprep.subr.mxu0 0.0
    %531 = vmatpush1.msra.mxu0 0.0
    %532 = vmatprep.subr.mxu0 0.0
    %533 = vmatpush1.msra.mxu0 0.0
    %534 = vmatprep.subr.mxu0 0.0
    %535 = vmatpush1.msra.mxu0 0.0
    %536 = vmatprep.subr.mxu0 0.0
    %537 = vmatpush1.msra.mxu0 0.0
    %538 = vmatprep.subr.mxu0 0.0
    %539 = vmatpush1.msra.mxu0 0.0
    %540 = vmatprep.subr.mxu0 0.0
    %541 = vmatpush1.msra.mxu0 0.0
    %542 = vmatprep.subr.mxu0 0.0
    %543 = vmatpush1.msra.mxu0 0.0
    %544 = vmatprep.subr.mxu0 0.0
    %545 = vmatpush1.msra.mxu0 0.0
    %546 = vmatprep.subr.mxu0 0.0
    %547 = vmatpush1.msra.mxu0 0.0
    %548 = vmatprep.subr.mxu0 0.0
    %549 = vmatpush1.msra.mxu0 0.0
    %550 = vmatprep.subr.mxu0 0.0
    %551 = vmatpush1.msra.mxu0 0.0
    %552 = vmatprep.subr.mxu0 0.0
    %553 = vmatpush1.msra.mxu0 0.0
    %554 = vmatprep.subr.mxu0 0.0
    %555 = vmatpush1.msra.mxu0 0.0
    %556 = vmatprep.subr.mxu0 0.0
    %557 = vmatpush1.msra.mxu0 0.0
    %558 = vmatprep.subr.mxu0 0.0
    %559 = vmatpush1.msra.mxu0 0.0
    %560 = vmatprep.subr.mxu0 0.0
    %561 = vmatpush1.msra.mxu0 0.0
    %562 = vmatprep.subr.mxu0 0.0
    %563 = vmatpush1.msra.mxu0 0.0
    %564 = vmatprep.mubr.f32.mxu0 0.0
    %565 = vmatmul.mubr.f32.gmra.mrb[0].mxu0 %v498
    %v566 = vpop.f32.mrb[0].mxu0
    %v567 = vadd.f32 0.0, %v566
    %v568 = vpop.f32.mrb[0].mxu0
    %569 = vdwg.mxu0
    %v571 = vrot.slane %v567, 6
    %v573 = vadd.f32 %v382, %v571
    %v574 = vxor.u32 %v573, 2147483648
    %v575 = vmul.f32 %v574, 1.442695
    %v576 = vpow.pop %v575
    %v577 = vadd.f32 %v576, 1.0
    %v578 = vrcp.pop %v577
    %v579 = vmul.f32 1.0, %v578
    %v580 = vtanh.pop %v573
    %v582 = vrot.slane %v488, 6
    %v584 = vmul.f32 %v579, %v582
    %586 = vrot.lane.b32.xlu0 %v580, 64
    %v587 = vpop.permute.xlu0 %586
    %v589 = vmul.f32 %v579, %v587
    %591 = vrot.lane.b32.xlu0 %v589, 32
    %v592 = vpop.permute.xlu0 %591
    %v594 = vadd.f32 %v584, %v592
    %v595 = vtanh.pop %v594
    %597 = vrot.lane.b32.xlu0 %v595, 64
    %v598 = vpop.permute.xlu0 %597
    %v600 = vmul.f32 %v579, %v598
    %v602 = vrot.slane %v600, 2
    %603 = vrot.lane.b32.xlu0 %v602, 32
    %v604 = vpop.permute.xlu0 %603
    %v605 = vsel %vm396, %v604, 0
    %607 = vmatprep.subr.mxu0 0.0
    %608 = vmatpush1.msra.mxu0 %v392
    %609 = vmatprep.subr.mxu0 0.0
    %610 = vmatpush1.msra.mxu0 %v393
    %611 = vmatprep.subr.mxu0 0.0
    %612 = vmatpush1.msra.mxu0 %v394
    %613 = vmatprep.subr.mxu0 0.0
    %614 = vmatpush1.msra.mxu0 %v395
    %615 = vmatprep.subr.mxu0 0.0
    %616 = vmatpush1.msra.mxu0 0.0
    %617 = vmatprep.subr.mxu0 0.0
    %618 = vmatpush1.msra.mxu0 0.0
    %619 = vmatprep.subr.mxu0 0.0
    %620 = vmatpush1.msra.mxu0 0.0
    %621 = vmatprep.subr.mxu0 0.0
    %622 = vmatpush1.msra.mxu0 0.0
    %623 = vmatprep.subr.mxu0 0.0
    %624 = vmatpush1.msra.mxu0 0.0
    %625 = vmatprep.subr.mxu0 0.0
    %626 = vmatpush1.msra.mxu0 0.0
    %627 = vmatprep.subr.mxu0 0.0
    %628 = vmatpush1.msra.mxu0 0.0
    %629 = vmatprep.subr.mxu0 0.0
    %630 = vmatpush1.msra.mxu0 0.0
    %631 = vmatprep.subr.mxu0 0.0
    %632 = vmatpush1.msra.mxu0 0.0
    %633 = vmatprep.subr.mxu0 0.0
    %634 = vmatpush1.msra.mxu0 0.0
    %635 = vmatprep.subr.mxu0 0.0
    %636 = vmatpush1.msra.mxu0 0.0
    %637 = vmatprep.subr.mxu0 0.0
    %638 = vmatpush1.msra.mxu0 0.0
    %639 = vmatprep.subr.mxu0 0.0
    %640 = vmatpush1.msra.mxu0 0.0
    %641 = vmatprep.subr.mxu0 0.0
    %642 = vmatpush1.msra.mxu0 0.0
    %643 = vmatprep.subr.mxu0 0.0
    %644 = vmatpush1.msra.mxu0 0.0
    %645 = vmatprep.subr.mxu0 0.0
    %646 = vmatpush1.msra.mxu0 0.0
    %647 = vmatprep.subr.mxu0 0.0
    %648 = vmatpush1.msra.mxu0 0.0
    %649 = vmatprep.subr.mxu0 0.0
    %650 = vmatpush1.msra.mxu0 0.0
    %651 = vmatprep.subr.mxu0 0.0
    %652 = vmatpush1.msra.mxu0 0.0
    %653 = vmatprep.subr.mxu0 0.0
    %654 = vmatpush1.msra.mxu0 0.0
    %655 = vmatprep.subr.mxu0 0.0
    %656 = vmatpush1.msra.mxu0 0.0
    %657 = vmatprep.subr.mxu0 0.0
    %658 = vmatpush1.msra.mxu0 0.0
    %659 = vmatprep.subr.mxu0 0.0
    %660 = vmatpush1.msra.mxu0 0.0
    %661 = vmatprep.subr.mxu0 0.0
    %662 = vmatpush1.msra.mxu0 0.0
    %663 = vmatprep.subr.mxu0 0.0
    %664 = vmatpush1.msra.mxu0 0.0
    %665 = vmatprep.subr.mxu0 0.0
    %666 = vmatpush1.msra.mxu0 0.0
    %667 = vmatprep.subr.mxu0 0.0
    %668 = vmatpush1.msra.mxu0 0.0
    %669 = vmatprep.subr.mxu0 0.0
    %670 = vmatpush1.msra.mxu0 0.0
    %671 = vmatprep.mubr.f32.mxu0 0.0
    %672 = vmatmul.mubr.f32.gmra.mrb[0].mxu0 %v605
    %v673 = vpop.f32.mrb[0].mxu0
    %v674 = vadd.f32 0.0, %v673
    %v675 = vpop.f32.mrb[0].mxu0
    %676 = vdwg.mxu0
    %v678 = vrot.slane %v674, 4
    %v680 = vadd.f32 %v382, %v678
    %v681 = vxor.u32 %v680, 2147483648
    %v682 = vmul.f32 %v681, 1.442695
    %v683 = vpow.pop %v682
    %v684 = vadd.f32 %v683, 1.0
    %v685 = vrcp.pop %v684
    %v686 = vmul.f32 1.0, %v685
    %v687 = vtanh.pop %v680
    %v689 = vrot.slane %v594, 6
    %v691 = vmul.f32 %v686, %v689
    %693 = vrot.lane.b32.xlu0 %v687, 64
    %v694 = vpop.permute.xlu0 %693
    %v696 = vmul.f32 %v686, %v694
    %698 = vrot.lane.b32.xlu0 %v696, 32
    %v699 = vpop.permute.xlu0 %698
    %v701 = vadd.f32 %v691, %v699
    %v702 = vtanh.pop %v701
    %704 = vrot.lane.b32.xlu0 %v702, 64
    %v705 = vpop.permute.xlu0 %704
    %v707 = vmul.f32 %v686, %v705
    %v709 = vrot.slane %v707, 4
    %710 = vrot.lane.b32.xlu0 %v709, 32
    %v711 = vpop.permute.xlu0 %710
    %v712 = vsel %vm396, %v711, 0
    %714 = vmatprep.subr.mxu0 0.0
    %715 = vmatpush1.msra.mxu0 %v392
    %716 = vmatprep.subr.mxu0 0.0
    %717 = vmatpush1.msra.mxu0 %v393
    %718 = vmatprep.subr.mxu0 0.0
    %719 = vmatpush1.msra.mxu0 %v394
    %720 = vmatprep.subr.mxu0 0.0
    %721 = vmatpush1.msra.mxu0 %v395
    %722 = vmatprep.subr.mxu0 0.0
    %723 = vmatpush1.msra.mxu0 0.0
    %724 = vmatprep.subr.mxu0 0.0
    %725 = vmatpush1.msra.mxu0 0.0
    %726 = vmatprep.subr.mxu0 0.0
    %727 = vmatpush1.msra.mxu0 0.0
    %728 = vmatprep.subr.mxu0 0.0
    %729 = vmatpush1.msra.mxu0 0.0
    %730 = vmatprep.subr.mxu0 0.0
    %731 = vmatpush1.msra.mxu0 0.0
    %732 = vmatprep.subr.mxu0 0.0
    %733 = vmatpush1.msra.mxu0 0.0
    %734 = vmatprep.subr.mxu0 0.0
    %735 = vmatpush1.msra.mxu0 0.0
    %736 = vmatprep.subr.mxu0 0.0
    %737 = vmatpush1.msra.mxu0 0.0
    %738 = vmatprep.subr.mxu0 0.0
    %739 = vmatpush1.msra.mxu0 0.0
    %740 = vmatprep.subr.mxu0 0.0
    %741 = vmatpush1.msra.mxu0 0.0
    %742 = vmatprep.subr.mxu0 0.0
    %743 = vmatpush1.msra.mxu0 0.0
    %744 = vmatprep.subr.mxu0 0.0
    %745 = vmatpush1.msra.mxu0 0.0
    %746 = vmatprep.subr.mxu0 0.0
    %747 = vmatpush1.msra.mxu0 0.0
    %748 = vmatprep.subr.mxu0 0.0
    %749 = vmatpush1.msra.mxu0 0.0
    %750 = vmatprep.subr.mxu0 0.0
    %751 = vmatpush1.msra.mxu0 0.0
    %752 = vmatprep.subr.mxu0 0.0
    %753 = vmatpush1.msra.mxu0 0.0
    %754 = vmatprep.subr.mxu0 0.0
    %755 = vmatpush1.msra.mxu0 0.0
    %756 = vmatprep.subr.mxu0 0.0
    %757 = vmatpush1.msra.mxu0 0.0
    %758 = vmatprep.subr.mxu0 0.0
    %759 = vmatpush1.msra.mxu0 0.0
    %760 = vmatprep.subr.mxu0 0.0
    %761 = vmatpush1.msra.mxu0 0.0
    %762 = vmatprep.subr.mxu0 0.0
    %763 = vmatpush1.msra.mxu0 0.0
    %764 = vmatprep.subr.mxu0 0.0
    %765 = vmatpush1.msra.mxu0 0.0
    %766 = vmatprep.subr.mxu0 0.0
    %767 = vmatpush1.msra.mxu0 0.0
    %768 = vmatprep.subr.mxu0 0.0
    %769 = vmatpush1.msra.mxu0 0.0
    %770 = vmatprep.subr.mxu0 0.0
    %771 = vmatpush1.msra.mxu0 0.0
    %772 = vmatprep.subr.mxu0 0.0
    %773 = vmatpush1.msra.mxu0 0.0
    %774 = vmatprep.subr.mxu0 0.0
    %775 = vmatpush1.msra.mxu0 0.0
    %776 = vmatprep.subr.mxu0 0.0
    %777 = vmatpush1.msra.mxu0 0.0
    %778 = vmatprep.mubr.f32.mxu0 0.0
    %779 = vmatmul.mubr.f32.gmra.mrb[0].mxu0 %v712
    %v780 = vpop.f32.mrb[0].mxu0
    %v781 = vadd.f32 0.0, %v780
    %v782 = vpop.f32.mrb[0].mxu0
    %783 = vdwg.mxu0
    %v785 = vrot.slane %v781, 2
    %v787 = vadd.f32 %v382, %v785
    %v788 = vxor.u32 %v787, 2147483648
    %v789 = vmul.f32 %v788, 1.442695
    %v790 = vpow.pop %v789
    %v791 = vadd.f32 %v790, 1.0
    %v792 = vrcp.pop %v791
    %v793 = vmul.f32 1.0, %v792
    %v794 = vtanh.pop %v787
    %v796 = vrot.slane %v701, 6
    %v798 = vmul.f32 %v793, %v796
    %800 = vrot.lane.b32.xlu0 %v794, 64
    %v801 = vpop.permute.xlu0 %800
    %v803 = vmul.f32 %v793, %v801
    %805 = vrot.lane.b32.xlu0 %v803, 32
    %v806 = vpop.permute.xlu0 %805
    %v808 = vadd.f32 %v798, %v806
    %v809 = vtanh.pop %v808
    %811 = vrot.lane.b32.xlu0 %v809, 64
    %v812 = vpop.permute.xlu0 %811
    %v814 = vmul.f32 %v793, %v812
    %v816 = vrot.slane %v814, 6
    %817 = vrot.lane.b32.xlu0 %v816, 32
    %v818 = vpop.permute.xlu0 %817
    %v819 = vsel %vm396, %v818, 0
    %821 = vmatprep.subr.mxu0 0.0
    %822 = vmatpush1.msra.mxu0 %v392
    %823 = vmatprep.subr.mxu0 0.0
    %824 = vmatpush1.msra.mxu0 %v393
    %825 = vmatprep.subr.mxu0 0.0
    %826 = vmatpush1.msra.mxu0 %v394
    %827 = vmatprep.subr.mxu0 0.0
    %828 = vmatpush1.msra.mxu0 %v395
    %829 = vmatprep.subr.mxu0 0.0
    %830 = vmatpush1.msra.mxu0 0.0
    %831 = vmatprep.subr.mxu0 0.0
    %832 = vmatpush1.msra.mxu0 0.0
    %833 = vmatprep.subr.mxu0 0.0
    %834 = vmatpush1.msra.mxu0 0.0
    %835 = vmatprep.subr.mxu0 0.0
    %836 = vmatpush1.msra.mxu0 0.0
    %837 = vmatprep.subr.mxu0 0.0
    %838 = vmatpush1.msra.mxu0 0.0
    %839 = vmatprep.subr.mxu0 0.0
    %840 = vmatpush1.msra.mxu0 0.0
    %841 = vmatprep.subr.mxu0 0.0
    %842 = vmatpush1.msra.mxu0 0.0
    %843 = vmatprep.subr.mxu0 0.0
    %844 = vmatpush1.msra.mxu0 0.0
    %845 = vmatprep.subr.mxu0 0.0
    %846 = vmatpush1.msra.mxu0 0.0
    %847 = vmatprep.subr.mxu0 0.0
    %848 = vmatpush1.msra.mxu0 0.0
    %849 = vmatprep.subr.mxu0 0.0
    %850 = vmatpush1.msra.mxu0 0.0
    %851 = vmatprep.subr.mxu0 0.0
    %852 = vmatpush1.msra.mxu0 0.0
    %853 = vmatprep.subr.mxu0 0.0
    %854 = vmatpush1.msra.mxu0 0.0
    %855 = vmatprep.subr.mxu0 0.0
    %856 = vmatpush1.msra.mxu0 0.0
    %857 = vmatprep.subr.mxu0 0.0
    %858 = vmatpush1.msra.mxu0 0.0
    %859 = vmatprep.subr.mxu0 0.0
    %860 = vmatpush1.msra.mxu0 0.0
    %861 = vmatprep.subr.mxu0 0.0
    %862 = vmatpush1.msra.mxu0 0.0
    %863 = vmatprep.subr.mxu0 0.0
    %864 = vmatpush1.msra.mxu0 0.0
    %865 = vmatprep.subr.mxu0 0.0
    %866 = vmatpush1.msra.mxu0 0.0
    %867 = vmatprep.subr.mxu0 0.0
    %868 = vmatpush1.msra.mxu0 0.0
    %869 = vmatprep.subr.mxu0 0.0
    %870 = vmatpush1.msra.mxu0 0.0
    %871 = vmatprep.subr.mxu0 0.0
    %872 = vmatpush1.msra.mxu0 0.0
    %873 = vmatprep.subr.mxu0 0.0
    %874 = vmatpush1.msra.mxu0 0.0
    %875 = vmatprep.subr.mxu0 0.0
    %876 = vmatpush1.msra.mxu0 0.0
    %877 = vmatprep.subr.mxu0 0.0
    %878 = vmatpush1.msra.mxu0 0.0
    %879 = vmatprep.subr.mxu0 0.0
    %880 = vmatpush1.msra.mxu0 0.0
    %881 = vmatprep.subr.mxu0 0.0
    %882 = vmatpush1.msra.mxu0 0.0
    %883 = vmatprep.subr.mxu0 0.0
    %884 = vmatpush1.msra.mxu0 0.0
    %885 = vmatprep.mubr.f32.mxu0 0.0
    %886 = vmatmul.mubr.f32.gmra.mrb[0].mxu0 %v819
    %v887 = vpop.f32.mrb[0].mxu0
    %v888 = vadd.f32 0.0, %v887
    %v889 = vpop.f32.mrb[0].mxu0
    %890 = vdwg.mxu0
    %v891 = vadd.f32 %v388, %v888
    %v892 = vxor.u32 %v891, 2147483648
    %v893 = vmul.f32 %v892, 1.442695
    %v894 = vpow.pop %v893
    %v895 = vadd.f32 %v894, 1.0
    %v896 = vrcp.pop %v895
    %v897 = vmul.f32 1.0, %v896
    %v898 = vtanh.pop %v891
    %v900 = vrot.slane %v808, 6
    %v902 = vmul.f32 %v897, %v900
    %904 = vrot.lane.b32.xlu0 %v898, 64
    %v905 = vpop.permute.xlu0 %904
    %v907 = vmul.f32 %v897, %v905
    %909 = vrot.lane.b32.xlu0 %v907, 32
    %v910 = vpop.permute.xlu0 %909
    %v912 = vadd.f32 %v902, %v910
    %v913 = vtanh.pop %v912
    %915 = vrot.lane.b32.xlu0 %v913, 64
    %v916 = vpop.permute.xlu0 %915
    %v918 = vmul.f32 %v897, %v916
    %920 = vrot.lane.b32.xlu0 %v918, 32
    %v921 = vpop.permute.xlu0 %920
    %v922 = vsel %vm396, %v921, 0
    %924 = vmatprep.subr.mxu0 0.0
    %925 = vmatpush1.msra.mxu0 %v392
    %926 = vmatprep.subr.mxu0 0.0
    %927 = vmatpush1.msra.mxu0 %v393
    %928 = vmatprep.subr.mxu0 0.0
    %929 = vmatpush1.msra.mxu0 %v394
    %930 = vmatprep.subr.mxu0 0.0
    %931 = vmatpush1.msra.mxu0 %v395
    %932 = vmatprep.subr.mxu0 0.0
    %933 = vmatpush1.msra.mxu0 0.0
    %934 = vmatprep.subr.mxu0 0.0
    %935 = vmatpush1.msra.mxu0 0.0
    %936 = vmatprep.subr.mxu0 0.0
    %937 = vmatpush1.msra.mxu0 0.0
    %938 = vmatprep.subr.mxu0 0.0
    %939 = vmatpush1.msra.mxu0 0.0
    %940 = vmatprep.subr.mxu0 0.0
    %941 = vmatpush1.msra.mxu0 0.0
    %942 = vmatprep.subr.mxu0 0.0
    %943 = vmatpush1.msra.mxu0 0.0
    %944 = vmatprep.subr.mxu0 0.0
    %945 = vmatpush1.msra.mxu0 0.0
    %946 = vmatprep.subr.mxu0 0.0
    %947 = vmatpush1.msra.mxu0 0.0
    %948 = vmatprep.subr.mxu0 0.0
    %949 = vmatpush1.msra.mxu0 0.0
    %950 = vmatprep.subr.mxu0 0.0
    %951 = vmatpush1.msra.mxu0 0.0
    %952 = vmatprep.subr.mxu0 0.0
    %953 = vmatpush1.msra.mxu0 0.0
    %954 = vmatprep.subr.mxu0 0.0
    %955 = vmatpush1.msra.mxu0 0.0
    %956 = vmatprep.subr.mxu0 0.0
    %957 = vmatpush1.msra.mxu0 0.0
    %958 = vmatprep.subr.mxu0 0.0
    %959 = vmatpush1.msra.mxu0 0.0
    %960 = vmatprep.subr.mxu0 0.0
    %961 = vmatpush1.msra.mxu0 0.0
    %962 = vmatprep.subr.mxu0 0.0
    %963 = vmatpush1.msra.mxu0 0.0
    %964 = vmatprep.subr.mxu0 0.0
    %965 = vmatpush1.msra.mxu0 0.0
    %966 = vmatprep.subr.mxu0 0.0
    %967 = vmatpush1.msra.mxu0 0.0
    %968 = vmatprep.subr.mxu0 0.0
    %969 = vmatpush1.msra.mxu0 0.0
    %970 = vmatprep.subr.mxu0 0.0
    %971 = vmatpush1.msra.mxu0 0.0
    %972 = vmatprep.subr.mxu0 0.0
    %973 = vmatpush1.msra.mxu0 0.0
    %974 = vmatprep.subr.mxu0 0.0
    %975 = vmatpush1.msra.mxu0 0.0
    %976 = vmatprep.subr.mxu0 0.0
    %977 = vmatpush1.msra.mxu0 0.0
    %978 = vmatprep.subr.mxu0 0.0
    %979 = vmatpush1.msra.mxu0 0.0
    %980 = vmatprep.subr.mxu0 0.0
    %981 = vmatpush1.msra.mxu0 0.0
    %982 = vmatprep.subr.mxu0 0.0
    %983 = vmatpush1.msra.mxu0 0.0
    %984 = vmatprep.subr.mxu0 0.0
    %985 = vmatpush1.msra.mxu0 0.0
    %986 = vmatprep.subr.mxu0 0.0
    %987 = vmatpush1.msra.mxu0 0.0
    %988 = vmatprep.mubr.f32.mxu0 0.0
    %989 = vmatmul.mubr.f32.gmra.mrb[0].mxu0 %v922
    %v990 = vpop.f32.mrb[0].mxu0
    %v991 = vadd.f32 0.0, %v990
    %v992 = vpop.f32.mrb[0].mxu0
    %993 = vdwg.mxu0
    %v995 = vrot.slane %v991, 6
    %v997 = vadd.f32 %v388, %v995
    %v998 = vxor.u32 %v997, 2147483648
    %v999 = vmul.f32 %v998, 1.442695
    %v1000 = vpow.pop %v999
    %v1001 = vadd.f32 %v1000, 1.0
    %v1002 = vrcp.pop %v1001
    %v1003 = vmul.f32 1.0, %v1002
    %v1004 = vtanh.pop %v997
    %v1006 = vrot.slane %v912, 6
    %v1008 = vmul.f32 %v1003, %v1006
    %1010 = vrot.lane.b32.xlu0 %v1004, 64
    %v1011 = vpop.permute.xlu0 %1010
    %v1013 = vmul.f32 %v1003, %v1011
    %1015 = vrot.lane.b32.xlu0 %v1013, 32
    %v1016 = vpop.permute.xlu0 %1015
    %v1018 = vadd.f32 %v1008, %v1016
    %v1019 = vtanh.pop %v1018
    %1021 = vrot.lane.b32.xlu0 %v1019, 64
    %v1022 = vpop.permute.xlu0 %1021
    %v1024 = vmul.f32 %v1003, %v1022
    %v1026 = vrot.slane %v1024, 2
    %1027 = vrot.lane.b32.xlu0 %v1026, 32
    %v1028 = vpop.permute.xlu0 %1027
    %v1029 = vsel %vm396, %v1028, 0
    %1031 = vmatprep.subr.mxu0 0.0
    %1032 = vmatpush1.msra.mxu0 %v392
    %1033 = vmatprep.subr.mxu0 0.0
    %1034 = vmatpush1.msra.mxu0 %v393
    %1035 = vmatprep.subr.mxu0 0.0
    %1036 = vmatpush1.msra.mxu0 %v394
    %1037 = vmatprep.subr.mxu0 0.0
    %1038 = vmatpush1.msra.mxu0 %v395
    %1039 = vmatprep.subr.mxu0 0.0
    %1040 = vmatpush1.msra.mxu0 0.0
    %1041 = vmatprep.subr.mxu0 0.0
    %1042 = vmatpush1.msra.mxu0 0.0
    %1043 = vmatprep.subr.mxu0 0.0
    %1044 = vmatpush1.msra.mxu0 0.0
    %1045 = vmatprep.subr.mxu0 0.0
    %1046 = vmatpush1.msra.mxu0 0.0
    %1047 = vmatprep.subr.mxu0 0.0
    %1048 = vmatpush1.msra.mxu0 0.0
    %1049 = vmatprep.subr.mxu0 0.0
    %1050 = vmatpush1.msra.mxu0 0.0
    %1051 = vmatprep.subr.mxu0 0.0
    %1052 = vmatpush1.msra.mxu0 0.0
    %1053 = vmatprep.subr.mxu0 0.0
    %1054 = vmatpush1.msra.mxu0 0.0
    %1055 = vmatprep.subr.mxu0 0.0
    %1056 = vmatpush1.msra.mxu0 0.0
    %1057 = vmatprep.subr.mxu0 0.0
    %1058 = vmatpush1.msra.mxu0 0.0
    %1059 = vmatprep.subr.mxu0 0.0
    %1060 = vmatpush1.msra.mxu0 0.0
    %1061 = vmatprep.subr.mxu0 0.0
    %1062 = vmatpush1.msra.mxu0 0.0
    %1063 = vmatprep.subr.mxu0 0.0
    %1064 = vmatpush1.msra.mxu0 0.0
    %1065 = vmatprep.subr.mxu0 0.0
    %1066 = vmatpush1.msra.mxu0 0.0
    %1067 = vmatprep.subr.mxu0 0.0
    %1068 = vmatpush1.msra.mxu0 0.0
    %1069 = vmatprep.subr.mxu0 0.0
    %1070 = vmatpush1.msra.mxu0 0.0
    %1071 = vmatprep.subr.mxu0 0.0
    %1072 = vmatpush1.msra.mxu0 0.0
    %1073 = vmatprep.subr.mxu0 0.0
    %1074 = vmatpush1.msra.mxu0 0.0
    %1075 = vmatprep.subr.mxu0 0.0
    %1076 = vmatpush1.msra.mxu0 0.0
    %1077 = vmatprep.subr.mxu0 0.0
    %1078 = vmatpush1.msra.mxu0 0.0
    %1079 = vmatprep.subr.mxu0 0.0
    %1080 = vmatpush1.msra.mxu0 0.0
    %1081 = vmatprep.subr.mxu0 0.0
    %1082 = vmatpush1.msra.mxu0 0.0
    %1083 = vmatprep.subr.mxu0 0.0
    %1084 = vmatpush1.msra.mxu0 0.0
    %1085 = vmatprep.subr.mxu0 0.0
    %1086 = vmatpush1.msra.mxu0 0.0
    %1087 = vmatprep.subr.mxu0 0.0
    %1088 = vmatpush1.msra.mxu0 0.0
    %1089 = vmatprep.subr.mxu0 0.0
    %1090 = vmatpush1.msra.mxu0 0.0
    %1091 = vmatprep.subr.mxu0 0.0
    %1092 = vmatpush1.msra.mxu0 0.0
    %1093 = vmatprep.subr.mxu0 0.0
    %1094 = vmatpush1.msra.mxu0 0.0
    %1095 = vmatprep.mubr.f32.mxu0 0.0
    %1096 = vmatmul.mubr.f32.gmra.mrb[0].mxu0 %v1029
    %v1097 = vpop.f32.mrb[0].mxu0
    %v1098 = vadd.f32 0.0, %v1097
    %v1099 = vpop.f32.mrb[0].mxu0
    %1100 = vdwg.mxu0
    %v1102 = vrot.slane %v1098, 4
    %v1104 = vadd.f32 %v388, %v1102
    %v1105 = vxor.u32 %v1104, 2147483648
    %v1106 = vmul.f32 %v1105, 1.442695
    %v1107 = vpow.pop %v1106
    %v1108 = vadd.f32 %v1107, 1.0
    %v1109 = vrcp.pop %v1108
    %v1110 = vmul.f32 1.0, %v1109
    %v1111 = vtanh.pop %v1104
    %v1113 = vrot.slane %v1018, 6
    %v1115 = vmul.f32 %v1110, %v1113
    %1117 = vrot.lane.b32.xlu0 %v1111, 64
    %v1118 = vpop.permute.xlu0 %1117
    %v1120 = vmul.f32 %v1110, %v1118
    %1122 = vrot.lane.b32.xlu0 %v1120, 32
    %v1123 = vpop.permute.xlu0 %1122
    %v1125 = vadd.f32 %v1115, %v1123
    %v1126 = vtanh.pop %v1125
    %1128 = vrot.lane.b32.xlu0 %v1126, 64
    %v1129 = vpop.permute.xlu0 %1128
    %v1131 = vmul.f32 %v1110, %v1129
    %v1133 = vrot.slane %v1131, 4
    %1134 = vrot.lane.b32.xlu0 %v1133, 32
    %v1135 = vpop.permute.xlu0 %1134
    %v1136 = vsel %vm396, %v1135, 0
    %1138 = vmatprep.subr.mxu0 0.0
    %1139 = vmatpush1.msra.mxu0 %v392
    %1140 = vmatprep.subr.mxu0 0.0
    %1141 = vmatpush1.msra.mxu0 %v393
    %1142 = vmatprep.subr.mxu0 0.0
    %1143 = vmatpush1.msra.mxu0 %v394
    %1144 = vmatprep.subr.mxu0 0.0
    %1145 = vmatpush1.msra.mxu0 %v395
    %1146 = vmatprep.subr.mxu0 0.0
    %1147 = vmatpush1.msra.mxu0 0.0
    %1148 = vmatprep.subr.mxu0 0.0
    %1149 = vmatpush1.msra.mxu0 0.0
    %1150 = vmatprep.subr.mxu0 0.0
    %1151 = vmatpush1.msra.mxu0 0.0
    %1152 = vmatprep.subr.mxu0 0.0
    %1153 = vmatpush1.msra.mxu0 0.0
    %1154 = vmatprep.subr.mxu0 0.0
    %1155 = vmatpush1.msra.mxu0 0.0
    %1156 = vmatprep.subr.mxu0 0.0
    %1157 = vmatpush1.msra.mxu0 0.0
    %1158 = vmatprep.subr.mxu0 0.0
    %1159 = vmatpush1.msra.mxu0 0.0
    %1160 = vmatprep.subr.mxu0 0.0
    %1161 = vmatpush1.msra.mxu0 0.0
    %1162 = vmatprep.subr.mxu0 0.0
    %1163 = vmatpush1.msra.mxu0 0.0
    %1164 = vmatprep.subr.mxu0 0.0
    %1165 = vmatpush1.msra.mxu0 0.0
    %1166 = vmatprep.subr.mxu0 0.0
    %1167 = vmatpush1.msra.mxu0 0.0
    %1168 = vmatprep.subr.mxu0 0.0
    %1169 = vmatpush1.msra.mxu0 0.0
    %1170 = vmatprep.subr.mxu0 0.0
    %1171 = vmatpush1.msra.mxu0 0.0
    %1172 = vmatprep.subr.mxu0 0.0
    %1173 = vmatpush1.msra.mxu0 0.0
    %1174 = vmatprep.subr.mxu0 0.0
    %1175 = vmatpush1.msra.mxu0 0.0
    %1176 = vmatprep.subr.mxu0 0.0
    %1177 = vmatpush1.msra.mxu0 0.0
    %1178 = vmatprep.subr.mxu0 0.0
    %1179 = vmatpush1.msra.mxu0 0.0
    %1180 = vmatprep.subr.mxu0 0.0
    %1181 = vmatpush1.msra.mxu0 0.0
    %1182 = vmatprep.subr.mxu0 0.0
    %1183 = vmatpush1.msra.mxu0 0.0
    %1184 = vmatprep.subr.mxu0 0.0
    %1185 = vmatpush1.msra.mxu0 0.0
    %1186 = vmatprep.subr.mxu0 0.0
    %1187 = vmatpush1.msra.mxu0 0.0
    %1188 = vmatprep.subr.mxu0 0.0
    %1189 = vmatpush1.msra.mxu0 0.0
    %1190 = vmatprep.subr.mxu0 0.0
    %1191 = vmatpush1.msra.mxu0 0.0
    %1192 = vmatprep.subr.mxu0 0.0
    %1193 = vmatpush1.msra.mxu0 0.0
    %1194 = vmatprep.subr.mxu0 0.0
    %1195 = vmatpush1.msra.mxu0 0.0
    %1196 = vmatprep.subr.mxu0 0.0
    %1197 = vmatpush1.msra.mxu0 0.0
    %1198 = vmatprep.subr.mxu0 0.0
    %1199 = vmatpush1.msra.mxu0 0.0
    %1200 = vmatprep.subr.mxu0 0.0
    %1201 = vmatpush1.msra.mxu0 0.0
    %1202 = vmatprep.mubr.f32.mxu0 0.0
    %1203 = vmatmul.mubr.f32.gmra.mrb[0].mxu0 %v1136
    %v1204 = vpop.f32.mrb[0].mxu0
    %v1205 = vadd.f32 0.0, %v1204
    %v1206 = vpop.f32.mrb[0].mxu0
    %1207 = vdwg.mxu0
    %v1209 = vrot.slane %v1205, 2
    %v1211 = vadd.f32 %v388, %v1209
    %v1212 = vxor.u32 %v1211, 2147483648
    %v1213 = vmul.f32 %v1212, 1.442695
    %v1214 = vpow.pop %v1213
    %v1215 = vadd.f32 %v1214, 1.0
    %v1216 = vrcp.pop %v1215
    %v1217 = vmul.f32 1.0, %v1216
    %v1218 = vtanh.pop %v1211
    %v1220 = vrot.slane %v1125, 6
    %v1222 = vmul.f32 %v1217, %v1220
    %1224 = vrot.lane.b32.xlu0 %v1218, 64
    %v1225 = vpop.permute.xlu0 %1224
    %v1227 = vmul.f32 %v1217, %v1225
    %1229 = vrot.lane.b32.xlu0 %v1227, 32
    %v1230 = vpop.permute.xlu0 %1229
    %v1232 = vadd.f32 %v1222, %v1230
    %v1233 = vtanh.pop %v1232
    %1235 = vrot.lane.b32.xlu0 %v1233, 64
    %v1236 = vpop.permute.xlu0 %1235
    %v1238 = vmul.f32 %v1217, %v1236
    %vm1239 = vcmask 1041408
    %v1240 = vsel %vm1239, %v494, %v600
    %vm1241 = vcmask 1043456
    %v1242 = vsel %vm1241, %v1240, %v707
    %vm1243 = vcmask 1045504
    %v1244 = vsel %vm1243, %v1242, %v814
    %v1245 = vsel %vm1239, %v918, %v1024
    %v1246 = vsel %vm1241, %v1245, %v1131
    %v1247 = vsel %vm1243, %v1246, %v1238
    %v1248 = vld [vmem:[%s5] sm:$0xff]
    %v1249 = vld [vmem:[%s5 + $0x8] sm:$0xff]
    %v1250 = vld [vmem:[%s5 + $0x10] sm:$0xff]
    %v1251 = vld [vmem:[%s5 + $0x18] sm:$0xff]
    %1254 = vrot.lane.b32.xlu0 %v1244, 32
    %v1255 = vpop.permute.xlu0 %1254
    %1256 = vrot.lane.b32.xlu0 %v1247, 32
    %v1257 = vpop.permute.xlu0 %1256
    %v1258 = vsel %vm396, %v1255, 0
    %v1260 = vsel %vm396, %v1257, 0
    %1262 = vmatprep.subr.mxu0 0.0
    %1263 = vmatpush1.msra.mxu0 %v1248
    %1264 = vmatprep.subr.mxu0 0.0
    %1265 = vmatpush1.msra.mxu0 %v1249
    %1266 = vmatprep.subr.mxu0 0.0
    %1267 = vmatpush1.msra.mxu0 %v1250
    %1268 = vmatprep.subr.mxu0 0.0
    %1269 = vmatpush1.msra.mxu0 %v1251
    %1270 = vmatprep.subr.mxu0 0.0
    %1271 = vmatpush1.msra.mxu0 0.0
    %1272 = vmatprep.subr.mxu0 0.0
    %1273 = vmatpush1.msra.mxu0 0.0
    %1274 = vmatprep.subr.mxu0 0.0
    %1275 = vmatpush1.msra.mxu0 0.0
    %1276 = vmatprep.subr.mxu0 0.0
    %1277 = vmatpush1.msra.mxu0 0.0
    %1278 = vmatprep.subr.mxu0 0.0
    %1279 = vmatpush1.msra.mxu0 0.0
    %1280 = vmatprep.subr.mxu0 0.0
    %1281 = vmatpush1.msra.mxu0 0.0
    %1282 = vmatprep.subr.mxu0 0.0
    %1283 = vmatpush1.msra.mxu0 0.0
    %1284 = vmatprep.subr.mxu0 0.0
    %1285 = vmatpush1.msra.mxu0 0.0
    %1286 = vmatprep.subr.mxu0 0.0
    %1287 = vmatpush1.msra.mxu0 0.0
    %1288 = vmatprep.subr.mxu0 0.0
    %1289 = vmatpush1.msra.mxu0 0.0
    %1290 = vmatprep.subr.mxu0 0.0
    %1291 = vmatpush1.msra.mxu0 0.0
    %1292 = vmatprep.subr.mxu0 0.0
    %1293 = vmatpush1.msra.mxu0 0.0
    %1294 = vmatprep.subr.mxu0 0.0
    %1295 = vmatpush1.msra.mxu0 0.0
    %1296 = vmatprep.subr.mxu0 0.0
    %1297 = vmatpush1.msra.mxu0 0.0
    %1298 = vmatprep.subr.mxu0 0.0
    %1299 = vmatpush1.msra.mxu0 0.0
    %1300 = vmatprep.subr.mxu0 0.0
    %1301 = vmatpush1.msra.mxu0 0.0
    %1302 = vmatprep.subr.mxu0 0.0
    %1303 = vmatpush1.msra.mxu0 0.0
    %1304 = vmatprep.subr.mxu0 0.0
    %1305 = vmatpush1.msra.mxu0 0.0
    %1306 = vmatprep.subr.mxu0 0.0
    %1307 = vmatpush1.msra.mxu0 0.0
    %1308 = vmatprep.subr.mxu0 0.0
    %1309 = vmatpush1.msra.mxu0 0.0
    %1310 = vmatprep.subr.mxu0 0.0
    %1311 = vmatpush1.msra.mxu0 0.0
    %1312 = vmatprep.subr.mxu0 0.0
    %1313 = vmatpush1.msra.mxu0 0.0
    %1314 = vmatprep.subr.mxu0 0.0
    %1315 = vmatpush1.msra.mxu0 0.0
    %1316 = vmatprep.subr.mxu0 0.0
    %1317 = vmatpush1.msra.mxu0 0.0
    %1318 = vmatprep.subr.mxu0 0.0
    %1319 = vmatpush1.msra.mxu0 0.0
    %1320 = vmatprep.subr.mxu0 0.0
    %1321 = vmatpush1.msra.mxu0 0.0
    %1322 = vmatprep.subr.mxu0 0.0
    %1323 = vmatpush1.msra.mxu0 0.0
    %1324 = vmatprep.subr.mxu0 0.0
    %1325 = vmatpush1.msra.mxu0 0.0
    %1326 = vmatprep.mubr.f32.mxu0 0.0
    %1327 = vmatmul.mubr.f32.gmra.mrb[0].mxu0 %v1258
    %v1328 = vpop.f32.mrb[0].mxu0
    %v1329 = vadd.f32 0.0, %v1328
    %v1330 = vpop.f32.mrb[0].mxu0
    %1331 = vmatprep.mubr.f32.mxu0 0.0
    %1332 = vmatmul.mubr.f32.gmra.mrb[0].mxu0 %v1260
    %v1333 = vpop.f32.mrb[0].mxu0
    %v1334 = vadd.f32 0.0, %v1333
    %v1335 = vpop.f32.mrb[0].mxu0
    %1336 = vdwg.mxu0
    %v1337 = vld [vmem:[%s6] sm:$0xff]
    %v1338 = vld [vmem:[%s6 + $0x8] sm:$0xff]
    %v1339 = vld [vmem:[%s6 + $0x10] sm:$0xff]
    %v1340 = vld [vmem:[%s6 + $0x18] sm:$0xff]
    %v1342 = vsel %vm308, %v1329, 0
    %v1345 = vsel %vm308, %v1334, 0
    %v1348 = vsel %vm308, %v1337, 0
    %v1351 = vsel %vm308, %v1338, 0
    %v1354 = vsel %vm308, %v1339, 0
    %v1357 = vsel %vm308, %v1340, 0
    %1359 = vmatprep.subr.mxu0 0.0
    %1360 = vmatpush1.xpose.msra.mxu0 %v1348
    %1361 = vmatprep.subr.mxu0 0.0
    %1362 = vmatpush1.xpose.msra.mxu0 %v1351
    %1363 = vmatprep.subr.mxu0 0.0
    %1364 = vmatpush1.xpose.msra.mxu0 %v1354
    %1365 = vmatprep.subr.mxu0 0.0
    %1366 = vmatpush1.xpose.msra.mxu0 %v1357
    %1367 = vmatprep.subr.mxu0 0.0
    %1368 = vmatpush1.xpose.msra.mxu0 0.0
    %1369 = vmatprep.subr.mxu0 0.0
    %1370 = vmatpush1.xpose.msra.mxu0 0.0
    %1371 = vmatprep.subr.mxu0 0.0
    %1372 = vmatpush1.xpose.msra.mxu0 0.0
    %1373 = vmatprep.subr.mxu0 0.0
    %1374 = vmatpush1.xpose.msra.mxu0 0.0
    %1375 = vmatprep.subr.mxu0 0.0
    %1376 = vmatpush1.xpose.msra.mxu0 0.0
    %1377 = vmatprep.subr.mxu0 0.0
    %1378 = vmatpush1.xpose.msra.mxu0 0.0
    %1379 = vmatprep.subr.mxu0 0.0
    %1380 = vmatpush1.xpose.msra.mxu0 0.0
    %1381 = vmatprep.subr.mxu0 0.0
    %1382 = vmatpush1.xpose.msra.mxu0 0.0
    %1383 = vmatprep.subr.mxu0 0.0
    %1384 = vmatpush1.xpose.msra.mxu0 0.0
    %1385 = vmatprep.subr.mxu0 0.0
    %1386 = vmatpush1.xpose.msra.mxu0 0.0
    %1387 = vmatprep.subr.mxu0 0.0
    %1388 = vmatpush1.xpose.msra.mxu0 0.0
    %1389 = vmatprep.subr.mxu0 0.0
    %1390 = vmatpush1.xpose.msra.mxu0 0.0
    %1391 = vmatprep.subr.mxu0 0.0
    %1392 = vmatpush1.xpose.msra.mxu0 0.0
    %1393 = vmatprep.subr.mxu0 0.0
    %1394 = vmatpush1.xpose.msra.mxu0 0.0
    %1395 = vmatprep.subr.mxu0 0.0
    %1396 = vmatpush1.xpose.msra.mxu0 0.0
    %1397 = vmatprep.subr.mxu0 0.0
    %1398 = vmatpush1.xpose.msra.mxu0 0.0
    %1399 = vmatprep.subr.mxu0 0.0
    %1400 = vmatpush1.xpose.msra.mxu0 0.0
    %1401 = vmatprep.subr.mxu0 0.0
    %1402 = vmatpush1.xpose.msra.mxu0 0.0
    %1403 = vmatprep.subr.mxu0 0.0
    %1404 = vmatpush1.xpose.msra.mxu0 0.0
    %1405 = vmatprep.subr.mxu0 0.0
    %1406 = vmatpush1.xpose.msra.mxu0 0.0
    %1407 = vmatprep.subr.mxu0 0.0
    %1408 = vmatpush1.xpose.msra.mxu0 0.0
    %1409 = vmatprep.subr.mxu0 0.0
    %1410 = vmatpush1.xpose.msra.mxu0 0.0
    %1411 = vmatprep.subr.mxu0 0.0
    %1412 = vmatpush1.xpose.msra.mxu0 0.0
    %1413 = vmatprep.subr.mxu0 0.0
    %1414 = vmatpush1.xpose.msra.mxu0 0.0
    %1415 = vmatprep.subr.mxu0 0.0
    %1416 = vmatpush1.xpose.msra.mxu0 0.0
    %1417 = vmatprep.subr.mxu0 0.0
    %1418 = vmatpush1.xpose.msra.mxu0 0.0
    %1419 = vmatprep.subr.mxu0 0.0
    %1420 = vmatpush1.xpose.msra.mxu0 0.0
    %1421 = vmatprep.subr.mxu0 0.0
    %1422 = vmatpush1.xpose.msra.mxu0 0.0
    %1423 = vmatprep.mubr.f32.mxu0 0.0
    %1424 = vmatmul.mubr.f32.gmra.mrb[0].mxu0 %v1342
    %v1425 = vpop.f32.mrb[0].mxu0
    %v1426 = vadd.f32 0.0, %v1425
    %v1427 = vpop.f32.mrb[0].mxu0
    %1428 = vmatprep.mubr.f32.mxu0 0.0
    %1429 = vmatmul.mubr.f32.gmra.mrb[0].mxu0 %v1345
    %v1430 = vpop.f32.mrb[0].mxu0
    %v1431 = vadd.f32 0.0, %v1430
    %v1432 = vpop.f32.mrb[0].mxu0
    %1433 = vdwg.mxu0
    %v1434 = vmul.f32 %v1337, %v1337
    %v1435 = vmul.f32 %v1338, %v1338
    %v1436 = vmul.f32 %v1339, %v1339
    %v1437 = vmul.f32 %v1340, %v1340
    %v1438 = vsel %vm308, %v1434, 0.0
    %1439 = vadd.xlane.f32.xlu0 %v1438
    %v1440 = vpop.xlane.xlu0 %1439
    %v1441 = vsel %vm308, %v1435, 0.0
    %1442 = vadd.xlane.f32.xlu0 %v1441
    %v1443 = vpop.xlane.xlu0 %1442
    %v1444 = vsel %vm308, %v1436, 0.0
    %1445 = vadd.xlane.f32.xlu0 %v1444
    %v1446 = vpop.xlane.xlu0 %1445
    %v1447 = vsel %vm308, %v1437, 0.0
    %1448 = vadd.xlane.f32.xlu0 %v1447
    %v1449 = vpop.xlane.xlu0 %1448
    %1450 = vxpose.xlu0.b32.start [1/16] %v1440, 128
    %1451 = vxpose.xlu0.b32.cont [2/16] %v1443, 128
    %1452 = vxpose.xlu0.b32.cont [3/16] %v1446, 128
    %1453 = vxpose.xlu0.b32.cont [4/16] %v1449, 128
    %1454 = vxpose.xlu0.b32.cont [5/16] 0.0, 128
    %1455 = vxpose.xlu0.b32.cont [6/16] 0.0, 128
    %1456 = vxpose.xlu0.b32.cont [7/16] 0.0, 128
    %1457 = vxpose.xlu0.b32.cont [8/16] 0.0, 128
    %1458 = vxpose.xlu0.b32.cont [9/16] 0.0, 128
    %1459 = vxpose.xlu0.b32.cont [10/16] 0.0, 128
    %1460 = vxpose.xlu0.b32.cont [11/16] 0.0, 128
    %1461 = vxpose.xlu0.b32.cont [12/16] 0.0, 128
    %1462 = vxpose.xlu0.b32.cont [13/16] 0.0, 128
    %1463 = vxpose.xlu0.b32.cont [14/16] 0.0, 128
    %1464 = vxpose.xlu0.b32.cont [15/16] 0.0, 128
    %1465 = vxpose.xlu0.b32.end [16/16] 0.0, 128
    %v1466 = vpop.trf.xlu0
    %v1467 = vpop.trf.xlu0
    %v1468 = vpop.trf.xlu0
    %v1469 = vpop.trf.xlu0
    %v1470 = vpop.trf.xlu0
    %v1471 = vpop.trf.xlu0
    %v1472 = vpop.trf.xlu0
    %v1473 = vpop.trf.xlu0
    %v1474 = vpop.trf.xlu0
    %v1475 = vpop.trf.xlu0
    %v1476 = vpop.trf.xlu0
    %v1477 = vpop.trf.xlu0
    %v1478 = vpop.trf.xlu0
    %v1479 = vpop.trf.xlu0
    %v1480 = vpop.trf.xlu0
    %v1481 = vpop.trf.xlu0
    %v1482 = vmul.f32 %v1426, 2.0
    %v1483 = vmul.f32 %v1431, 2.0
    %v1484 = vlaneseq
    %v1485 = vshrl.u32 %v1484, 7
    %v1486 = vsub.s32 0, %v1485
    %v1487 = vrot.slane %v1466, %v1486
    %v1488 = vsub.f32 %v1487, %v1482
    %v1489 = vsub.f32 %v1487, %v1483
    %v1490 = vsel %vm396, %v1488, inf
    %1491 = vmin.xlane.f32.xlu0 %v1490
    %v1492 = vpop.xlane.xlu0 %1491
    %v1493 = vsel %vm396, %v1489, inf
    %1494 = vmin.xlane.f32.xlu0 %v1493
    %v1495 = vpop.xlane.xlu0 %1494
    %vm1496 = vcmp.le.f32.partialorder %v1488, %v1492
    %vm1497 = vcmp.le.f32.partialorder %v1489, %v1495
    %v1498 = vsel %vm1496, %v53, 32
    %v1499 = vsel %vm1497, %v53, 32
    %v1500 = vsel %vm396, %v1498, 2147483647
    %v1501 = vand.u32 %v1500, 65535
    %v1502 = vshra.s32 %v1500, 16
    %v1503 = vcvt.s32.f32 %v1501
    %v1504 = vcvt.s32.f32 %v1502
    %1505 = vmin.xlane.f32.xlu0 %v1504
    %v1506 = vpop.xlane.xlu0 %1505
    %vm1507 = vcmp.eq.f32.partialorder %v1504, %v1506
    %v1508 = vsel %vm1507, %v1503, inf
    %1509 = vmin.xlane.f32.xlu0 %v1508
    %v1510 = vpop.xlane.xlu0 %1509
    %v1511 = vcvt.f32.s32 %v1510
    %v1512 = vcvt.f32.s32 %v1506
    %v1513 = vshll.u32 %v1512, 16
    %v1514 = vadd.s32 %v1513, %v1511
    %v1515 = vsel %vm396, %v1499, 2147483647
    %v1516 = vand.u32 %v1515, 65535
    %v1517 = vshra.s32 %v1515, 16
    %v1518 = vcvt.s32.f32 %v1516
    %v1519 = vcvt.s32.f32 %v1517
    %1520 = vmin.xlane.f32.xlu0 %v1519
    %v1521 = vpop.xlane.xlu0 %1520
    %vm1522 = vcmp.eq.f32.partialorder %v1519, %v1521
    %v1523 = vsel %vm1522, %v1518, inf
    %1524 = vmin.xlane.f32.xlu0 %v1523
    %v1525 = vpop.xlane.xlu0 %1524
    %v1526 = vcvt.f32.s32 %v1525
    %v1527 = vcvt.f32.s32 %v1521
    %v1528 = vshll.u32 %v1527, 16
    %v1529 = vadd.s32 %v1528, %v1526
    %vm1530 = vcmp.eq.s32.totalorder %v53, %v1514
    %vm1531 = vcmp.eq.s32.totalorder %v53, %v1529
    %v1532 = vsel %vm1530, 1, 0
    %v1533 = vsel %vm1531, 1, 0
    %v1534 = vcvt.s32.f32 %v1532
    %v1535 = vcvt.s32.f32 %v1533
    %v1537 = vsel %vm396, %v1534, 0
    %v1540 = vsel %vm396, %v1535, 0
    %1542 = vmatprep.subr.mxu0 0.0
    %1543 = vmatpush1.msra.mxu0 %v1337
    %1544 = vmatprep.subr.mxu0 0.0
    %1545 = vmatpush1.msra.mxu0 %v1338
    %1546 = vmatprep.subr.mxu0 0.0
    %1547 = vmatpush1.msra.mxu0 %v1339
    %1548 = vmatprep.subr.mxu0 0.0
    %1549 = vmatpush1.msra.mxu0 %v1340
    %1550 = vmatprep.subr.mxu0 0.0
    %1551 = vmatpush1.msra.mxu0 0.0
    %1552 = vmatprep.subr.mxu0 0.0
    %1553 = vmatpush1.msra.mxu0 0.0
    %1554 = vmatprep.subr.mxu0 0.0
    %1555 = vmatpush1.msra.mxu0 0.0
    %1556 = vmatprep.subr.mxu0 0.0
    %1557 = vmatpush1.msra.mxu0 0.0
    %1558 = vmatprep.subr.mxu0 0.0
    %1559 = vmatpush1.msra.mxu0 0.0
    %1560 = vmatprep.subr.mxu0 0.0
    %1561 = vmatpush1.msra.mxu0 0.0
    %1562 = vmatprep.subr.mxu0 0.0
    %1563 = vmatpush1.msra.mxu0 0.0
    %1564 = vmatprep.subr.mxu0 0.0
    %1565 = vmatpush1.msra.mxu0 0.0
    %1566 = vmatprep.subr.mxu0 0.0
    %1567 = vmatpush1.msra.mxu0 0.0
    %1568 = vmatprep.subr.mxu0 0.0
    %1569 = vmatpush1.msra.mxu0 0.0
    %1570 = vmatprep.subr.mxu0 0.0
    %1571 = vmatpush1.msra.mxu0 0.0
    %1572 = vmatprep.subr.mxu0 0.0
    %1573 = vmatpush1.msra.mxu0 0.0
    %1574 = vmatprep.subr.mxu0 0.0
    %1575 = vmatpush1.msra.mxu0 0.0
    %1576 = vmatprep.subr.mxu0 0.0
    %1577 = vmatpush1.msra.mxu0 0.0
    %1578 = vmatprep.subr.mxu0 0.0
    %1579 = vmatpush1.msra.mxu0 0.0
    %1580 = vmatprep.subr.mxu0 0.0
    %1581 = vmatpush1.msra.mxu0 0.0
    %1582 = vmatprep.subr.mxu0 0.0
    %1583 = vmatpush1.msra.mxu0 0.0
    %1584 = vmatprep.subr.mxu0 0.0
    %1585 = vmatpush1.msra.mxu0 0.0
    %1586 = vmatprep.subr.mxu0 0.0
    %1587 = vmatpush1.msra.mxu0 0.0
    %1588 = vmatprep.subr.mxu0 0.0
    %1589 = vmatpush1.msra.mxu0 0.0
    %1590 = vmatprep.subr.mxu0 0.0
    %1591 = vmatpush1.msra.mxu0 0.0
    %1592 = vmatprep.subr.mxu0 0.0
    %1593 = vmatpush1.msra.mxu0 0.0
    %1594 = vmatprep.subr.mxu0 0.0
    %1595 = vmatpush1.msra.mxu0 0.0
    %1596 = vmatprep.subr.mxu0 0.0
    %1597 = vmatpush1.msra.mxu0 0.0
    %1598 = vmatprep.subr.mxu0 0.0
    %1599 = vmatpush1.msra.mxu0 0.0
    %1600 = vmatprep.subr.mxu0 0.0
    %1601 = vmatpush1.msra.mxu0 0.0
    %1602 = vmatprep.subr.mxu0 0.0
    %1603 = vmatpush1.msra.mxu0 0.0
    %1604 = vmatprep.subr.mxu0 0.0
    %1605 = vmatpush1.msra.mxu0 0.0
    %1606 = vmatprep.mubr.f32.mxu0 0.0
    %1607 = vmatmul.mubr.f32.gmra.mrb[0].mxu0 %v1537
    %v1608 = vpop.f32.mrb[0].mxu0
    %v1609 = vadd.f32 0.0, %v1608
    %v1610 = vpop.f32.mrb[0].mxu0
    %1611 = vmatprep.mubr.f32.mxu0 0.0
    %1612 = vmatmul.mubr.f32.gmra.mrb[0].mxu0 %v1540
    %v1613 = vpop.f32.mrb[0].mxu0
    %v1614 = vadd.f32 0.0, %v1613
    %v1615 = vpop.f32.mrb[0].mxu0
    %1616 = vdwg.mxu0
    %v1617 = vsub.f32 %v1609, %v1329
    %v1618 = vsub.f32 %v1614, %v1334
    %v1619 = vmul.f32 %v1617, %v1617
    %v1620 = vmul.f32 %v1618, %v1618
    %v1621 = vsel %vm308, %v1619, 0.0
    %v1622 = vsel %vm308, %v1620, 0.0
    %v1623 = vadd.f32 %v1621, %v1622
    %1624 = vadd.xlane.f32.xlu0 %v1623
    %v1625 = vpop.xlane.xlu0 %1624
    %v1626 = vrot.slane %v1625, 4
    %v1627 = vadd.f32 %v1625, %v1626
    %v1628 = vrot.slane %v1627, 2
    %v1629 = vadd.f32 %v1627, %v1628
    %v1630 = vrot.slane %v1629, 1
    %v1631 = vadd.f32 %v1629, %v1630
    %s1632 = vtos %v1631
    %s1633 = smul.f32 %s1632, 0.00390625
    %s1634 = scalar_lea.smem [#allocation7], 0
    %1635 = sst [smem:[%s1634]] %s1633
    %v1636 = vld [vmem:[%s7] sm:$0xff]
    %v1637 = vld [vmem:[%s7 + $0x8] sm:$0xff]
    %v1639 = vsel %vm308, %v1609, 0
    %v1642 = vsel %vm308, %v1614, 0
    %1644 = vmatprep.subr.mxu0 0.0
    %1645 = vmatpush1.msra.mxu0 %v1636
    %1646 = vmatprep.subr.mxu0 0.0
    %1647 = vmatpush1.msra.mxu0 %v1637
    %1648 = vmatprep.subr.mxu0 0.0
    %1649 = vmatpush1.msra.mxu0 0.0
    %1650 = vmatprep.subr.mxu0 0.0
    %1651 = vmatpush1.msra.mxu0 0.0
    %1652 = vmatprep.subr.mxu0 0.0
    %1653 = vmatpush1.msra.mxu0 0.0
    %1654 = vmatprep.subr.mxu0 0.0
    %1655 = vmatpush1.msra.mxu0 0.0
    %1656 = vmatprep.subr.mxu0 0.0
    %1657 = vmatpush1.msra.mxu0 0.0
    %1658 = vmatprep.subr.mxu0 0.0
    %1659 = vmatpush1.msra.mxu0 0.0
    %1660 = vmatprep.subr.mxu0 0.0
    %1661 = vmatpush1.msra.mxu0 0.0
    %1662 = vmatprep.subr.mxu0 0.0
    %1663 = vmatpush1.msra.mxu0 0.0
    %1664 = vmatprep.subr.mxu0 0.0
    %1665 = vmatpush1.msra.mxu0 0.0
    %1666 = vmatprep.subr.mxu0 0.0
    %1667 = vmatpush1.msra.mxu0 0.0
    %1668 = vmatprep.subr.mxu0 0.0
    %1669 = vmatpush1.msra.mxu0 0.0
    %1670 = vmatprep.subr.mxu0 0.0
    %1671 = vmatpush1.msra.mxu0 0.0
    %1672 = vmatprep.subr.mxu0 0.0
    %1673 = vmatpush1.msra.mxu0 0.0
    %1674 = vmatprep.subr.mxu0 0.0
    %1675 = vmatpush1.msra.mxu0 0.0
    %1676 = vmatprep.subr.mxu0 0.0
    %1677 = vmatpush1.msra.mxu0 0.0
    %1678 = vmatprep.subr.mxu0 0.0
    %1679 = vmatpush1.msra.mxu0 0.0
    %1680 = vmatprep.subr.mxu0 0.0
    %1681 = vmatpush1.msra.mxu0 0.0
    %1682 = vmatprep.subr.mxu0 0.0
    %1683 = vmatpush1.msra.mxu0 0.0
    %1684 = vmatprep.subr.mxu0 0.0
    %1685 = vmatpush1.msra.mxu0 0.0
    %1686 = vmatprep.subr.mxu0 0.0
    %1687 = vmatpush1.msra.mxu0 0.0
    %1688 = vmatprep.subr.mxu0 0.0
    %1689 = vmatpush1.msra.mxu0 0.0
    %1690 = vmatprep.subr.mxu0 0.0
    %1691 = vmatpush1.msra.mxu0 0.0
    %1692 = vmatprep.subr.mxu0 0.0
    %1693 = vmatpush1.msra.mxu0 0.0
    %1694 = vmatprep.subr.mxu0 0.0
    %1695 = vmatpush1.msra.mxu0 0.0
    %1696 = vmatprep.subr.mxu0 0.0
    %1697 = vmatpush1.msra.mxu0 0.0
    %1698 = vmatprep.subr.mxu0 0.0
    %1699 = vmatpush1.msra.mxu0 0.0
    %1700 = vmatprep.subr.mxu0 0.0
    %1701 = vmatpush1.msra.mxu0 0.0
    %1702 = vmatprep.subr.mxu0 0.0
    %1703 = vmatpush1.msra.mxu0 0.0
    %1704 = vmatprep.subr.mxu0 0.0
    %1705 = vmatpush1.msra.mxu0 0.0
    %1706 = vmatprep.subr.mxu0 0.0
    %1707 = vmatpush1.msra.mxu0 0.0
    %1708 = vmatprep.mubr.f32.mxu0 0.0
    %1709 = vmatmul.mubr.f32.gmra.mrb[0].mxu0 %v1639
    %v1710 = vpop.f32.mrb[0].mxu0
    %v1711 = vadd.f32 0.0, %v1710
    %v1712 = vpop.f32.mrb[0].mxu0
    %1713 = vmatprep.mubr.f32.mxu0 0.0
    %1714 = vmatmul.mubr.f32.gmra.mrb[0].mxu0 %v1642
    %v1715 = vpop.f32.mrb[0].mxu0
    %v1716 = vadd.f32 0.0, %v1715
    %v1717 = vpop.f32.mrb[0].mxu0
    %1718 = vdwg.mxu0
    %v1719 = vadd.f32 %v384, %v1711
    %v1720 = vadd.f32 %v390, %v1716
    %v1721 = vld [vmem:[%s8] sm:$0xff]
    %v1722 = vld [vmem:[%s8 + $0x8] sm:$0xff]
    %v1723 = vld [vmem:[%s8 + $0x10] sm:$0xff]
    %v1724 = vld [vmem:[%s8 + $0x18] sm:$0xff]
    %1725 = vmatprep.subr.mxu0 0.0
    %1726 = vmatpush1.msra.mxu0 %v1721
    %1727 = vmatprep.subr.mxu0 0.0
    %1728 = vmatpush1.msra.mxu0 %v1722
    %1729 = vmatprep.subr.mxu0 0.0
    %1730 = vmatpush1.msra.mxu0 %v1723
    %1731 = vmatprep.subr.mxu0 0.0
    %1732 = vmatpush1.msra.mxu0 %v1724
    %1733 = vmatprep.subr.mxu0 0.0
    %1734 = vmatpush1.msra.mxu0 0.0
    %1735 = vmatprep.subr.mxu0 0.0
    %1736 = vmatpush1.msra.mxu0 0.0
    %1737 = vmatprep.subr.mxu0 0.0
    %1738 = vmatpush1.msra.mxu0 0.0
    %1739 = vmatprep.subr.mxu0 0.0
    %1740 = vmatpush1.msra.mxu0 0.0
    %1741 = vmatprep.subr.mxu0 0.0
    %1742 = vmatpush1.msra.mxu0 0.0
    %1743 = vmatprep.subr.mxu0 0.0
    %1744 = vmatpush1.msra.mxu0 0.0
    %1745 = vmatprep.subr.mxu0 0.0
    %1746 = vmatpush1.msra.mxu0 0.0
    %1747 = vmatprep.subr.mxu0 0.0
    %1748 = vmatpush1.msra.mxu0 0.0
    %1749 = vmatprep.subr.mxu0 0.0
    %1750 = vmatpush1.msra.mxu0 0.0
    %1751 = vmatprep.subr.mxu0 0.0
    %1752 = vmatpush1.msra.mxu0 0.0
    %1753 = vmatprep.subr.mxu0 0.0
    %1754 = vmatpush1.msra.mxu0 0.0
    %1755 = vmatprep.subr.mxu0 0.0
    %1756 = vmatpush1.msra.mxu0 0.0
    %1757 = vmatprep.subr.mxu0 0.0
    %1758 = vmatpush1.msra.mxu0 0.0
    %1759 = vmatprep.subr.mxu0 0.0
    %1760 = vmatpush1.msra.mxu0 0.0
    %1761 = vmatprep.subr.mxu0 0.0
    %1762 = vmatpush1.msra.mxu0 0.0
    %1763 = vmatprep.subr.mxu0 0.0
    %1764 = vmatpush1.msra.mxu0 0.0
    %1765 = vmatprep.subr.mxu0 0.0
    %1766 = vmatpush1.msra.mxu0 0.0
    %1767 = vmatprep.subr.mxu0 0.0
    %1768 = vmatpush1.msra.mxu0 0.0
    %1769 = vmatprep.subr.mxu0 0.0
    %1770 = vmatpush1.msra.mxu0 0.0
    %1771 = vmatprep.subr.mxu0 0.0
    %1772 = vmatpush1.msra.mxu0 0.0
    %1773 = vmatprep.subr.mxu0 0.0
    %1774 = vmatpush1.msra.mxu0 0.0
    %1775 = vmatprep.subr.mxu0 0.0
    %1776 = vmatpush1.msra.mxu0 0.0
    %1777 = vmatprep.subr.mxu0 0.0
    %1778 = vmatpush1.msra.mxu0 0.0
    %1779 = vmatprep.subr.mxu0 0.0
    %1780 = vmatpush1.msra.mxu0 0.0
    %1781 = vmatprep.subr.mxu0 0.0
    %1782 = vmatpush1.msra.mxu0 0.0
    %1783 = vmatprep.subr.mxu0 0.0
    %1784 = vmatpush1.msra.mxu0 0.0
    %1785 = vmatprep.subr.mxu0 0.0
    %1786 = vmatpush1.msra.mxu0 0.0
    %1787 = vmatprep.subr.mxu0 0.0
    %1788 = vmatpush1.msra.mxu0 0.0
    %1789 = vmatprep.mubr.f32.mxu0 0.0
    %1790 = vmatmul.mubr.f32.gmra.mrb[0].mxu0 %v398
    %v1791 = vpop.f32.mrb[0].mxu0
    %v1792 = vadd.f32 0.0, %v1791
    %v1793 = vpop.f32.mrb[0].mxu0
    %1794 = vdwg.mxu0
    %v1795 = vadd.f32 %v1719, %v1792
    %v1796 = vxor.u32 %v1795, 2147483648
    %v1797 = vmul.f32 %v1796, 1.442695
    %v1798 = vpow.pop %v1797
    %v1799 = vadd.f32 %v1798, 1.0
    %v1800 = vrcp.pop %v1799
    %v1801 = vmul.f32 1.0, %v1800
    %v1802 = vtanh.pop %v1795
    %v1803 = vmul.f32 %v1801, 0.0
    %1805 = vrot.lane.b32.xlu0 %v1802, 64
    %v1806 = vpop.permute.xlu0 %1805
    %v1808 = vmul.f32 %v1801, %v1806
    %1810 = vrot.lane.b32.xlu0 %v1808, 32
    %v1811 = vpop.permute.xlu0 %1810
    %v1813 = vadd.f32 %v1803, %v1811
    %v1814 = vtanh.pop %v1813
    %1816 = vrot.lane.b32.xlu0 %v1814, 64
    %v1817 = vpop.permute.xlu0 %1816
    %v1819 = vmul.f32 %v1801, %v1817
    %1821 = vrot.lane.b32.xlu0 %v1819, 32
    %v1822 = vpop.permute.xlu0 %1821
    %v1823 = vsel %vm396, %v1822, 0
    %1825 = vmatprep.subr.mxu0 0.0
    %1826 = vmatpush1.msra.mxu0 %v1721
    %1827 = vmatprep.subr.mxu0 0.0
    %1828 = vmatpush1.msra.mxu0 %v1722
    %1829 = vmatprep.subr.mxu0 0.0
    %1830 = vmatpush1.msra.mxu0 %v1723
    %1831 = vmatprep.subr.mxu0 0.0
    %1832 = vmatpush1.msra.mxu0 %v1724
    %1833 = vmatprep.subr.mxu0 0.0
    %1834 = vmatpush1.msra.mxu0 0.0
    %1835 = vmatprep.subr.mxu0 0.0
    %1836 = vmatpush1.msra.mxu0 0.0
    %1837 = vmatprep.subr.mxu0 0.0
    %1838 = vmatpush1.msra.mxu0 0.0
    %1839 = vmatprep.subr.mxu0 0.0
    %1840 = vmatpush1.msra.mxu0 0.0
    %1841 = vmatprep.subr.mxu0 0.0
    %1842 = vmatpush1.msra.mxu0 0.0
    %1843 = vmatprep.subr.mxu0 0.0
    %1844 = vmatpush1.msra.mxu0 0.0
    %1845 = vmatprep.subr.mxu0 0.0
    %1846 = vmatpush1.msra.mxu0 0.0
    %1847 = vmatprep.subr.mxu0 0.0
    %1848 = vmatpush1.msra.mxu0 0.0
    %1849 = vmatprep.subr.mxu0 0.0
    %1850 = vmatpush1.msra.mxu0 0.0
    %1851 = vmatprep.subr.mxu0 0.0
    %1852 = vmatpush1.msra.mxu0 0.0
    %1853 = vmatprep.subr.mxu0 0.0
    %1854 = vmatpush1.msra.mxu0 0.0
    %1855 = vmatprep.subr.mxu0 0.0
    %1856 = vmatpush1.msra.mxu0 0.0
    %1857 = vmatprep.subr.mxu0 0.0
    %1858 = vmatpush1.msra.mxu0 0.0
    %1859 = vmatprep.subr.mxu0 0.0
    %1860 = vmatpush1.msra.mxu0 0.0
    %1861 = vmatprep.subr.mxu0 0.0
    %1862 = vmatpush1.msra.mxu0 0.0
    %1863 = vmatprep.subr.mxu0 0.0
    %1864 = vmatpush1.msra.mxu0 0.0
    %1865 = vmatprep.subr.mxu0 0.0
    %1866 = vmatpush1.msra.mxu0 0.0
    %1867 = vmatprep.subr.mxu0 0.0
    %1868 = vmatpush1.msra.mxu0 0.0
    %1869 = vmatprep.subr.mxu0 0.0
    %1870 = vmatpush1.msra.mxu0 0.0
    %1871 = vmatprep.subr.mxu0 0.0
    %1872 = vmatpush1.msra.mxu0 0.0
    %1873 = vmatprep.subr.mxu0 0.0
    %1874 = vmatpush1.msra.mxu0 0.0
    %1875 = vmatprep.subr.mxu0 0.0
    %1876 = vmatpush1.msra.mxu0 0.0
    %1877 = vmatprep.subr.mxu0 0.0
    %1878 = vmatpush1.msra.mxu0 0.0
    %1879 = vmatprep.subr.mxu0 0.0
    %1880 = vmatpush1.msra.mxu0 0.0
    %1881 = vmatprep.subr.mxu0 0.0
    %1882 = vmatpush1.msra.mxu0 0.0
    %1883 = vmatprep.subr.mxu0 0.0
    %1884 = vmatpush1.msra.mxu0 0.0
    %1885 = vmatprep.subr.mxu0 0.0
    %1886 = vmatpush1.msra.mxu0 0.0
    %1887 = vmatprep.subr.mxu0 0.0
    %1888 = vmatpush1.msra.mxu0 0.0
    %1889 = vmatprep.mubr.f32.mxu0 0.0
    %1890 = vmatmul.mubr.f32.gmra.mrb[0].mxu0 %v1823
    %v1891 = vpop.f32.mrb[0].mxu0
    %v1892 = vadd.f32 0.0, %v1891
    %v1893 = vpop.f32.mrb[0].mxu0
    %1894 = vdwg.mxu0
    %v1896 = vrot.slane %v1892, 6
    %v1898 = vadd.f32 %v1719, %v1896
    %v1899 = vxor.u32 %v1898, 2147483648
    %v1900 = vmul.f32 %v1899, 1.442695
    %v1901 = vpow.pop %v1900
    %v1902 = vadd.f32 %v1901, 1.0
    %v1903 = vrcp.pop %v1902
    %v1904 = vmul.f32 1.0, %v1903
    %v1905 = vtanh.pop %v1898
    %v1907 = vrot.slane %v1813, 6
    %v1909 = vmul.f32 %v1904, %v1907
    %1911 = vrot.lane.b32.xlu0 %v1905, 64
    %v1912 = vpop.permute.xlu0 %1911
    %v1914 = vmul.f32 %v1904, %v1912
    %1916 = vrot.lane.b32.xlu0 %v1914, 32
    %v1917 = vpop.permute.xlu0 %1916
    %v1919 = vadd.f32 %v1909, %v1917
    %v1920 = vtanh.pop %v1919
    %1922 = vrot.lane.b32.xlu0 %v1920, 64
    %v1923 = vpop.permute.xlu0 %1922
    %v1925 = vmul.f32 %v1904, %v1923
    %v1927 = vrot.slane %v1925, 2
    %1928 = vrot.lane.b32.xlu0 %v1927, 32
    %v1929 = vpop.permute.xlu0 %1928
    %v1930 = vsel %vm396, %v1929, 0
    %1932 = vmatprep.subr.mxu0 0.0
    %1933 = vmatpush1.msra.mxu0 %v1721
    %1934 = vmatprep.subr.mxu0 0.0
    %1935 = vmatpush1.msra.mxu0 %v1722
    %1936 = vmatprep.subr.mxu0 0.0
    %1937 = vmatpush1.msra.mxu0 %v1723
    %1938 = vmatprep.subr.mxu0 0.0
    %1939 = vmatpush1.msra.mxu0 %v1724
    %1940 = vmatprep.subr.mxu0 0.0
    %1941 = vmatpush1.msra.mxu0 0.0
    %1942 = vmatprep.subr.mxu0 0.0
    %1943 = vmatpush1.msra.mxu0 0.0
    %1944 = vmatprep.subr.mxu0 0.0
    %1945 = vmatpush1.msra.mxu0 0.0
    %1946 = vmatprep.subr.mxu0 0.0
    %1947 = vmatpush1.msra.mxu0 0.0
    %1948 = vmatprep.subr.mxu0 0.0
    %1949 = vmatpush1.msra.mxu0 0.0
    %1950 = vmatprep.subr.mxu0 0.0
    %1951 = vmatpush1.msra.mxu0 0.0
    %1952 = vmatprep.subr.mxu0 0.0
    %1953 = vmatpush1.msra.mxu0 0.0
    %1954 = vmatprep.subr.mxu0 0.0
    %1955 = vmatpush1.msra.mxu0 0.0
    %1956 = vmatprep.subr.mxu0 0.0
    %1957 = vmatpush1.msra.mxu0 0.0
    %1958 = vmatprep.subr.mxu0 0.0
    %1959 = vmatpush1.msra.mxu0 0.0
    %1960 = vmatprep.subr.mxu0 0.0
    %1961 = vmatpush1.msra.mxu0 0.0
    %1962 = vmatprep.subr.mxu0 0.0
    %1963 = vmatpush1.msra.mxu0 0.0
    %1964 = vmatprep.subr.mxu0 0.0
    %1965 = vmatpush1.msra.mxu0 0.0
    %1966 = vmatprep.subr.mxu0 0.0
    %1967 = vmatpush1.msra.mxu0 0.0
    %1968 = vmatprep.subr.mxu0 0.0
    %1969 = vmatpush1.msra.mxu0 0.0
    %1970 = vmatprep.subr.mxu0 0.0
    %1971 = vmatpush1.msra.mxu0 0.0
    %1972 = vmatprep.subr.mxu0 0.0
    %1973 = vmatpush1.msra.mxu0 0.0
    %1974 = vmatprep.subr.mxu0 0.0
    %1975 = vmatpush1.msra.mxu0 0.0
    %1976 = vmatprep.subr.mxu0 0.0
    %1977 = vmatpush1.msra.mxu0 0.0
    %1978 = vmatprep.subr.mxu0 0.0
    %1979 = vmatpush1.msra.mxu0 0.0
    %1980 = vmatprep.subr.mxu0 0.0
    %1981 = vmatpush1.msra.mxu0 0.0
    %1982 = vmatprep.subr.mxu0 0.0
    %1983 = vmatpush1.msra.mxu0 0.0
    %1984 = vmatprep.subr.mxu0 0.0
    %1985 = vmatpush1.msra.mxu0 0.0
    %1986 = vmatprep.subr.mxu0 0.0
    %1987 = vmatpush1.msra.mxu0 0.0
    %1988 = vmatprep.subr.mxu0 0.0
    %1989 = vmatpush1.msra.mxu0 0.0
    %1990 = vmatprep.subr.mxu0 0.0
    %1991 = vmatpush1.msra.mxu0 0.0
    %1992 = vmatprep.subr.mxu0 0.0
    %1993 = vmatpush1.msra.mxu0 0.0
    %1994 = vmatprep.subr.mxu0 0.0
    %1995 = vmatpush1.msra.mxu0 0.0
    %1996 = vmatprep.mubr.f32.mxu0 0.0
    %1997 = vmatmul.mubr.f32.gmra.mrb[0].mxu0 %v1930
    %v1998 = vpop.f32.mrb[0].mxu0
    %v1999 = vadd.f32 0.0, %v1998
    %v2000 = vpop.f32.mrb[0].mxu0
    %2001 = vdwg.mxu0
    %v2003 = vrot.slane %v1999, 4
    %v2005 = vadd.f32 %v1719, %v2003
    %v2006 = vxor.u32 %v2005, 2147483648
    %v2007 = vmul.f32 %v2006, 1.442695
    %v2008 = vpow.pop %v2007
    %v2009 = vadd.f32 %v2008, 1.0
    %v2010 = vrcp.pop %v2009
    %v2011 = vmul.f32 1.0, %v2010
    %v2012 = vtanh.pop %v2005
    %v2014 = vrot.slane %v1919, 6
    %v2016 = vmul.f32 %v2011, %v2014
    %2018 = vrot.lane.b32.xlu0 %v2012, 64
    %v2019 = vpop.permute.xlu0 %2018
    %v2021 = vmul.f32 %v2011, %v2019
    %2023 = vrot.lane.b32.xlu0 %v2021, 32
    %v2024 = vpop.permute.xlu0 %2023
    %v2026 = vadd.f32 %v2016, %v2024
    %v2027 = vtanh.pop %v2026
    %2029 = vrot.lane.b32.xlu0 %v2027, 64
    %v2030 = vpop.permute.xlu0 %2029
    %v2032 = vmul.f32 %v2011, %v2030
    %v2034 = vrot.slane %v2032, 4
    %2035 = vrot.lane.b32.xlu0 %v2034, 32
    %v2036 = vpop.permute.xlu0 %2035
    %v2037 = vsel %vm396, %v2036, 0
    %2039 = vmatprep.subr.mxu0 0.0
    %2040 = vmatpush1.msra.mxu0 %v1721
    %2041 = vmatprep.subr.mxu0 0.0
    %2042 = vmatpush1.msra.mxu0 %v1722
    %2043 = vmatprep.subr.mxu0 0.0
    %2044 = vmatpush1.msra.mxu0 %v1723
    %2045 = vmatprep.subr.mxu0 0.0
    %2046 = vmatpush1.msra.mxu0 %v1724
    %2047 = vmatprep.subr.mxu0 0.0
    %2048 = vmatpush1.msra.mxu0 0.0
    %2049 = vmatprep.subr.mxu0 0.0
    %2050 = vmatpush1.msra.mxu0 0.0
    %2051 = vmatprep.subr.mxu0 0.0
    %2052 = vmatpush1.msra.mxu0 0.0
    %2053 = vmatprep.subr.mxu0 0.0
    %2054 = vmatpush1.msra.mxu0 0.0
    %2055 = vmatprep.subr.mxu0 0.0
    %2056 = vmatpush1.msra.mxu0 0.0
    %2057 = vmatprep.subr.mxu0 0.0
    %2058 = vmatpush1.msra.mxu0 0.0
    %2059 = vmatprep.subr.mxu0 0.0
    %2060 = vmatpush1.msra.mxu0 0.0
    %2061 = vmatprep.subr.mxu0 0.0
    %2062 = vmatpush1.msra.mxu0 0.0
    %2063 = vmatprep.subr.mxu0 0.0
    %2064 = vmatpush1.msra.mxu0 0.0
    %2065 = vmatprep.subr.mxu0 0.0
    %2066 = vmatpush1.msra.mxu0 0.0
    %2067 = vmatprep.subr.mxu0 0.0
    %2068 = vmatpush1.msra.mxu0 0.0
    %2069 = vmatprep.subr.mxu0 0.0
    %2070 = vmatpush1.msra.mxu0 0.0
    %2071 = vmatprep.subr.mxu0 0.0
    %2072 = vmatpush1.msra.mxu0 0.0
    %2073 = vmatprep.subr.mxu0 0.0
    %2074 = vmatpush1.msra.mxu0 0.0
    %2075 = vmatprep.subr.mxu0 0.0
    %2076 = vmatpush1.msra.mxu0 0.0
    %2077 = vmatprep.subr.mxu0 0.0
    %2078 = vmatpush1.msra.mxu0 0.0
    %2079 = vmatprep.subr.mxu0 0.0
    %2080 = vmatpush1.msra.mxu0 0.0
    %2081 = vmatprep.subr.mxu0 0.0
    %2082 = vmatpush1.msra.mxu0 0.0
    %2083 = vmatprep.subr.mxu0 0.0
    %2084 = vmatpush1.msra.mxu0 0.0
    %2085 = vmatprep.subr.mxu0 0.0
    %2086 = vmatpush1.msra.mxu0 0.0
    %2087 = vmatprep.subr.mxu0 0.0
    %2088 = vmatpush1.msra.mxu0 0.0
    %2089 = vmatprep.subr.mxu0 0.0
    %2090 = vmatpush1.msra.mxu0 0.0
    %2091 = vmatprep.subr.mxu0 0.0
    %2092 = vmatpush1.msra.mxu0 0.0
    %2093 = vmatprep.subr.mxu0 0.0
    %2094 = vmatpush1.msra.mxu0 0.0
    %2095 = vmatprep.subr.mxu0 0.0
    %2096 = vmatpush1.msra.mxu0 0.0
    %2097 = vmatprep.subr.mxu0 0.0
    %2098 = vmatpush1.msra.mxu0 0.0
    %2099 = vmatprep.subr.mxu0 0.0
    %2100 = vmatpush1.msra.mxu0 0.0
    %2101 = vmatprep.subr.mxu0 0.0
    %2102 = vmatpush1.msra.mxu0 0.0
    %2103 = vmatprep.mubr.f32.mxu0 0.0
    %2104 = vmatmul.mubr.f32.gmra.mrb[0].mxu0 %v2037
    %v2105 = vpop.f32.mrb[0].mxu0
    %v2106 = vadd.f32 0.0, %v2105
    %v2107 = vpop.f32.mrb[0].mxu0
    %2108 = vdwg.mxu0
    %v2110 = vrot.slane %v2106, 2
    %v2112 = vadd.f32 %v1719, %v2110
    %v2113 = vxor.u32 %v2112, 2147483648
    %v2114 = vmul.f32 %v2113, 1.442695
    %v2115 = vpow.pop %v2114
    %v2116 = vadd.f32 %v2115, 1.0
    %v2117 = vrcp.pop %v2116
    %v2118 = vmul.f32 1.0, %v2117
    %v2119 = vtanh.pop %v2112
    %v2121 = vrot.slane %v2026, 6
    %v2123 = vmul.f32 %v2118, %v2121
    %2125 = vrot.lane.b32.xlu0 %v2119, 64
    %v2126 = vpop.permute.xlu0 %2125
    %v2128 = vmul.f32 %v2118, %v2126
    %2130 = vrot.lane.b32.xlu0 %v2128, 32
    %v2131 = vpop.permute.xlu0 %2130
    %v2133 = vadd.f32 %v2123, %v2131
    %v2134 = vtanh.pop %v2133
    %2136 = vrot.lane.b32.xlu0 %v2134, 64
    %v2137 = vpop.permute.xlu0 %2136
    %v2139 = vmul.f32 %v2118, %v2137
    %v2141 = vrot.slane %v2139, 6
    %2142 = vrot.lane.b32.xlu0 %v2141, 32
    %v2143 = vpop.permute.xlu0 %2142
    %v2144 = vsel %vm396, %v2143, 0
    %2146 = vmatprep.subr.mxu0 0.0
    %2147 = vmatpush1.msra.mxu0 %v1721
    %2148 = vmatprep.subr.mxu0 0.0
    %2149 = vmatpush1.msra.mxu0 %v1722
    %2150 = vmatprep.subr.mxu0 0.0
    %2151 = vmatpush1.msra.mxu0 %v1723
    %2152 = vmatprep.subr.mxu0 0.0
    %2153 = vmatpush1.msra.mxu0 %v1724
    %2154 = vmatprep.subr.mxu0 0.0
    %2155 = vmatpush1.msra.mxu0 0.0
    %2156 = vmatprep.subr.mxu0 0.0
    %2157 = vmatpush1.msra.mxu0 0.0
    %2158 = vmatprep.subr.mxu0 0.0
    %2159 = vmatpush1.msra.mxu0 0.0
    %2160 = vmatprep.subr.mxu0 0.0
    %2161 = vmatpush1.msra.mxu0 0.0
    %2162 = vmatprep.subr.mxu0 0.0
    %2163 = vmatpush1.msra.mxu0 0.0
    %2164 = vmatprep.subr.mxu0 0.0
    %2165 = vmatpush1.msra.mxu0 0.0
    %2166 = vmatprep.subr.mxu0 0.0
    %2167 = vmatpush1.msra.mxu0 0.0
    %2168 = vmatprep.subr.mxu0 0.0
    %2169 = vmatpush1.msra.mxu0 0.0
    %2170 = vmatprep.subr.mxu0 0.0
    %2171 = vmatpush1.msra.mxu0 0.0
    %2172 = vmatprep.subr.mxu0 0.0
    %2173 = vmatpush1.msra.mxu0 0.0
    %2174 = vmatprep.subr.mxu0 0.0
    %2175 = vmatpush1.msra.mxu0 0.0
    %2176 = vmatprep.subr.mxu0 0.0
    %2177 = vmatpush1.msra.mxu0 0.0
    %2178 = vmatprep.subr.mxu0 0.0
    %2179 = vmatpush1.msra.mxu0 0.0
    %2180 = vmatprep.subr.mxu0 0.0
    %2181 = vmatpush1.msra.mxu0 0.0
    %2182 = vmatprep.subr.mxu0 0.0
    %2183 = vmatpush1.msra.mxu0 0.0
    %2184 = vmatprep.subr.mxu0 0.0
    %2185 = vmatpush1.msra.mxu0 0.0
    %2186 = vmatprep.subr.mxu0 0.0
    %2187 = vmatpush1.msra.mxu0 0.0
    %2188 = vmatprep.subr.mxu0 0.0
    %2189 = vmatpush1.msra.mxu0 0.0
    %2190 = vmatprep.subr.mxu0 0.0
    %2191 = vmatpush1.msra.mxu0 0.0
    %2192 = vmatprep.subr.mxu0 0.0
    %2193 = vmatpush1.msra.mxu0 0.0
    %2194 = vmatprep.subr.mxu0 0.0
    %2195 = vmatpush1.msra.mxu0 0.0
    %2196 = vmatprep.subr.mxu0 0.0
    %2197 = vmatpush1.msra.mxu0 0.0
    %2198 = vmatprep.subr.mxu0 0.0
    %2199 = vmatpush1.msra.mxu0 0.0
    %2200 = vmatprep.subr.mxu0 0.0
    %2201 = vmatpush1.msra.mxu0 0.0
    %2202 = vmatprep.subr.mxu0 0.0
    %2203 = vmatpush1.msra.mxu0 0.0
    %2204 = vmatprep.subr.mxu0 0.0
    %2205 = vmatpush1.msra.mxu0 0.0
    %2206 = vmatprep.subr.mxu0 0.0
    %2207 = vmatpush1.msra.mxu0 0.0
    %2208 = vmatprep.subr.mxu0 0.0
    %2209 = vmatpush1.msra.mxu0 0.0
    %2210 = vmatprep.mubr.f32.mxu0 0.0
    %2211 = vmatmul.mubr.f32.gmra.mrb[0].mxu0 %v2144
    %v2212 = vpop.f32.mrb[0].mxu0
    %v2213 = vadd.f32 0.0, %v2212
    %v2214 = vpop.f32.mrb[0].mxu0
    %2215 = vdwg.mxu0
    %v2216 = vadd.f32 %v1720, %v2213
    %v2217 = vxor.u32 %v2216, 2147483648
    %v2218 = vmul.f32 %v2217, 1.442695
    %v2219 = vpow.pop %v2218
    %v2220 = vadd.f32 %v2219, 1.0
    %v2221 = vrcp.pop %v2220
    %v2222 = vmul.f32 1.0, %v2221
    %v2223 = vtanh.pop %v2216
    %v2225 = vrot.slane %v2133, 6
    %v2227 = vmul.f32 %v2222, %v2225
    %2229 = vrot.lane.b32.xlu0 %v2223, 64
    %v2230 = vpop.permute.xlu0 %2229
    %v2232 = vmul.f32 %v2222, %v2230
    %2234 = vrot.lane.b32.xlu0 %v2232, 32
    %v2235 = vpop.permute.xlu0 %2234
    %v2237 = vadd.f32 %v2227, %v2235
    %v2238 = vtanh.pop %v2237
    %2240 = vrot.lane.b32.xlu0 %v2238, 64
    %v2241 = vpop.permute.xlu0 %2240
    %v2243 = vmul.f32 %v2222, %v2241
    %2245 = vrot.lane.b32.xlu0 %v2243, 32
    %v2246 = vpop.permute.xlu0 %2245
    %v2247 = vsel %vm396, %v2246, 0
    %2249 = vmatprep.subr.mxu0 0.0
    %2250 = vmatpush1.msra.mxu0 %v1721
    %2251 = vmatprep.subr.mxu0 0.0
    %2252 = vmatpush1.msra.mxu0 %v1722
    %2253 = vmatprep.subr.mxu0 0.0
    %2254 = vmatpush1.msra.mxu0 %v1723
    %2255 = vmatprep.subr.mxu0 0.0
    %2256 = vmatpush1.msra.mxu0 %v1724
    %2257 = vmatprep.subr.mxu0 0.0
    %2258 = vmatpush1.msra.mxu0 0.0
    %2259 = vmatprep.subr.mxu0 0.0
    %2260 = vmatpush1.msra.mxu0 0.0
    %2261 = vmatprep.subr.mxu0 0.0
    %2262 = vmatpush1.msra.mxu0 0.0
    %2263 = vmatprep.subr.mxu0 0.0
    %2264 = vmatpush1.msra.mxu0 0.0
    %2265 = vmatprep.subr.mxu0 0.0
    %2266 = vmatpush1.msra.mxu0 0.0
    %2267 = vmatprep.subr.mxu0 0.0
    %2268 = vmatpush1.msra.mxu0 0.0
    %2269 = vmatprep.subr.mxu0 0.0
    %2270 = vmatpush1.msra.mxu0 0.0
    %2271 = vmatprep.subr.mxu0 0.0
    %2272 = vmatpush1.msra.mxu0 0.0
    %2273 = vmatprep.subr.mxu0 0.0
    %2274 = vmatpush1.msra.mxu0 0.0
    %2275 = vmatprep.subr.mxu0 0.0
    %2276 = vmatpush1.msra.mxu0 0.0
    %2277 = vmatprep.subr.mxu0 0.0
    %2278 = vmatpush1.msra.mxu0 0.0
    %2279 = vmatprep.subr.mxu0 0.0
    %2280 = vmatpush1.msra.mxu0 0.0
    %2281 = vmatprep.subr.mxu0 0.0
    %2282 = vmatpush1.msra.mxu0 0.0
    %2283 = vmatprep.subr.mxu0 0.0
    %2284 = vmatpush1.msra.mxu0 0.0
    %2285 = vmatprep.subr.mxu0 0.0
    %2286 = vmatpush1.msra.mxu0 0.0
    %2287 = vmatprep.subr.mxu0 0.0
    %2288 = vmatpush1.msra.mxu0 0.0
    %2289 = vmatprep.subr.mxu0 0.0
    %2290 = vmatpush1.msra.mxu0 0.0
    %2291 = vmatprep.subr.mxu0 0.0
    %2292 = vmatpush1.msra.mxu0 0.0
    %2293 = vmatprep.subr.mxu0 0.0
    %2294 = vmatpush1.msra.mxu0 0.0
    %2295 = vmatprep.subr.mxu0 0.0
    %2296 = vmatpush1.msra.mxu0 0.0
    %2297 = vmatprep.subr.mxu0 0.0
    %2298 = vmatpush1.msra.mxu0 0.0
    %2299 = vmatprep.subr.mxu0 0.0
    %2300 = vmatpush1.msra.mxu0 0.0
    %2301 = vmatprep.subr.mxu0 0.0
    %2302 = vmatpush1.msra.mxu0 0.0
    %2303 = vmatprep.subr.mxu0 0.0
    %2304 = vmatpush1.msra.mxu0 0.0
    %2305 = vmatprep.subr.mxu0 0.0
    %2306 = vmatpush1.msra.mxu0 0.0
    %2307 = vmatprep.subr.mxu0 0.0
    %2308 = vmatpush1.msra.mxu0 0.0
    %2309 = vmatprep.subr.mxu0 0.0
    %2310 = vmatpush1.msra.mxu0 0.0
    %2311 = vmatprep.subr.mxu0 0.0
    %2312 = vmatpush1.msra.mxu0 0.0
    %2313 = vmatprep.mubr.f32.mxu0 0.0
    %2314 = vmatmul.mubr.f32.gmra.mrb[0].mxu0 %v2247
    %v2315 = vpop.f32.mrb[0].mxu0
    %v2316 = vadd.f32 0.0, %v2315
    %v2317 = vpop.f32.mrb[0].mxu0
    %2318 = vdwg.mxu0
    %v2320 = vrot.slane %v2316, 6
    %v2322 = vadd.f32 %v1720, %v2320
    %v2323 = vxor.u32 %v2322, 2147483648
    %v2324 = vmul.f32 %v2323, 1.442695
    %v2325 = vpow.pop %v2324
    %v2326 = vadd.f32 %v2325, 1.0
    %v2327 = vrcp.pop %v2326
    %v2328 = vmul.f32 1.0, %v2327
    %v2329 = vtanh.pop %v2322
    %v2331 = vrot.slane %v2237, 6
    %v2333 = vmul.f32 %v2328, %v2331
    %2335 = vrot.lane.b32.xlu0 %v2329, 64
    %v2336 = vpop.permute.xlu0 %2335
    %v2338 = vmul.f32 %v2328, %v2336
    %2340 = vrot.lane.b32.xlu0 %v2338, 32
    %v2341 = vpop.permute.xlu0 %2340
    %v2343 = vadd.f32 %v2333, %v2341
    %v2344 = vtanh.pop %v2343
    %2346 = vrot.lane.b32.xlu0 %v2344, 64
    %v2347 = vpop.permute.xlu0 %2346
    %v2349 = vmul.f32 %v2328, %v2347
    %v2351 = vrot.slane %v2349, 2
    %2352 = vrot.lane.b32.xlu0 %v2351, 32
    %v2353 = vpop.permute.xlu0 %2352
    %v2354 = vsel %vm396, %v2353, 0
    %2356 = vmatprep.subr.mxu0 0.0
    %2357 = vmatpush1.msra.mxu0 %v1721
    %2358 = vmatprep.subr.mxu0 0.0
    %2359 = vmatpush1.msra.mxu0 %v1722
    %2360 = vmatprep.subr.mxu0 0.0
    %2361 = vmatpush1.msra.mxu0 %v1723
    %2362 = vmatprep.subr.mxu0 0.0
    %2363 = vmatpush1.msra.mxu0 %v1724
    %2364 = vmatprep.subr.mxu0 0.0
    %2365 = vmatpush1.msra.mxu0 0.0
    %2366 = vmatprep.subr.mxu0 0.0
    %2367 = vmatpush1.msra.mxu0 0.0
    %2368 = vmatprep.subr.mxu0 0.0
    %2369 = vmatpush1.msra.mxu0 0.0
    %2370 = vmatprep.subr.mxu0 0.0
    %2371 = vmatpush1.msra.mxu0 0.0
    %2372 = vmatprep.subr.mxu0 0.0
    %2373 = vmatpush1.msra.mxu0 0.0
    %2374 = vmatprep.subr.mxu0 0.0
    %2375 = vmatpush1.msra.mxu0 0.0
    %2376 = vmatprep.subr.mxu0 0.0
    %2377 = vmatpush1.msra.mxu0 0.0
    %2378 = vmatprep.subr.mxu0 0.0
    %2379 = vmatpush1.msra.mxu0 0.0
    %2380 = vmatprep.subr.mxu0 0.0
    %2381 = vmatpush1.msra.mxu0 0.0
    %2382 = vmatprep.subr.mxu0 0.0
    %2383 = vmatpush1.msra.mxu0 0.0
    %2384 = vmatprep.subr.mxu0 0.0
    %2385 = vmatpush1.msra.mxu0 0.0
    %2386 = vmatprep.subr.mxu0 0.0
    %2387 = vmatpush1.msra.mxu0 0.0
    %2388 = vmatprep.subr.mxu0 0.0
    %2389 = vmatpush1.msra.mxu0 0.0
    %2390 = vmatprep.subr.mxu0 0.0
    %2391 = vmatpush1.msra.mxu0 0.0
    %2392 = vmatprep.subr.mxu0 0.0
    %2393 = vmatpush1.msra.mxu0 0.0
    %2394 = vmatprep.subr.mxu0 0.0
    %2395 = vmatpush1.msra.mxu0 0.0
    %2396 = vmatprep.subr.mxu0 0.0
    %2397 = vmatpush1.msra.mxu0 0.0
    %2398 = vmatprep.subr.mxu0 0.0
    %2399 = vmatpush1.msra.mxu0 0.0
    %2400 = vmatprep.subr.mxu0 0.0
    %2401 = vmatpush1.msra.mxu0 0.0
    %2402 = vmatprep.subr.mxu0 0.0
    %2403 = vmatpush1.msra.mxu0 0.0
    %2404 = vmatprep.subr.mxu0 0.0
    %2405 = vmatpush1.msra.mxu0 0.0
    %2406 = vmatprep.subr.mxu0 0.0
    %2407 = vmatpush1.msra.mxu0 0.0
    %2408 = vmatprep.subr.mxu0 0.0
    %2409 = vmatpush1.msra.mxu0 0.0
    %2410 = vmatprep.subr.mxu0 0.0
    %2411 = vmatpush1.msra.mxu0 0.0
    %2412 = vmatprep.subr.mxu0 0.0
    %2413 = vmatpush1.msra.mxu0 0.0
    %2414 = vmatprep.subr.mxu0 0.0
    %2415 = vmatpush1.msra.mxu0 0.0
    %2416 = vmatprep.subr.mxu0 0.0
    %2417 = vmatpush1.msra.mxu0 0.0
    %2418 = vmatprep.subr.mxu0 0.0
    %2419 = vmatpush1.msra.mxu0 0.0
    %2420 = vmatprep.mubr.f32.mxu0 0.0
    %2421 = vmatmul.mubr.f32.gmra.mrb[0].mxu0 %v2354
    %v2422 = vpop.f32.mrb[0].mxu0
    %v2423 = vadd.f32 0.0, %v2422
    %v2424 = vpop.f32.mrb[0].mxu0
    %2425 = vdwg.mxu0
    %v2427 = vrot.slane %v2423, 4
    %v2429 = vadd.f32 %v1720, %v2427
    %v2430 = vxor.u32 %v2429, 2147483648
    %v2431 = vmul.f32 %v2430, 1.442695
    %v2432 = vpow.pop %v2431
    %v2433 = vadd.f32 %v2432, 1.0
    %v2434 = vrcp.pop %v2433
    %v2435 = vmul.f32 1.0, %v2434
    %v2436 = vtanh.pop %v2429
    %v2438 = vrot.slane %v2343, 6
    %v2440 = vmul.f32 %v2435, %v2438
    %2442 = vrot.lane.b32.xlu0 %v2436, 64
    %v2443 = vpop.permute.xlu0 %2442
    %v2445 = vmul.f32 %v2435, %v2443
    %2447 = vrot.lane.b32.xlu0 %v2445, 32
    %v2448 = vpop.permute.xlu0 %2447
    %v2450 = vadd.f32 %v2440, %v2448
    %v2451 = vtanh.pop %v2450
    %2453 = vrot.lane.b32.xlu0 %v2451, 64
    %v2454 = vpop.permute.xlu0 %2453
    %v2456 = vmul.f32 %v2435, %v2454
    %v2458 = vrot.slane %v2456, 4
    %2459 = vrot.lane.b32.xlu0 %v2458, 32
    %v2460 = vpop.permute.xlu0 %2459
    %v2461 = vsel %vm396, %v2460, 0
    %2463 = vmatprep.subr.mxu0 0.0
    %2464 = vmatpush1.msra.mxu0 %v1721
    %2465 = vmatprep.subr.mxu0 0.0
    %2466 = vmatpush1.msra.mxu0 %v1722
    %2467 = vmatprep.subr.mxu0 0.0
    %2468 = vmatpush1.msra.mxu0 %v1723
    %2469 = vmatprep.subr.mxu0 0.0
    %2470 = vmatpush1.msra.mxu0 %v1724
    %2471 = vmatprep.subr.mxu0 0.0
    %2472 = vmatpush1.msra.mxu0 0.0
    %2473 = vmatprep.subr.mxu0 0.0
    %2474 = vmatpush1.msra.mxu0 0.0
    %2475 = vmatprep.subr.mxu0 0.0
    %2476 = vmatpush1.msra.mxu0 0.0
    %2477 = vmatprep.subr.mxu0 0.0
    %2478 = vmatpush1.msra.mxu0 0.0
    %2479 = vmatprep.subr.mxu0 0.0
    %2480 = vmatpush1.msra.mxu0 0.0
    %2481 = vmatprep.subr.mxu0 0.0
    %2482 = vmatpush1.msra.mxu0 0.0
    %2483 = vmatprep.subr.mxu0 0.0
    %2484 = vmatpush1.msra.mxu0 0.0
    %2485 = vmatprep.subr.mxu0 0.0
    %2486 = vmatpush1.msra.mxu0 0.0
    %2487 = vmatprep.subr.mxu0 0.0
    %2488 = vmatpush1.msra.mxu0 0.0
    %2489 = vmatprep.subr.mxu0 0.0
    %2490 = vmatpush1.msra.mxu0 0.0
    %2491 = vmatprep.subr.mxu0 0.0
    %2492 = vmatpush1.msra.mxu0 0.0
    %2493 = vmatprep.subr.mxu0 0.0
    %2494 = vmatpush1.msra.mxu0 0.0
    %2495 = vmatprep.subr.mxu0 0.0
    %2496 = vmatpush1.msra.mxu0 0.0
    %2497 = vmatprep.subr.mxu0 0.0
    %2498 = vmatpush1.msra.mxu0 0.0
    %2499 = vmatprep.subr.mxu0 0.0
    %2500 = vmatpush1.msra.mxu0 0.0
    %2501 = vmatprep.subr.mxu0 0.0
    %2502 = vmatpush1.msra.mxu0 0.0
    %2503 = vmatprep.subr.mxu0 0.0
    %2504 = vmatpush1.msra.mxu0 0.0
    %2505 = vmatprep.subr.mxu0 0.0
    %2506 = vmatpush1.msra.mxu0 0.0
    %2507 = vmatprep.subr.mxu0 0.0
    %2508 = vmatpush1.msra.mxu0 0.0
    %2509 = vmatprep.subr.mxu0 0.0
    %2510 = vmatpush1.msra.mxu0 0.0
    %2511 = vmatprep.subr.mxu0 0.0
    %2512 = vmatpush1.msra.mxu0 0.0
    %2513 = vmatprep.subr.mxu0 0.0
    %2514 = vmatpush1.msra.mxu0 0.0
    %2515 = vmatprep.subr.mxu0 0.0
    %2516 = vmatpush1.msra.mxu0 0.0
    %2517 = vmatprep.subr.mxu0 0.0
    %2518 = vmatpush1.msra.mxu0 0.0
    %2519 = vmatprep.subr.mxu0 0.0
    %2520 = vmatpush1.msra.mxu0 0.0
    %2521 = vmatprep.subr.mxu0 0.0
    %2522 = vmatpush1.msra.mxu0 0.0
    %2523 = vmatprep.subr.mxu0 0.0
    %2524 = vmatpush1.msra.mxu0 0.0
    %2525 = vmatprep.subr.mxu0 0.0
    %2526 = vmatpush1.msra.mxu0 0.0
    %2527 = vmatprep.mubr.f32.mxu0 0.0
    %2528 = vmatmul.mubr.f32.gmra.mrb[0].mxu0 %v2461
    %v2529 = vpop.f32.mrb[0].mxu0
    %v2530 = vadd.f32 0.0, %v2529
    %v2531 = vpop.f32.mrb[0].mxu0
    %2532 = vdwg.mxu0
    %v2534 = vrot.slane %v2530, 2
    %v2536 = vadd.f32 %v1720, %v2534
    %v2537 = vxor.u32 %v2536, 2147483648
    %v2538 = vmul.f32 %v2537, 1.442695
    %v2539 = vpow.pop %v2538
    %v2540 = vadd.f32 %v2539, 1.0
    %v2541 = vrcp.pop %v2540
    %v2542 = vmul.f32 1.0, %v2541
    %v2543 = vtanh.pop %v2536
    %v2545 = vrot.slane %v2450, 6
    %v2547 = vmul.f32 %v2542, %v2545
    %2549 = vrot.lane.b32.xlu0 %v2543, 64
    %v2550 = vpop.permute.xlu0 %2549
    %v2552 = vmul.f32 %v2542, %v2550
    %2554 = vrot.lane.b32.xlu0 %v2552, 32
    %v2555 = vpop.permute.xlu0 %2554
    %v2557 = vadd.f32 %v2547, %v2555
    %v2558 = vtanh.pop %v2557
    %2560 = vrot.lane.b32.xlu0 %v2558, 64
    %v2561 = vpop.permute.xlu0 %2560
    %v2563 = vmul.f32 %v2542, %v2561
    %v2564 = vsel %vm1239, %v1819, %v1925
    %v2565 = vsel %vm1241, %v2564, %v2032
    %v2566 = vsel %vm1243, %v2565, %v2139
    %v2567 = vsel %vm1239, %v2243, %v2349
    %v2568 = vsel %vm1241, %v2567, %v2456
    %v2569 = vsel %vm1243, %v2568, %v2563
    %v2570 = vld [vmem:[%s9] sm:$0xff]
    %v2571 = vld [vmem:[%s9 + $0x8] sm:$0xff]
    %v2572 = vld [vmem:[%s9 + $0x10] sm:$0xff]
    %v2573 = vld [vmem:[%s9 + $0x18] sm:$0xff]
    %v2574 = vld [vmem:[%s1] sm:$0xff]
    %v2575 = vld [vmem:[%s1 + $0x8] sm:$0xff]
    %v2576 = vld [vmem:[%s1 + $0x10] sm:$0xff]
    %v2577 = vld [vmem:[%s1 + $0x18] sm:$0xff]
    %v2578 = vld [vmem:[%s1 + $0x20] sm:$0xff]
    %v2579 = vld [vmem:[%s1 + $0x28] sm:$0xff]
    %v2580 = vld [vmem:[%s1 + $0x30] sm:$0xff]
    %v2581 = vld [vmem:[%s1 + $0x38] sm:$0xff]
    %v2582 = vld [vmem:[%s1 + $0x40] sm:$0xff]
    %v2583 = vld [vmem:[%s1 + $0x48] sm:$0xff]
    %v2584 = vld [vmem:[%s1 + $0x50] sm:$0xff]
    %v2585 = vld [vmem:[%s1 + $0x58] sm:$0xff]
    %v2586 = vld [vmem:[%s1 + $0x60] sm:$0xff]
    %v2587 = vld [vmem:[%s1 + $0x68] sm:$0xff]
    %v2588 = vld [vmem:[%s1 + $0x70] sm:$0xff]
    %v2589 = vld [vmem:[%s1 + $0x78] sm:$0xff]
    %v2591 = vsel %vm308, %v2570, 0
    %v2594 = vsel %vm308, %v2571, 0
    %v2597 = vsel %vm308, %v2572, 0
    %v2600 = vsel %vm308, %v2573, 0
    %v2603 = vsel %vm308, %v2574, 0
    %v2606 = vsel %vm308, %v2575, 0
    %v2609 = vsel %vm308, %v2576, 0
    %v2612 = vsel %vm308, %v2577, 0
    %v2615 = vsel %vm308, %v2578, 0
    %v2618 = vsel %vm308, %v2579, 0
    %v2621 = vsel %vm308, %v2580, 0
    %v2624 = vsel %vm308, %v2581, 0
    %v2627 = vsel %vm308, %v2582, 0
    %v2630 = vsel %vm308, %v2583, 0
    %v2633 = vsel %vm308, %v2584, 0
    %v2636 = vsel %vm308, %v2585, 0
    %v2639 = vsel %vm308, %v2586, 0
    %v2642 = vsel %vm308, %v2587, 0
    %v2645 = vsel %vm308, %v2588, 0
    %v2648 = vsel %vm308, %v2589, 0
    %2650 = vmatprep.subr.mxu0 0.0
    %2651 = vmatpush1.xpose.msra.mxu0 %v2603
    %2652 = vmatprep.subr.mxu0 0.0
    %2653 = vmatpush1.xpose.msra.mxu0 %v2606
    %2654 = vmatprep.subr.mxu0 0.0
    %2655 = vmatpush1.xpose.msra.mxu0 %v2609
    %2656 = vmatprep.subr.mxu0 0.0
    %2657 = vmatpush1.xpose.msra.mxu0 %v2612
    %2658 = vmatprep.subr.mxu0 0.0
    %2659 = vmatpush1.xpose.msra.mxu0 %v2615
    %2660 = vmatprep.subr.mxu0 0.0
    %2661 = vmatpush1.xpose.msra.mxu0 %v2618
    %2662 = vmatprep.subr.mxu0 0.0
    %2663 = vmatpush1.xpose.msra.mxu0 %v2621
    %2664 = vmatprep.subr.mxu0 0.0
    %2665 = vmatpush1.xpose.msra.mxu0 %v2624
    %2666 = vmatprep.subr.mxu0 0.0
    %2667 = vmatpush1.xpose.msra.mxu0 %v2627
    %2668 = vmatprep.subr.mxu0 0.0
    %2669 = vmatpush1.xpose.msra.mxu0 %v2630
    %2670 = vmatprep.subr.mxu0 0.0
    %2671 = vmatpush1.xpose.msra.mxu0 %v2633
    %2672 = vmatprep.subr.mxu0 0.0
    %2673 = vmatpush1.xpose.msra.mxu0 %v2636
    %2674 = vmatprep.subr.mxu0 0.0
    %2675 = vmatpush1.xpose.msra.mxu0 %v2639
    %2676 = vmatprep.subr.mxu0 0.0
    %2677 = vmatpush1.xpose.msra.mxu0 %v2642
    %2678 = vmatprep.subr.mxu0 0.0
    %2679 = vmatpush1.xpose.msra.mxu0 %v2645
    %2680 = vmatprep.subr.mxu0 0.0
    %2681 = vmatpush1.xpose.msra.mxu0 %v2648
    %2682 = vmatprep.subr.mxu0 0.0
    %2683 = vmatpush1.xpose.msra.mxu0 0.0
    %2684 = vmatprep.subr.mxu0 0.0
    %2685 = vmatpush1.xpose.msra.mxu0 0.0
    %2686 = vmatprep.subr.mxu0 0.0
    %2687 = vmatpush1.xpose.msra.mxu0 0.0
    %2688 = vmatprep.subr.mxu0 0.0
    %2689 = vmatpush1.xpose.msra.mxu0 0.0
    %2690 = vmatprep.subr.mxu0 0.0
    %2691 = vmatpush1.xpose.msra.mxu0 0.0
    %2692 = vmatprep.subr.mxu0 0.0
    %2693 = vmatpush1.xpose.msra.mxu0 0.0
    %2694 = vmatprep.subr.mxu0 0.0
    %2695 = vmatpush1.xpose.msra.mxu0 0.0
    %2696 = vmatprep.subr.mxu0 0.0
    %2697 = vmatpush1.xpose.msra.mxu0 0.0
    %2698 = vmatprep.subr.mxu0 0.0
    %2699 = vmatpush1.xpose.msra.mxu0 0.0
    %2700 = vmatprep.subr.mxu0 0.0
    %2701 = vmatpush1.xpose.msra.mxu0 0.0
    %2702 = vmatprep.subr.mxu0 0.0
    %2703 = vmatpush1.xpose.msra.mxu0 0.0
    %2704 = vmatprep.subr.mxu0 0.0
    %2705 = vmatpush1.xpose.msra.mxu0 0.0
    %2706 = vmatprep.subr.mxu0 0.0
    %2707 = vmatpush1.xpose.msra.mxu0 0.0
    %2708 = vmatprep.subr.mxu0 0.0
    %2709 = vmatpush1.xpose.msra.mxu0 0.0
    %2710 = vmatprep.subr.mxu0 0.0
    %2711 = vmatpush1.xpose.msra.mxu0 0.0
    %2712 = vmatprep.subr.mxu0 0.0
    %2713 = vmatpush1.xpose.msra.mxu0 0.0
    %2714 = vmatprep.mubr.f32.mxu0 0.0
    %2715 = vmatmul.mubr.f32.gmra.mrb[0].mxu0 %v2591
    %v2716 = vpop.f32.mrb[0].mxu0
    %v2717 = vadd.f32 0.0, %v2716
    %v2718 = vpop.f32.mrb[0].mxu0
    %2719 = vmatprep.mubr.f32.mxu0 0.0
    %2720 = vmatmul.mubr.f32.gmra.mrb[0].mxu0 %v2594
    %v2721 = vpop.f32.mrb[0].mxu0
    %v2722 = vadd.f32 0.0, %v2721
    %v2723 = vpop.f32.mrb[0].mxu0
    %2724 = vmatprep.mubr.f32.mxu0 0.0
    %2725 = vmatmul.mubr.f32.gmra.mrb[0].mxu0 %v2597
    %v2726 = vpop.f32.mrb[0].mxu0
    %v2727 = vadd.f32 0.0, %v2726
    %v2728 = vpop.f32.mrb[0].mxu0
    %2729 = vmatprep.mubr.f32.mxu0 0.0
    %2730 = vmatmul.mubr.f32.gmra.mrb[0].mxu0 %v2600
    %v2731 = vpop.f32.mrb[0].mxu0
    %v2732 = vadd.f32 0.0, %v2731
    %v2733 = vpop.f32.mrb[0].mxu0
    %2734 = vdwg.mxu0
    %2737 = vrot.lane.b32.xlu0 %v2566, 32
    %v2738 = vpop.permute.xlu0 %2737
    %2739 = vrot.lane.b32.xlu0 %v2569, 32
    %v2740 = vpop.permute.xlu0 %2739
    %v2741 = vsel %vm396, %v2738, 0
    %v2743 = vsel %vm396, %v2740, 0
    %2745 = vmatprep.subr.mxu0 0.0
    %2746 = vmatpush1.msra.mxu0 %v2717
    %2747 = vmatprep.subr.mxu0 0.0
    %2748 = vmatpush1.msra.mxu0 %v2722
    %2749 = vmatprep.subr.mxu0 0.0
    %2750 = vmatpush1.msra.mxu0 %v2727
    %2751 = vmatprep.subr.mxu0 0.0
    %2752 = vmatpush1.msra.mxu0 %v2732
    %2753 = vmatprep.subr.mxu0 0.0
    %2754 = vmatpush1.msra.mxu0 0.0
    %2755 = vmatprep.subr.mxu0 0.0
    %2756 = vmatpush1.msra.mxu0 0.0
    %2757 = vmatprep.subr.mxu0 0.0
    %2758 = vmatpush1.msra.mxu0 0.0
    %2759 = vmatprep.subr.mxu0 0.0
    %2760 = vmatpush1.msra.mxu0 0.0
    %2761 = vmatprep.subr.mxu0 0.0
    %2762 = vmatpush1.msra.mxu0 0.0
    %2763 = vmatprep.subr.mxu0 0.0
    %2764 = vmatpush1.msra.mxu0 0.0
    %2765 = vmatprep.subr.mxu0 0.0
    %2766 = vmatpush1.msra.mxu0 0.0
    %2767 = vmatprep.subr.mxu0 0.0
    %2768 = vmatpush1.msra.mxu0 0.0
    %2769 = vmatprep.subr.mxu0 0.0
    %2770 = vmatpush1.msra.mxu0 0.0
    %2771 = vmatprep.subr.mxu0 0.0
    %2772 = vmatpush1.msra.mxu0 0.0
    %2773 = vmatprep.subr.mxu0 0.0
    %2774 = vmatpush1.msra.mxu0 0.0
    %2775 = vmatprep.subr.mxu0 0.0
    %2776 = vmatpush1.msra.mxu0 0.0
    %2777 = vmatprep.subr.mxu0 0.0
    %2778 = vmatpush1.msra.mxu0 0.0
    %2779 = vmatprep.subr.mxu0 0.0
    %2780 = vmatpush1.msra.mxu0 0.0
    %2781 = vmatprep.subr.mxu0 0.0
    %2782 = vmatpush1.msra.mxu0 0.0
    %2783 = vmatprep.subr.mxu0 0.0
    %2784 = vmatpush1.msra.mxu0 0.0
    %2785 = vmatprep.subr.mxu0 0.0
    %2786 = vmatpush1.msra.mxu0 0.0
    %2787 = vmatprep.subr.mxu0 0.0
    %2788 = vmatpush1.msra.mxu0 0.0
    %2789 = vmatprep.subr.mxu0 0.0
    %2790 = vmatpush1.msra.mxu0 0.0
    %2791 = vmatprep.subr.mxu0 0.0
    %2792 = vmatpush1.msra.mxu0 0.0
    %2793 = vmatprep.subr.mxu0 0.0
    %2794 = vmatpush1.msra.mxu0 0.0
    %2795 = vmatprep.subr.mxu0 0.0
    %2796 = vmatpush1.msra.mxu0 0.0
    %2797 = vmatprep.subr.mxu0 0.0
    %2798 = vmatpush1.msra.mxu0 0.0
    %2799 = vmatprep.subr.mxu0 0.0
    %2800 = vmatpush1.msra.mxu0 0.0
    %2801 = vmatprep.subr.mxu0 0.0
    %2802 = vmatpush1.msra.mxu0 0.0
    %2803 = vmatprep.subr.mxu0 0.0
    %2804 = vmatpush1.msra.mxu0 0.0
    %2805 = vmatprep.subr.mxu0 0.0
    %2806 = vmatpush1.msra.mxu0 0.0
    %2807 = vmatprep.subr.mxu0 0.0
    %2808 = vmatpush1.msra.mxu0 0.0
    %2809 = vmatprep.mubr.f32.mxu0 0.0
    %2810 = vmatmul.mubr.f32.gmra.mrb[0].mxu0 %v2741
    %v2811 = vpop.f32.mrb[0].mxu0
    %v2812 = vadd.f32 0.0, %v2811
    %v2813 = vpop.f32.mrb[0].mxu0
    %2814 = vmatprep.mubr.f32.mxu0 0.0
    %2815 = vmatmul.mubr.f32.gmra.mrb[0].mxu0 %v2743
    %v2816 = vpop.f32.mrb[0].mxu0
    %v2817 = vadd.f32 0.0, %v2816
    %v2818 = vpop.f32.mrb[0].mxu0
    %2819 = vdwg.mxu0
    %2820 = vst [vmem:[#allocation6] sm:$0xff] %v2812
    %2821 = vst [vmem:[#allocation6 + $0x8] sm:$0xff] %v2817
    // Predicated region
    $region46: #{vqvae_forward.1} parent=1 // pred_check
      _
    $region47: #{vqvae_forward.1} parent=1 // pred_check_branch
      %2823 = sbr.rel (0) target = $region49
    $region48: #{vqvae_forward.1} parent=1 // pred_region
      %s2825 = ssub.s32 256, 256
      %2826 = vsyncadd [#allocation3], %s2825
      %s2827 = sshll.u32 [#allocation6], 4
      %s2828 = int_to_ptr.vmem [resolvable:$true] %s2827
      %2833 = dma.vmem_to_hbm [thread:$0]  %s2828, 256, %s10, [#allocation3], 128, 128, 8
    $region49: #{vqvae_forward.1} parent=1 // pred_fallthru
      _
    // Predicated region
    $region50: #{vqvae_forward.1} parent=1 // pred_check
      _
    $region51: #{vqvae_forward.1} parent=1 // pred_check_branch
      %2835 = sbr.rel (0) target = $region53
    $region52: #{vqvae_forward.1} parent=1 // pred_region
      %s2837 = ssub.s32 16, 16
      %2838 = vsyncadd [#allocation4], %s2837
      %2841 = dma.smem_to_hbm [#allocation7], 16, %s11, [#allocation4]
    $region53: #{vqvae_forward.1} parent=1 // pred_fallthru
      _
    // Predicated region
    $region54: #{vqvae_forward.1} parent=1 // pred_check
      _
    $region55: #{vqvae_forward.1} parent=1 // pred_check_branch
      %2843 = sbr.rel (0) target = $region57
    $region56: #{vqvae_forward.1} parent=1 // pred_region
      %2844 = dma.done [#allocation3], 256
    $region57: #{vqvae_forward.1} parent=1 // pred_fallthru
      _
    // Predicated region
    $region58: #{vqvae_forward.1} parent=1 // pred_check
      _
    $region59: #{vqvae_forward.1} parent=1 // pred_check_branch
      %2846 = sbr.rel (0) target = $region61
    $region60: #{vqvae_forward.1} parent=1 // pred_region
      %2847 = dma.done [#allocation4], 16
    $region61: #{vqvae_forward.1} parent=1 // pred_fallthru
      _
    %2848 = sfence
    %2849 = vsyncpa [#allocation3], 1
    %2850 = vsyncpa [#allocation4], 1
    %2851 = vsyncpa [#allocation5], 1

</llo_original>
